<compile_context>
chip_gen: v7x
topology: tpu7x:2x2x1
jax: 0.10.0
libtpu: 0.0.40
codegen_flags: <defaults>
</compile_context>

<pallas_src>
import functools

import jax
import jax.numpy as jnp
from jax.experimental import pallas as pl
from jax.experimental.pallas import tpu as pltpu


def _round_up(x, m):
    return (x + m - 1) // m * m


_VMEM_LIMIT = 32 * 1024 * 1024


# ----------------------------------------------------------------------------
# Kernel 1: fused Conv1d(stride=2) + BatchNorm(eval) + ReLU, lane-dense output
# ----------------------------------------------------------------------------
def _conv_bn_relu_kernel(xe_ref, xo_ref, w_ref, shift_ref, o_ref, *, ksize, l_out):
    """Per-batch-element conv via tap-accumulated matmuls.

    xe_ref: (1, C_in, L_out + 2)  even-phase input (bf16)
    xo_ref: (1, C_in, L_out + 1)  odd-phase input (bf16)
    w_ref : (K, C_out, C_in)      BN-scale-folded weights (bf16)
    shift_ref: (C_out, 1)         folded bias/BN shift (f32)
    o_ref : (1, C_out, L_out)     output (bf16), L_out on the lane axis
    """
    c_out = w_ref.shape[1]
    c_in = w_ref.shape[2]
    xe = xe_ref[0]
    xo = xo_ref[0]

    acc = jnp.zeros((c_out, l_out), jnp.float32)
    for t in range(ksize):
        j = t // 2
        src = xe if t % 2 == 0 else xo
        win = src[:, j:j + l_out]                       # (C_in, L_out), static slice
        wt = w_ref[t]                                   # (C_out, C_in)
        if c_in == 1:
            # degenerate K=1 contraction -> cheap broadcasted multiply on the VPU
            acc += wt.astype(jnp.float32) * win.astype(jnp.float32)
        else:
            acc += jnp.dot(wt, win, preferred_element_type=jnp.float32)

    y = acc + shift_ref[...]                            # (C_out, L_out) + (C_out, 1)
    o_ref[0] = jnp.maximum(y, 0.0).astype(o_ref.dtype)


def conv_bn_relu(x, w, b, gamma, beta, running_mean, running_var, *, stride=2, eps=1e-5):
    """Conv1d(stride=2, no padding) + BatchNorm1d(eval) + ReLU.

    x: (B, C_in, L) ; w: (C_out, C_in, K) ; returns (B, C_out, L_out) bf16 (NCL layout).
    """
    assert stride == 2
    B, C_in, L = x.shape
    C_out, _, K = w.shape
    L_out = (L - K) // stride + 1

    # Fold BN (eval) into weights / shift:  (conv+b - mean)*scale + beta
    scale = gamma / jnp.sqrt(running_var + eps)                       # (C_out,)
    w_folded = (w * scale[:, None, None]).astype(jnp.bfloat16)        # (C_out, C_in, K)
    w_km = jnp.transpose(w_folded, (2, 0, 1))                         # (K, C_out, C_in)
    shift = ((b - running_mean) * scale + beta).astype(jnp.float32).reshape(C_out, 1)

    # Even/odd phase split of the length axis (stride-2): x[..., 2l+t] == phase[t%2][..., l + t//2]
    le = L_out + (K - 1) // 2
    lo = L_out + (K - 2) // 2
    xe = x[:, :, 0::2][:, :, :le].astype(jnp.bfloat16)                # (B, C_in, le)
    xo = x[:, :, 1::2][:, :, :lo].astype(jnp.bfloat16)                # (B, C_in, lo)

    kernel = functools.partial(_conv_bn_relu_kernel, ksize=K, l_out=L_out)
    return pl.pallas_call(
        kernel,
        out_shape=jax.ShapeDtypeStruct((B, C_out, L_out), jnp.bfloat16),
        grid=(B,),
        in_specs=[
            pl.BlockSpec((1, C_in, le), lambda bi: (bi, 0, 0)),
            pl.BlockSpec((1, C_in, lo), lambda bi: (bi, 0, 0)),
            pl.BlockSpec((K, C_out, C_in), lambda bi: (0, 0, 0)),
            pl.BlockSpec((C_out, 1), lambda bi: (0, 0)),
        ],
        out_specs=pl.BlockSpec((1, C_out, L_out), lambda bi: (bi, 0, 0)),
        compiler_params=pltpu.CompilerParams(
            dimension_semantics=("parallel",),
            vmem_limit_bytes=_VMEM_LIMIT,
        ),
    )(xe, xo, w_km, shift)


# ----------------------------------------------------------------------------
# Kernel 2: tiled matmul + bias (+ optional ReLU), K-reduction grid with f32 accumulator
# ----------------------------------------------------------------------------
def _linear_kernel(x_ref, w_ref, b_ref, o_ref, acc_ref, *, apply_relu):
    @pl.when(pl.program_id(2) == 0)
    def _():
        acc_ref[...] = jnp.zeros_like(acc_ref)

    acc_ref[...] += jnp.dot(x_ref[...], w_ref[...],
                            preferred_element_type=jnp.float32)

    @pl.when(pl.program_id(2) == pl.num_programs(2) - 1)
    def _():
        y = acc_ref[...] + b_ref[...]
        if apply_relu:
            y = jnp.maximum(y, 0.0)
        o_ref[...] = y.astype(o_ref.dtype)


def fused_linear(x, w, b, *, apply_relu, out_dtype=jnp.float32):
    """out = relu?(x @ w + b); x:(M,K), w:(K,N), b:(N,). bf16 operands, f32 accumulate."""
    M, K = x.shape
    K2, N = w.shape
    assert K == K2

    # Tile sizes (VMEM-budgeted): K streams in <=4096 chunks; N is one lane-dense 128 block
    # when possible; M tiles at <=256 rows.
    tk = 4096 if K > 4096 else min(512, _round_up(K, 128))
    tn = 128 if N >= 128 else N
    tm = 256 if M > 256 else M
    Kp, Np, Mp = _round_up(K, tk), _round_up(N, tn), _round_up(M, tm)

    xb = jnp.pad(x.astype(jnp.bfloat16), ((0, Mp - M), (0, Kp - K)))
    wb = jnp.pad(w.astype(jnp.bfloat16), ((0, Kp - K), (0, Np - N)))
    bb = jnp.pad(b.astype(jnp.float32), (0, Np - N)).reshape(1, Np)

    kernel = functools.partial(_linear_kernel, apply_relu=apply_relu)
    out = pl.pallas_call(
        kernel,
        out_shape=jax.ShapeDtypeStruct((Mp, Np), out_dtype),
        grid=(Mp // tm, Np // tn, Kp // tk),
        in_specs=[
            pl.BlockSpec((tm, tk), lambda m, n, k: (m, k)),
            pl.BlockSpec((tk, tn), lambda m, n, k: (k, n)),
            pl.BlockSpec((1, tn), lambda m, n, k: (0, n)),
        ],
        out_specs=pl.BlockSpec((tm, tn), lambda m, n, k: (m, n)),
        scratch_shapes=[pltpu.VMEM((tm, tn), jnp.float32)],
        compiler_params=pltpu.CompilerParams(
            dimension_semantics=("parallel", "parallel", "arbitrary"),
            vmem_limit_bytes=_VMEM_LIMIT,
        ),
    )(xb, wb, bb)

    if (Mp, Np) != (M, N):
        out = out[:M, :N]
    return out


# ----------------------------------------------------------------------------
# Model: parameter init + forward
# ----------------------------------------------------------------------------
def init_params(key, flat_dim):
    ks = jax.random.split(key, 22)

    def norm(k, shape, s=0.1):
        return (s * jax.random.normal(k, shape)).astype(jnp.float32)

    params = {
        "conv1_w": norm(ks[0], (16, 1, 5)),   "conv1_b": norm(ks[1], (16,)),
        "bn1_g": jnp.ones((16,), jnp.float32) + norm(ks[2], (16,), 0.01),
        "bn1_b": norm(ks[3], (16,)), "bn1_m": norm(ks[4], (16,)),
        "bn1_v": jnp.ones((16,), jnp.float32) + jnp.abs(norm(ks[5], (16,), 0.05)),

        "conv2_w": norm(ks[6], (32, 16, 5)),  "conv2_b": norm(ks[7], (32,)),
        "bn2_g": jnp.ones((32,), jnp.float32) + norm(ks[8], (32,), 0.01),
        "bn2_b": norm(ks[9], (32,)), "bn2_m": norm(ks[10], (32,)),
        "bn2_v": jnp.ones((32,), jnp.float32) + jnp.abs(norm(ks[11], (32,), 0.05)),

        "conv3_w": norm(ks[12], (64, 32, 5)), "conv3_b": norm(ks[13], (64,)),
        "bn3_g": jnp.ones((64,), jnp.float32) + norm(ks[14], (64,), 0.01),
        "bn3_b": norm(ks[15], (64,)), "bn3_m": norm(ks[16], (64,)),
        "bn3_v": jnp.ones((64,), jnp.float32) + jnp.abs(norm(ks[17], (64,), 0.05)),

        "fc1_w": norm(ks[18], (128, flat_dim), 0.02), "fc1_b": norm(ks[19], (128,)),
        "fc2_w": norm(ks[20], (3, 128), 0.02),        "fc2_b": norm(ks[21], (3,)),
    }
    return params


def cnn_classifier_forward(params, x):
    """x: (B, 1, L) float32 -> logits (B, 3) float32."""
    x = conv_bn_relu(x, params["conv1_w"], params["conv1_b"],
                     params["bn1_g"], params["bn1_b"], params["bn1_m"], params["bn1_v"])
    x = conv_bn_relu(x, params["conv2_w"], params["conv2_b"],
                     params["bn2_g"], params["bn2_b"], params["bn2_m"], params["bn2_v"])
    x = conv_bn_relu(x, params["conv3_w"], params["conv3_b"],
                     params["bn3_g"], params["bn3_b"], params["bn3_m"], params["bn3_v"])
    B = x.shape[0]
    x = x.reshape(B, -1)                      # NCL layout -> channel-major flatten == torch .view
    x = fused_linear(x, params["fc1_w"].T, params["fc1_b"],
                     apply_relu=True, out_dtype=jnp.bfloat16)
    # Dropout(0.3): identity in eval / inference mode (no RNG masking needed).
    logits = fused_linear(x, params["fc2_w"].T, params["fc2_b"],
                          apply_relu=False, out_dtype=jnp.float32)
    return logits


if __name__ == "__main__":
    # Small synthetic shapes (original TARGET_LEN=64000 scaled down to L=128).
    B, L = 2, 128
    l1 = (L - 5) // 2 + 1      # 62
    l2 = (l1 - 5) // 2 + 1     # 29
    l3 = (l2 - 5) // 2 + 1     # 13
    flat_dim = 64 * l3         # 832

    key = jax.random.PRNGKey(0)
    k_params, k_x = jax.random.split(key)
    params = init_params(k_params, flat_dim)
    x = jax.random.normal(k_x, (B, 1, L), dtype=jnp.float32)

    fwd = jax.jit(cnn_classifier_forward)
    logits = fwd(params, x)
    jax.block_until_ready(logits)
    assert logits.shape == (B, 3), logits.shape
    print("KERNEL_OK")
</pallas_src>

<mosaic_0001>
module attributes {stable_mosaic.version = 11 : i64} {
  func.func @_conv_bn_relu_kernel(%arg0: i32, %arg1: memref<1x1x64xbf16, #tpu.memory_space<vmem>>, %arg2: memref<1x1x63xbf16, #tpu.memory_space<vmem>>, %arg3: memref<5x16x1xbf16, #tpu.memory_space<vmem>>, %arg4: memref<16x1xf32, #tpu.memory_space<vmem>>, %arg5: memref<1x16x62xbf16, #tpu.memory_space<vmem>>) attributes {dimension_semantics = [#tpu.dimension_semantics<parallel>], iteration_bounds = array<i64: 2>, scalar_prefetch = 0 : i64, scratch_operands = 0 : i64, tpu.core_type = #tpu.core_type<tc>, window_params = [{transform_indices = @transform_0, window_bounds = array<i64: 1, 1, 64>}, {transform_indices = @transform_1, window_bounds = array<i64: 1, 1, 63>}, {pipeline_mode = #tpu.pipeline_mode<synchronous>, transform_indices = @transform_2, window_bounds = array<i64: 5, 16, 1>}, {pipeline_mode = #tpu.pipeline_mode<synchronous>, transform_indices = @transform_3, window_bounds = array<i64: 16, 1>}, {transform_indices = @transform_4, window_bounds = array<i64: 1, 16, 62>}]} {
    %c0 = arith.constant 0 : index
    %c0_0 = arith.constant 0 : index
    %c0_1 = arith.constant 0 : index
    %0 = vector.load %arg1[%c0, %c0_0, %c0_1] : memref<1x1x64xbf16, #tpu.memory_space<vmem>>, vector<1x1x64xbf16>
    %1 = vector.shape_cast %0 : vector<1x1x64xbf16> to vector<1x64xbf16>
    %c0_2 = arith.constant 0 : index
    %c0_3 = arith.constant 0 : index
    %c0_4 = arith.constant 0 : index
    %2 = vector.load %arg2[%c0_2, %c0_3, %c0_4] : memref<1x1x63xbf16, #tpu.memory_space<vmem>>, vector<1x1x63xbf16>
    %3 = vector.shape_cast %2 : vector<1x1x63xbf16> to vector<1x63xbf16>
    %cst = arith.constant 0.000000e+00 : f32
    %4 = vector.broadcast %cst : f32 to vector<16x62xf32>
    %5 = vector.extract_strided_slice %1 {offsets = [0, 0], sizes = [1, 62], strides = [1, 1]} : vector<1x64xbf16> to vector<1x62xbf16>
    %c0_5 = arith.constant 0 : index
    %c0_6 = arith.constant 0 : index
    %c0_7 = arith.constant 0 : index
    %6 = vector.load %arg3[%c0_5, %c0_6, %c0_7] : memref<5x16x1xbf16, #tpu.memory_space<vmem>>, vector<1x16x1xbf16>
    %7 = vector.shape_cast %6 : vector<1x16x1xbf16> to vector<16x1xbf16>
    %8 = arith.extf %7 : vector<16x1xbf16> to vector<16x1xf32>
    %9 = arith.extf %5 : vector<1x62xbf16> to vector<1x62xf32>
    %10 = vector.broadcast %8 : vector<16x1xf32> to vector<16x62xf32>
    %11 = vector.broadcast %9 : vector<1x62xf32> to vector<16x62xf32>
    %12 = arith.mulf %10, %11 : vector<16x62xf32>
    %13 = arith.addf %4, %12 : vector<16x62xf32>
    %14 = vector.extract_strided_slice %3 {offsets = [0, 0], sizes = [1, 62], strides = [1, 1]} : vector<1x63xbf16> to vector<1x62xbf16>
    %c1 = arith.constant 1 : index
    %c0_8 = arith.constant 0 : index
    %c0_9 = arith.constant 0 : index
    %15 = vector.load %arg3[%c1, %c0_8, %c0_9] : memref<5x16x1xbf16, #tpu.memory_space<vmem>>, vector<1x16x1xbf16>
    %16 = vector.shape_cast %15 : vector<1x16x1xbf16> to vector<16x1xbf16>
    %17 = arith.extf %16 : vector<16x1xbf16> to vector<16x1xf32>
    %18 = arith.extf %14 : vector<1x62xbf16> to vector<1x62xf32>
    %19 = vector.broadcast %17 : vector<16x1xf32> to vector<16x62xf32>
    %20 = vector.broadcast %18 : vector<1x62xf32> to vector<16x62xf32>
    %21 = arith.mulf %19, %20 : vector<16x62xf32>
    %22 = arith.addf %13, %21 : vector<16x62xf32>
    %23 = vector.extract_strided_slice %1 {offsets = [0, 1], sizes = [1, 62], strides = [1, 1]} : vector<1x64xbf16> to vector<1x62xbf16>
    %c2 = arith.constant 2 : index
    %c0_10 = arith.constant 0 : index
    %c0_11 = arith.constant 0 : index
    %24 = vector.load %arg3[%c2, %c0_10, %c0_11] : memref<5x16x1xbf16, #tpu.memory_space<vmem>>, vector<1x16x1xbf16>
    %25 = vector.shape_cast %24 : vector<1x16x1xbf16> to vector<16x1xbf16>
    %26 = arith.extf %25 : vector<16x1xbf16> to vector<16x1xf32>
    %27 = arith.extf %23 : vector<1x62xbf16> to vector<1x62xf32>
    %28 = vector.broadcast %26 : vector<16x1xf32> to vector<16x62xf32>
    %29 = vector.broadcast %27 : vector<1x62xf32> to vector<16x62xf32>
    %30 = arith.mulf %28, %29 : vector<16x62xf32>
    %31 = arith.addf %22, %30 : vector<16x62xf32>
    %32 = vector.extract_strided_slice %3 {offsets = [0, 1], sizes = [1, 62], strides = [1, 1]} : vector<1x63xbf16> to vector<1x62xbf16>
    %c3 = arith.constant 3 : index
    %c0_12 = arith.constant 0 : index
    %c0_13 = arith.constant 0 : index
    %33 = vector.load %arg3[%c3, %c0_12, %c0_13] : memref<5x16x1xbf16, #tpu.memory_space<vmem>>, vector<1x16x1xbf16>
    %34 = vector.shape_cast %33 : vector<1x16x1xbf16> to vector<16x1xbf16>
    %35 = arith.extf %34 : vector<16x1xbf16> to vector<16x1xf32>
    %36 = arith.extf %32 : vector<1x62xbf16> to vector<1x62xf32>
    %37 = vector.broadcast %35 : vector<16x1xf32> to vector<16x62xf32>
    %38 = vector.broadcast %36 : vector<1x62xf32> to vector<16x62xf32>
    %39 = arith.mulf %37, %38 : vector<16x62xf32>
    %40 = arith.addf %31, %39 : vector<16x62xf32>
    %41 = vector.extract_strided_slice %1 {offsets = [0, 2], sizes = [1, 62], strides = [1, 1]} : vector<1x64xbf16> to vector<1x62xbf16>
    %c4 = arith.constant 4 : index
    %c0_14 = arith.constant 0 : index
    %c0_15 = arith.constant 0 : index
    %42 = vector.load %arg3[%c4, %c0_14, %c0_15] : memref<5x16x1xbf16, #tpu.memory_space<vmem>>, vector<1x16x1xbf16>
    %43 = vector.shape_cast %42 : vector<1x16x1xbf16> to vector<16x1xbf16>
    %44 = arith.extf %43 : vector<16x1xbf16> to vector<16x1xf32>
    %45 = arith.extf %41 : vector<1x62xbf16> to vector<1x62xf32>
    %46 = vector.broadcast %44 : vector<16x1xf32> to vector<16x62xf32>
    %47 = vector.broadcast %45 : vector<1x62xf32> to vector<16x62xf32>
    %48 = arith.mulf %46, %47 : vector<16x62xf32>
    %49 = arith.addf %40, %48 : vector<16x62xf32>
    %c0_16 = arith.constant 0 : index
    %c0_17 = arith.constant 0 : index
    %50 = vector.load %arg4[%c0_16, %c0_17] : memref<16x1xf32, #tpu.memory_space<vmem>>, vector<16x1xf32>
    %51 = vector.broadcast %50 : vector<16x1xf32> to vector<16x62xf32>
    %52 = arith.addf %49, %51 : vector<16x62xf32>
    %cst_18 = arith.constant 0.000000e+00 : f32
    %53 = vector.broadcast %cst_18 : f32 to vector<16x62xf32>
    %54 = arith.maximumf %52, %53 : vector<16x62xf32>
    %55 = arith.truncf %54 : vector<16x62xf32> to vector<16x62xbf16>
    %c0_19 = arith.constant 0 : index
    %c0_20 = arith.constant 0 : index
    %c0_21 = arith.constant 0 : index
    %56 = vector.load %arg5[%c0_19, %c0_20, %c0_21] : memref<1x16x62xbf16, #tpu.memory_space<vmem>>, vector<1x16x62xbf16>
    %57 = vector.shape_cast %56 : vector<1x16x62xbf16> to vector<16x62xbf16>
    %58 = vector.shape_cast %55 : vector<16x62xbf16> to vector<1x16x62xbf16>
    tpu.vector_store %arg5[%c0_19, %c0_20, %c0_21], %58 {strides = array<i32>} : memref<1x16x62xbf16, #tpu.memory_space<vmem>>, vector<1x16x62xbf16>,
    return
  }
  func.func @transform_0(%arg0: i32) -> (i32, i32, i32) {
    %c0_i32 = arith.constant 0 : i32
    %c0_i32_0 = arith.constant 0 : i32
    %c0_i32_1 = arith.constant 0 : i32
    return %arg0, %c0_i32, %c0_i32_0 : i32, i32, i32
  }
  func.func @transform_1(%arg0: i32) -> (i32, i32, i32) {
    %c0_i32 = arith.constant 0 : i32
    %c0_i32_0 = arith.constant 0 : i32
    %c0_i32_1 = arith.constant 0 : i32
    return %arg0, %c0_i32, %c0_i32_0 : i32, i32, i32
  }
  func.func @transform_2(%arg0: i32) -> (i32, i32, i32) {
    %c0_i32 = arith.constant 0 : i32
    %c0_i32_0 = arith.constant 0 : i32
    %c0_i32_1 = arith.constant 0 : i32
    %c0_i32_2 = arith.constant 0 : i32
    return %c0_i32, %c0_i32_0, %c0_i32_1 : i32, i32, i32
  }
  func.func @transform_3(%arg0: i32) -> (i32, i32) {
    %c0_i32 = arith.constant 0 : i32
    %c0_i32_0 = arith.constant 0 : i32
    %c0_i32_1 = arith.constant 0 : i32
    return %c0_i32, %c0_i32_0 : i32, i32
  }
  func.func @transform_4(%arg0: i32) -> (i32, i32, i32) {
    %c0_i32 = arith.constant 0 : i32
    %c0_i32_0 = arith.constant 0 : i32
    %c0_i32_1 = arith.constant 0 : i32
    return %arg0, %c0_i32, %c0_i32_0 : i32, i32, i32
  }
}

module attributes {stable_mosaic.version = 11 : i64} {
  func.func @_conv_bn_relu_kernel(%arg0: i32, %arg1: memref<1x16x31xbf16, #tpu.memory_space<vmem>>, %arg2: memref<1x16x30xbf16, #tpu.memory_space<vmem>>, %arg3: memref<5x32x16xbf16, #tpu.memory_space<vmem>>, %arg4: memref<32x1xf32, #tpu.memory_space<vmem>>, %arg5: memref<1x32x29xbf16, #tpu.memory_space<vmem>>) attributes {dimension_semantics = [#tpu.dimension_semantics<parallel>], iteration_bounds = array<i64: 2>, scalar_prefetch = 0 : i64, scratch_operands = 0 : i64, tpu.core_type = #tpu.core_type<tc>, window_params = [{transform_indices = @transform_0, window_bounds = array<i64: 1, 16, 31>}, {transform_indices = @transform_1, window_bounds = array<i64: 1, 16, 30>}, {pipeline_mode = #tpu.pipeline_mode<synchronous>, transform_indices = @transform_2, window_bounds = array<i64: 5, 32, 16>}, {pipeline_mode = #tpu.pipeline_mode<synchronous>, transform_indices = @transform_3, window_bounds = array<i64: 32, 1>}, {transform_indices = @transform_4, window_bounds = array<i64: 1, 32, 29>}]} {
    %c0 = arith.constant 0 : index
    %c0_0 = arith.constant 0 : index
    %c0_1 = arith.constant 0 : index
    %0 = vector.load %arg1[%c0, %c0_0, %c0_1] : memref<1x16x31xbf16, #tpu.memory_space<vmem>>, vector<1x16x31xbf16>
    %1 = vector.shape_cast %0 : vector<1x16x31xbf16> to vector<16x31xbf16>
    %c0_2 = arith.constant 0 : index
    %c0_3 = arith.constant 0 : index
    %c0_4 = arith.constant 0 : index
    %2 = vector.load %arg2[%c0_2, %c0_3, %c0_4] : memref<1x16x30xbf16, #tpu.memory_space<vmem>>, vector<1x16x30xbf16>
    %3 = vector.shape_cast %2 : vector<1x16x30xbf16> to vector<16x30xbf16>
    %cst = arith.constant 0.000000e+00 : f32
    %4 = vector.broadcast %cst : f32 to vector<32x29xf32>
    %5 = vector.extract_strided_slice %1 {offsets = [0, 0], sizes = [16, 29], strides = [1, 1]} : vector<16x31xbf16> to vector<16x29xbf16>
    %c0_5 = arith.constant 0 : index
    %c0_6 = arith.constant 0 : index
    %c0_7 = arith.constant 0 : index
    %6 = vector.load %arg3[%c0_5, %c0_6, %c0_7] : memref<5x32x16xbf16, #tpu.memory_space<vmem>>, vector<1x32x16xbf16>
    %7 = vector.shape_cast %6 : vector<1x32x16xbf16> to vector<32x16xbf16>
    %cst_8 = arith.constant dense<0.000000e+00> : vector<32x29xf32>
    %8 = tpu.matmul %7, %5, %cst_8 {dimension_numbers = #tpu.dot_dimension_numbers<[1], [0], [0], [1], [0, 0, 1, 1], [], []>} : vector<32x16xbf16>, vector<16x29xbf16>, vector<32x29xf32> -> vector<32x29xf32>
    %9 = arith.addf %4, %8 : vector<32x29xf32>
    %10 = vector.extract_strided_slice %3 {offsets = [0, 0], sizes = [16, 29], strides = [1, 1]} : vector<16x30xbf16> to vector<16x29xbf16>
    %c1 = arith.constant 1 : index
    %c0_9 = arith.constant 0 : index
    %c0_10 = arith.constant 0 : index
    %11 = vector.load %arg3[%c1, %c0_9, %c0_10] : memref<5x32x16xbf16, #tpu.memory_space<vmem>>, vector<1x32x16xbf16>
    %12 = vector.shape_cast %11 : vector<1x32x16xbf16> to vector<32x16xbf16>
    %cst_11 = arith.constant dense<0.000000e+00> : vector<32x29xf32>
    %13 = tpu.matmul %12, %10, %cst_11 {dimension_numbers = #tpu.dot_dimension_numbers<[1], [0], [0], [1], [0, 0, 1, 1], [], []>} : vector<32x16xbf16>, vector<16x29xbf16>, vector<32x29xf32> -> vector<32x29xf32>
    %14 = arith.addf %9, %13 : vector<32x29xf32>
    %15 = vector.extract_strided_slice %1 {offsets = [0, 1], sizes = [16, 29], strides = [1, 1]} : vector<16x31xbf16> to vector<16x29xbf16>
    %c2 = arith.constant 2 : index
    %c0_12 = arith.constant 0 : index
    %c0_13 = arith.constant 0 : index
    %16 = vector.load %arg3[%c2, %c0_12, %c0_13] : memref<5x32x16xbf16, #tpu.memory_space<vmem>>, vector<1x32x16xbf16>
    %17 = vector.shape_cast %16 : vector<1x32x16xbf16> to vector<32x16xbf16>
    %cst_14 = arith.constant dense<0.000000e+00> : vector<32x29xf32>
    %18 = tpu.matmul %17, %15, %cst_14 {dimension_numbers = #tpu.dot_dimension_numbers<[1], [0], [0], [1], [0, 0, 1, 1], [], []>} : vector<32x16xbf16>, vector<16x29xbf16>, vector<32x29xf32> -> vector<32x29xf32>
    %19 = arith.addf %14, %18 : vector<32x29xf32>
    %20 = vector.extract_strided_slice %3 {offsets = [0, 1], sizes = [16, 29], strides = [1, 1]} : vector<16x30xbf16> to vector<16x29xbf16>
    %c3 = arith.constant 3 : index
    %c0_15 = arith.constant 0 : index
    %c0_16 = arith.constant 0 : index
    %21 = vector.load %arg3[%c3, %c0_15, %c0_16] : memref<5x32x16xbf16, #tpu.memory_space<vmem>>, vector<1x32x16xbf16>
    %22 = vector.shape_cast %21 : vector<1x32x16xbf16> to vector<32x16xbf16>
    %cst_17 = arith.constant dense<0.000000e+00> : vector<32x29xf32>
    %23 = tpu.matmul %22, %20, %cst_17 {dimension_numbers = #tpu.dot_dimension_numbers<[1], [0], [0], [1], [0, 0, 1, 1], [], []>} : vector<32x16xbf16>, vector<16x29xbf16>, vector<32x29xf32> -> vector<32x29xf32>
    %24 = arith.addf %19, %23 : vector<32x29xf32>
    %25 = vector.extract_strided_slice %1 {offsets = [0, 2], sizes = [16, 29], strides = [1, 1]} : vector<16x31xbf16> to vector<16x29xbf16>
    %c4 = arith.constant 4 : index
    %c0_18 = arith.constant 0 : index
    %c0_19 = arith.constant 0 : index
    %26 = vector.load %arg3[%c4, %c0_18, %c0_19] : memref<5x32x16xbf16, #tpu.memory_space<vmem>>, vector<1x32x16xbf16>
    %27 = vector.shape_cast %26 : vector<1x32x16xbf16> to vector<32x16xbf16>
    %cst_20 = arith.constant dense<0.000000e+00> : vector<32x29xf32>
    %28 = tpu.matmul %27, %25, %cst_20 {dimension_numbers = #tpu.dot_dimension_numbers<[1], [0], [0], [1], [0, 0, 1, 1], [], []>} : vector<32x16xbf16>, vector<16x29xbf16>, vector<32x29xf32> -> vector<32x29xf32>
    %29 = arith.addf %24, %28 : vector<32x29xf32>
    %c0_21 = arith.constant 0 : index
    %c0_22 = arith.constant 0 : index
    %30 = vector.load %arg4[%c0_21, %c0_22] : memref<32x1xf32, #tpu.memory_space<vmem>>, vector<32x1xf32>
    %31 = vector.broadcast %30 : vector<32x1xf32> to vector<32x29xf32>
    %32 = arith.addf %29, %31 : vector<32x29xf32>
    %cst_23 = arith.constant 0.000000e+00 : f32
    %33 = vector.broadcast %cst_23 : f32 to vector<32x29xf32>
    %34 = arith.maximumf %32, %33 : vector<32x29xf32>
    %35 = arith.truncf %34 : vector<32x29xf32> to vector<32x29xbf16>
    %c0_24 = arith.constant 0 : index
    %c0_25 = arith.constant 0 : index
    %c0_26 = arith.constant 0 : index
    %36 = vector.load %arg5[%c0_24, %c0_25, %c0_26] : memref<1x32x29xbf16, #tpu.memory_space<vmem>>, vector<1x32x29xbf16>
    %37 = vector.shape_cast %36 : vector<1x32x29xbf16> to vector<32x29xbf16>
    %38 = vector.shape_cast %35 : vector<32x29xbf16> to vector<1x32x29xbf16>
    tpu.vector_store %arg5[%c0_24, %c0_25, %c0_26], %38 {strides = array<i32>} : memref<1x32x29xbf16, #tpu.memory_space<vmem>>, vector<1x32x29xbf16>,
    return
  }
  func.func @transform_0(%arg0: i32) -> (i32, i32, i32) {
    %c0_i32 = arith.constant 0 : i32
    %c0_i32_0 = arith.constant 0 : i32
    %c0_i32_1 = arith.constant 0 : i32
    return %arg0, %c0_i32, %c0_i32_0 : i32, i32, i32
  }
  func.func @transform_1(%arg0: i32) -> (i32, i32, i32) {
    %c0_i32 = arith.constant 0 : i32
    %c0_i32_0 = arith.constant 0 : i32
    %c0_i32_1 = arith.constant 0 : i32
    return %arg0, %c0_i32, %c0_i32_0 : i32, i32, i32
  }
  func.func @transform_2(%arg0: i32) -> (i32, i32, i32) {
    %c0_i32 = arith.constant 0 : i32
    %c0_i32_0 = arith.constant 0 : i32
    %c0_i32_1 = arith.constant 0 : i32
    %c0_i32_2 = arith.constant 0 : i32
    return %c0_i32, %c0_i32_0, %c0_i32_1 : i32, i32, i32
  }
  func.func @transform_3(%arg0: i32) -> (i32, i32) {
    %c0_i32 = arith.constant 0 : i32
    %c0_i32_0 = arith.constant 0 : i32
    %c0_i32_1 = arith.constant 0 : i32
    return %c0_i32, %c0_i32_0 : i32, i32
  }
  func.func @transform_4(%arg0: i32) -> (i32, i32, i32) {
    %c0_i32 = arith.constant 0 : i32
    %c0_i32_0 = arith.constant 0 : i32
    %c0_i32_1 = arith.constant 0 : i32
    return %arg0, %c0_i32, %c0_i32_0 : i32, i32, i32
  }
}

module attributes {stable_mosaic.version = 11 : i64} {
  func.func @_conv_bn_relu_kernel(%arg0: i32, %arg1: memref<1x32x15xbf16, #tpu.memory_space<vmem>>, %arg2: memref<1x32x14xbf16, #tpu.memory_space<vmem>>, %arg3: memref<5x64x32xbf16, #tpu.memory_space<vmem>>, %arg4: memref<64x1xf32, #tpu.memory_space<vmem>>, %arg5: memref<1x64x13xbf16, #tpu.memory_space<vmem>>) attributes {dimension_semantics = [#tpu.dimension_semantics<parallel>], iteration_bounds = array<i64: 2>, scalar_prefetch = 0 : i64, scratch_operands = 0 : i64, tpu.core_type = #tpu.core_type<tc>, window_params = [{transform_indices = @transform_0, window_bounds = array<i64: 1, 32, 15>}, {transform_indices = @transform_1, window_bounds = array<i64: 1, 32, 14>}, {pipeline_mode = #tpu.pipeline_mode<synchronous>, transform_indices = @transform_2, window_bounds = array<i64: 5, 64, 32>}, {pipeline_mode = #tpu.pipeline_mode<synchronous>, transform_indices = @transform_3, window_bounds = array<i64: 64, 1>}, {transform_indices = @transform_4, window_bounds = array<i64: 1, 64, 13>}]} {
    %c0 = arith.constant 0 : index
    %c0_0 = arith.constant 0 : index
    %c0_1 = arith.constant 0 : index
    %0 = vector.load %arg1[%c0, %c0_0, %c0_1] : memref<1x32x15xbf16, #tpu.memory_space<vmem>>, vector<1x32x15xbf16>
    %1 = vector.shape_cast %0 : vector<1x32x15xbf16> to vector<32x15xbf16>
    %c0_2 = arith.constant 0 : index
    %c0_3 = arith.constant 0 : index
    %c0_4 = arith.constant 0 : index
    %2 = vector.load %arg2[%c0_2, %c0_3, %c0_4] : memref<1x32x14xbf16, #tpu.memory_space<vmem>>, vector<1x32x14xbf16>
    %3 = vector.shape_cast %2 : vector<1x32x14xbf16> to vector<32x14xbf16>
    %cst = arith.constant 0.000000e+00 : f32
    %4 = vector.broadcast %cst : f32 to vector<64x13xf32>
    %5 = vector.extract_strided_slice %1 {offsets = [0, 0], sizes = [32, 13], strides = [1, 1]} : vector<32x15xbf16> to vector<32x13xbf16>
    %c0_5 = arith.constant 0 : index
    %c0_6 = arith.constant 0 : index
    %c0_7 = arith.constant 0 : index
    %6 = vector.load %arg3[%c0_5, %c0_6, %c0_7] : memref<5x64x32xbf16, #tpu.memory_space<vmem>>, vector<1x64x32xbf16>
    %7 = vector.shape_cast %6 : vector<1x64x32xbf16> to vector<64x32xbf16>
    %cst_8 = arith.constant dense<0.000000e+00> : vector<64x13xf32>
    %8 = tpu.matmul %7, %5, %cst_8 {dimension_numbers = #tpu.dot_dimension_numbers<[1], [0], [0], [1], [0, 0, 1, 1], [], []>} : vector<64x32xbf16>, vector<32x13xbf16>, vector<64x13xf32> -> vector<64x13xf32>
    %9 = arith.addf %4, %8 : vector<64x13xf32>
    %10 = vector.extract_strided_slice %3 {offsets = [0, 0], sizes = [32, 13], strides = [1, 1]} : vector<32x14xbf16> to vector<32x13xbf16>
    %c1 = arith.constant 1 : index
    %c0_9 = arith.constant 0 : index
    %c0_10 = arith.constant 0 : index
    %11 = vector.load %arg3[%c1, %c0_9, %c0_10] : memref<5x64x32xbf16, #tpu.memory_space<vmem>>, vector<1x64x32xbf16>
    %12 = vector.shape_cast %11 : vector<1x64x32xbf16> to vector<64x32xbf16>
    %cst_11 = arith.constant dense<0.000000e+00> : vector<64x13xf32>
    %13 = tpu.matmul %12, %10, %cst_11 {dimension_numbers = #tpu.dot_dimension_numbers<[1], [0], [0], [1], [0, 0, 1, 1], [], []>} : vector<64x32xbf16>, vector<32x13xbf16>, vector<64x13xf32> -> vector<64x13xf32>
    %14 = arith.addf %9, %13 : vector<64x13xf32>
    %15 = vector.extract_strided_slice %1 {offsets = [0, 1], sizes = [32, 13], strides = [1, 1]} : vector<32x15xbf16> to vector<32x13xbf16>
    %c2 = arith.constant 2 : index
    %c0_12 = arith.constant 0 : index
    %c0_13 = arith.constant 0 : index
    %16 = vector.load %arg3[%c2, %c0_12, %c0_13] : memref<5x64x32xbf16, #tpu.memory_space<vmem>>, vector<1x64x32xbf16>
    %17 = vector.shape_cast %16 : vector<1x64x32xbf16> to vector<64x32xbf16>
    %cst_14 = arith.constant dense<0.000000e+00> : vector<64x13xf32>
    %18 = tpu.matmul %17, %15, %cst_14 {dimension_numbers = #tpu.dot_dimension_numbers<[1], [0], [0], [1], [0, 0, 1, 1], [], []>} : vector<64x32xbf16>, vector<32x13xbf16>, vector<64x13xf32> -> vector<64x13xf32>
    %19 = arith.addf %14, %18 : vector<64x13xf32>
    %20 = vector.extract_strided_slice %3 {offsets = [0, 1], sizes = [32, 13], strides = [1, 1]} : vector<32x14xbf16> to vector<32x13xbf16>
    %c3 = arith.constant 3 : index
    %c0_15 = arith.constant 0 : index
    %c0_16 = arith.constant 0 : index
    %21 = vector.load %arg3[%c3, %c0_15, %c0_16] : memref<5x64x32xbf16, #tpu.memory_space<vmem>>, vector<1x64x32xbf16>
    %22 = vector.shape_cast %21 : vector<1x64x32xbf16> to vector<64x32xbf16>
    %cst_17 = arith.constant dense<0.000000e+00> : vector<64x13xf32>
    %23 = tpu.matmul %22, %20, %cst_17 {dimension_numbers = #tpu.dot_dimension_numbers<[1], [0], [0], [1], [0, 0, 1, 1], [], []>} : vector<64x32xbf16>, vector<32x13xbf16>, vector<64x13xf32> -> vector<64x13xf32>
    %24 = arith.addf %19, %23 : vector<64x13xf32>
    %25 = vector.extract_strided_slice %1 {offsets = [0, 2], sizes = [32, 13], strides = [1, 1]} : vector<32x15xbf16> to vector<32x13xbf16>
    %c4 = arith.constant 4 : index
    %c0_18 = arith.constant 0 : index
    %c0_19 = arith.constant 0 : index
    %26 = vector.load %arg3[%c4, %c0_18, %c0_19] : memref<5x64x32xbf16, #tpu.memory_space<vmem>>, vector<1x64x32xbf16>
    %27 = vector.shape_cast %26 : vector<1x64x32xbf16> to vector<64x32xbf16>
    %cst_20 = arith.constant dense<0.000000e+00> : vector<64x13xf32>
    %28 = tpu.matmul %27, %25, %cst_20 {dimension_numbers = #tpu.dot_dimension_numbers<[1], [0], [0], [1], [0, 0, 1, 1], [], []>} : vector<64x32xbf16>, vector<32x13xbf16>, vector<64x13xf32> -> vector<64x13xf32>
    %29 = arith.addf %24, %28 : vector<64x13xf32>
    %c0_21 = arith.constant 0 : index
    %c0_22 = arith.constant 0 : index
    %30 = vector.load %arg4[%c0_21, %c0_22] : memref<64x1xf32, #tpu.memory_space<vmem>>, vector<64x1xf32>
    %31 = vector.broadcast %30 : vector<64x1xf32> to vector<64x13xf32>
    %32 = arith.addf %29, %31 : vector<64x13xf32>
    %cst_23 = arith.constant 0.000000e+00 : f32
    %33 = vector.broadcast %cst_23 : f32 to vector<64x13xf32>
    %34 = arith.maximumf %32, %33 : vector<64x13xf32>
    %35 = arith.truncf %34 : vector<64x13xf32> to vector<64x13xbf16>
    %c0_24 = arith.constant 0 : index
    %c0_25 = arith.constant 0 : index
    %c0_26 = arith.constant 0 : index
    %36 = vector.load %arg5[%c0_24, %c0_25, %c0_26] : memref<1x64x13xbf16, #tpu.memory_space<vmem>>, vector<1x64x13xbf16>
    %37 = vector.shape_cast %36 : vector<1x64x13xbf16> to vector<64x13xbf16>
    %38 = vector.shape_cast %35 : vector<64x13xbf16> to vector<1x64x13xbf16>
    tpu.vector_store %arg5[%c0_24, %c0_25, %c0_26], %38 {strides = array<i32>} : memref<1x64x13xbf16, #tpu.memory_space<vmem>>, vector<1x64x13xbf16>,
    return
  }
  func.func @transform_0(%arg0: i32) -> (i32, i32, i32) {
    %c0_i32 = arith.constant 0 : i32
    %c0_i32_0 = arith.constant 0 : i32
    %c0_i32_1 = arith.constant 0 : i32
    return %arg0, %c0_i32, %c0_i32_0 : i32, i32, i32
  }
  func.func @transform_1(%arg0: i32) -> (i32, i32, i32) {
    %c0_i32 = arith.constant 0 : i32
    %c0_i32_0 = arith.constant 0 : i32
    %c0_i32_1 = arith.constant 0 : i32
    return %arg0, %c0_i32, %c0_i32_0 : i32, i32, i32
  }
  func.func @transform_2(%arg0: i32) -> (i32, i32, i32) {
    %c0_i32 = arith.constant 0 : i32
    %c0_i32_0 = arith.constant 0 : i32
    %c0_i32_1 = arith.constant 0 : i32
    %c0_i32_2 = arith.constant 0 : i32
    return %c0_i32, %c0_i32_0, %c0_i32_1 : i32, i32, i32
  }
  func.func @transform_3(%arg0: i32) -> (i32, i32) {
    %c0_i32 = arith.constant 0 : i32
    %c0_i32_0 = arith.constant 0 : i32
    %c0_i32_1 = arith.constant 0 : i32
    return %c0_i32, %c0_i32_0 : i32, i32
  }
  func.func @transform_4(%arg0: i32) -> (i32, i32, i32) {
    %c0_i32 = arith.constant 0 : i32
    %c0_i32_0 = arith.constant 0 : i32
    %c0_i32_1 = arith.constant 0 : i32
    return %arg0, %c0_i32, %c0_i32_0 : i32, i32, i32
  }
}

module attributes {stable_mosaic.version = 11 : i64} {
  func.func @_linear_kernel(%arg0: i32, %arg1: i32, %arg2: i32, %arg3: memref<2x512xbf16, #tpu.memory_space<vmem>>, %arg4: memref<512x128xbf16, #tpu.memory_space<vmem>>, %arg5: memref<1x128xf32, #tpu.memory_space<vmem>>, %arg6: memref<2x128xbf16, #tpu.memory_space<vmem>>, %arg7: memref<2x128xf32, #tpu.memory_space<vmem>>) attributes {dimension_semantics = [#tpu.dimension_semantics<parallel>, #tpu.dimension_semantics<parallel>, #tpu.dimension_semantics<arbitrary>], iteration_bounds = array<i64: 1, 1, 2>, scalar_prefetch = 0 : i64, scratch_operands = 1 : i64, tpu.core_type = #tpu.core_type<tc>, window_params = [{transform_indices = @transform_0, window_bounds = array<i64: 2, 512>}, {transform_indices = @transform_1, window_bounds = array<i64: 512, 128>}, {transform_indices = @transform_2, window_bounds = array<i64: 1, 128>}, {transform_indices = @transform_3, window_bounds = array<i64: 2, 128>}]} {
    %c0_i32 = arith.constant 0 : i32
    %0 = arith.cmpi eq, %arg2, %c0_i32 : i32
    %1 = arith.extui %0 : i1 to i32
    %c0_i32_0 = arith.constant 0 : i32
    %2 = arith.cmpi ne, %1, %c0_i32_0 : i32
    scf.if %2 {
      %cst_9 = arith.constant 0.000000e+00 : f32
      %12 = vector.broadcast %cst_9 : f32 to vector<2x128xf32>
      %c0_10 = arith.constant 0 : index
      %c0_11 = arith.constant 0 : index
      %13 = vector.load %arg7[%c0_10, %c0_11] : memref<2x128xf32, #tpu.memory_space<vmem>>, vector<2x128xf32>
      tpu.vector_store %arg7[%c0_10, %c0_11], %12 {strides = array<i32>} : memref<2x128xf32, #tpu.memory_space<vmem>>, vector<2x128xf32>,
    } else {
    }
    %c0 = arith.constant 0 : index
    %c0_1 = arith.constant 0 : index
    %3 = vector.load %arg7[%c0, %c0_1] : memref<2x128xf32, #tpu.memory_space<vmem>>, vector<2x128xf32>
    %c0_2 = arith.constant 0 : index
    %c0_3 = arith.constant 0 : index
    %4 = vector.load %arg3[%c0_2, %c0_3] : memref<2x512xbf16, #tpu.memory_space<vmem>>, vector<2x512xbf16>
    %c0_4 = arith.constant 0 : index
    %c0_5 = arith.constant 0 : index
    %5 = vector.load %arg4[%c0_4, %c0_5] : memref<512x128xbf16, #tpu.memory_space<vmem>>, vector<512x128xbf16>
    %cst = arith.constant dense<0.000000e+00> : vector<2x128xf32>
    %6 = tpu.matmul %4, %5, %cst {dimension_numbers = #tpu.dot_dimension_numbers<[1], [0], [0], [1], [0, 0, 1, 1], [], []>} : vector<2x512xbf16>, vector<512x128xbf16>, vector<2x128xf32> -> vector<2x128xf32>
    %7 = arith.addf %3, %6 : vector<2x128xf32>
    %c0_6 = arith.constant 0 : index
    %c0_7 = arith.constant 0 : index
    %8 = vector.load %arg7[%c0_6, %c0_7] : memref<2x128xf32, #tpu.memory_space<vmem>>, vector<2x128xf32>
    tpu.vector_store %arg7[%c0_6, %c0_7], %7 {strides = array<i32>} : memref<2x128xf32, #tpu.memory_space<vmem>>, vector<2x128xf32>,
    %c1_i32 = arith.constant 1 : i32
    %9 = arith.cmpi eq, %arg2, %c1_i32 : i32
    %10 = arith.extui %9 : i1 to i32
    %c0_i32_8 = arith.constant 0 : i32
    %11 = arith.cmpi ne, %10, %c0_i32_8 : i32
    scf.if %11 {
      %c0_9 = arith.constant 0 : index
      %c0_10 = arith.constant 0 : index
      %12 = vector.load %arg7[%c0_9, %c0_10] : memref<2x128xf32, #tpu.memory_space<vmem>>, vector<2x128xf32>
      %c0_11 = arith.constant 0 : index
      %c0_12 = arith.constant 0 : index
      %13 = vector.load %arg5[%c0_11, %c0_12] : memref<1x128xf32, #tpu.memory_space<vmem>>, vector<1x128xf32>
      %14 = vector.broadcast %13 : vector<1x128xf32> to vector<2x128xf32>
      %15 = arith.addf %12, %14 : vector<2x128xf32>
      %cst_13 = arith.constant 0.000000e+00 : f32
      %16 = vector.broadcast %cst_13 : f32 to vector<2x128xf32>
      %17 = arith.maximumf %15, %16 : vector<2x128xf32>
      %18 = arith.truncf %17 : vector<2x128xf32> to vector<2x128xbf16>
      %c0_14 = arith.constant 0 : index
      %c0_15 = arith.constant 0 : index
      %19 = vector.load %arg6[%c0_14, %c0_15] : memref<2x128xbf16, #tpu.memory_space<vmem>>, vector<2x128xbf16>
      tpu.vector_store %arg6[%c0_14, %c0_15], %18 {strides = array<i32>} : memref<2x128xbf16, #tpu.memory_space<vmem>>, vector<2x128xbf16>,
    } else {
    }
    return
  }
  func.func @transform_0(%arg0: i32, %arg1: i32, %arg2: i32) -> (i32, i32) {
    %c0_i32 = arith.constant 0 : i32
    return %arg0, %arg2 : i32, i32
  }
  func.func @transform_1(%arg0: i32, %arg1: i32, %arg2: i32) -> (i32, i32) {
    %c0_i32 = arith.constant 0 : i32
    return %arg2, %arg1 : i32, i32
  }
  func.func @transform_2(%arg0: i32, %arg1: i32, %arg2: i32) -> (i32, i32) {
    %c0_i32 = arith.constant 0 : i32
    %c0_i32_0 = arith.constant 0 : i32
    return %c0_i32, %arg1 : i32, i32
  }
  func.func @transform_3(%arg0: i32, %arg1: i32, %arg2: i32) -> (i32, i32) {
    %c0_i32 = arith.constant 0 : i32
    return %arg0, %arg1 : i32, i32
  }
}

module attributes {stable_mosaic.version = 11 : i64} {
  func.func @_linear_kernel(%arg0: i32, %arg1: i32, %arg2: i32, %arg3: memref<2x128xbf16, #tpu.memory_space<vmem>>, %arg4: memref<128x3xbf16, #tpu.memory_space<vmem>>, %arg5: memref<1x3xf32, #tpu.memory_space<vmem>>, %arg6: memref<2x3xf32, #tpu.memory_space<vmem>>, %arg7: memref<2x3xf32, #tpu.memory_space<vmem>>) attributes {dimension_semantics = [#tpu.dimension_semantics<parallel>, #tpu.dimension_semantics<parallel>, #tpu.dimension_semantics<arbitrary>], iteration_bounds = array<i64: 1, 1, 1>, scalar_prefetch = 0 : i64, scratch_operands = 1 : i64, tpu.core_type = #tpu.core_type<tc>, window_params = [{transform_indices = @transform_0, window_bounds = array<i64: 2, 128>}, {transform_indices = @transform_1, window_bounds = array<i64: 128, 3>}, {transform_indices = @transform_2, window_bounds = array<i64: 1, 3>}, {transform_indices = @transform_3, window_bounds = array<i64: 2, 3>}]} {
    %c0_i32 = arith.constant 0 : i32
    %0 = arith.cmpi eq, %arg2, %c0_i32 : i32
    %1 = arith.extui %0 : i1 to i32
    %c0_i32_0 = arith.constant 0 : i32
    %2 = arith.cmpi ne, %1, %c0_i32_0 : i32
    scf.if %2 {
      %cst_10 = arith.constant 0.000000e+00 : f32
      %12 = vector.broadcast %cst_10 : f32 to vector<2x3xf32>
      %c0_11 = arith.constant 0 : index
      %c0_12 = arith.constant 0 : index
      %13 = vector.load %arg7[%c0_11, %c0_12] : memref<2x3xf32, #tpu.memory_space<vmem>>, vector<2x3xf32>
      tpu.vector_store %arg7[%c0_11, %c0_12], %12 {strides = array<i32>} : memref<2x3xf32, #tpu.memory_space<vmem>>, vector<2x3xf32>,
    } else {
    }
    %c0 = arith.constant 0 : index
    %c0_1 = arith.constant 0 : index
    %3 = vector.load %arg7[%c0, %c0_1] : memref<2x3xf32, #tpu.memory_space<vmem>>, vector<2x3xf32>
    %c0_2 = arith.constant 0 : index
    %c0_3 = arith.constant 0 : index
    %4 = vector.load %arg3[%c0_2, %c0_3] : memref<2x128xbf16, #tpu.memory_space<vmem>>, vector<2x128xbf16>
    %c0_4 = arith.constant 0 : index
    %c0_5 = arith.constant 0 : index
    %5 = vector.load %arg4[%c0_4, %c0_5] : memref<128x3xbf16, #tpu.memory_space<vmem>>, vector<128x3xbf16>
    %cst = arith.constant dense<0.000000e+00> : vector<2x3xf32>
    %6 = tpu.matmul %4, %5, %cst {dimension_numbers = #tpu.dot_dimension_numbers<[1], [0], [0], [1], [0, 0, 1, 1], [], []>} : vector<2x128xbf16>, vector<128x3xbf16>, vector<2x3xf32> -> vector<2x3xf32>
    %7 = arith.addf %3, %6 : vector<2x3xf32>
    %c0_6 = arith.constant 0 : index
    %c0_7 = arith.constant 0 : index
    %8 = vector.load %arg7[%c0_6, %c0_7] : memref<2x3xf32, #tpu.memory_space<vmem>>, vector<2x3xf32>
    tpu.vector_store %arg7[%c0_6, %c0_7], %7 {strides = array<i32>} : memref<2x3xf32, #tpu.memory_space<vmem>>, vector<2x3xf32>,
    %c0_i32_8 = arith.constant 0 : i32
    %9 = arith.cmpi eq, %arg2, %c0_i32_8 : i32
    %10 = arith.extui %9 : i1 to i32
    %c0_i32_9 = arith.constant 0 : i32
    %11 = arith.cmpi ne, %10, %c0_i32_9 : i32
    scf.if %11 {
      %c0_10 = arith.constant 0 : index
      %c0_11 = arith.constant 0 : index
      %12 = vector.load %arg7[%c0_10, %c0_11] : memref<2x3xf32, #tpu.memory_space<vmem>>, vector<2x3xf32>
      %c0_12 = arith.constant 0 : index
      %c0_13 = arith.constant 0 : index
      %13 = vector.load %arg5[%c0_12, %c0_13] : memref<1x3xf32, #tpu.memory_space<vmem>>, vector<1x3xf32>
      %14 = vector.broadcast %13 : vector<1x3xf32> to vector<2x3xf32>
      %15 = arith.addf %12, %14 : vector<2x3xf32>
      %c0_14 = arith.constant 0 : index
      %c0_15 = arith.constant 0 : index
      %16 = vector.load %arg6[%c0_14, %c0_15] : memref<2x3xf32, #tpu.memory_space<vmem>>, vector<2x3xf32>
      tpu.vector_store %arg6[%c0_14, %c0_15], %15 {strides = array<i32>} : memref<2x3xf32, #tpu.memory_space<vmem>>, vector<2x3xf32>,
    } else {
    }
    return
  }
  func.func @transform_0(%arg0: i32, %arg1: i32, %arg2: i32) -> (i32, i32) {
    %c0_i32 = arith.constant 0 : i32
    return %arg0, %arg2 : i32, i32
  }
  func.func @transform_1(%arg0: i32, %arg1: i32, %arg2: i32) -> (i32, i32) {
    %c0_i32 = arith.constant 0 : i32
    return %arg2, %arg1 : i32, i32
  }
  func.func @transform_2(%arg0: i32, %arg1: i32, %arg2: i32) -> (i32, i32) {
    %c0_i32 = arith.constant 0 : i32
    %c0_i32_0 = arith.constant 0 : i32
    return %c0_i32, %arg1 : i32, i32
  }
  func.func @transform_3(%arg0: i32, %arg1: i32, %arg2: i32) -> (i32, i32) {
    %c0_i32 = arith.constant 0 : i32
    return %arg0, %arg1 : i32, i32
  }
}

</mosaic_0001>

<llo_original>
// kernel: cnn_classifier_forward.5
$region0: #{cnn_classifier_forward.5}
  #allocation0 [shape = 'u32[]', space=smem, size = 0x4, offset = 0x4, fixed_abs, tag = 'smem constant byte address 0x4 - core index']
  #allocation1 [shape = 'u32[144,128]{1,0:T(1,128)}', space=vmem, size = 0x12000, scoped, tag = 'internal scratch']
  %s0 = inlined_call_operand.vmem [shape: bf16[2,1,64], index: 0, kind: input, shape index: {}]
  %s1 = inlined_call_operand.vmem [shape: bf16[2,1,63], index: 1, kind: input, shape index: {}]
  %s2 = inlined_call_operand.vmem [shape: bf16[5,16,1], index: 2, kind: input, shape index: {}]
  %s3 = inlined_call_operand.vmem [shape: f32[16,1], index: 3, kind: input, shape index: {}]
  %s4 = inlined_call_operand.vmem [shape: bf16[2,16,62], index: 4, kind: output, shape index: {}]
  %s5 = sld [smem:[#allocation0]]
  $region49: #{cnn_classifier_forward.5} parent=0
    _
  %s7 = ssub.s32 1, %s5
  %s8 = scalar_select 0, %s7, %s5
  loop: start=0, step=1, limit=4
  $region2: #{cnn_classifier_forward.5} parent=0 // loop_pre_header
    _
  $region3: #{cnn_classifier_forward.5} parent=0 // loop_header
    %s10 = sphi 0, %s14
    %p11 = scmp.ge.s32.totalorder %s10, 4
    %s20 = sphi 0, %s22
    %s23 = sphi 0, %s20
    %s24 = sphi 0, %s23
    %s40 = sphi 0, %s24
    %s46 = sphi 0, %s48
    %s49 = sphi 0, %s46
    %s50 = sphi 0, %s49
    %s66 = sphi 0, %s50
    %s70 = sphi 0, %s70
    %s72 = sphi 0, %s70
    %s73 = sphi 0, %s72
    %s87 = sphi 0, %s73
    %s91 = sphi 0, %s91
    %s93 = sphi 0, %s91
    %s94 = sphi 0, %s93
    %s108 = sphi 0, %s94
    %s114 = sphi 0, %s116
    %s117 = sphi 0, %s114
    %s118 = sphi 0, %s117
    %s134 = sphi 0, %s118
  $region4: #{cnn_classifier_forward.5} parent=0 // loop_header_branch
    %13 = sbr.rel (%p11) target = $region8
  $region5: #{cnn_classifier_forward.5} parent=0 // loop_body
    %s15 = ssub.s32 %s10, 1
    %s16 = ssub.s32 %s10, 2
    %s17 = sadd.s32 %s10, 1
    %s18 = ssub.s32 %s10, %s17
    %p19 = scmp.eq.s32.totalorder %s18, 0
    %s21 = sadd.s32 %s20, 1
    %s22 = scalar_select %p19, %s20, %s21
    %p25 = pneg %p19
    %p26 = scmp.eq.s32.totalorder %s10, 1
    %p27 = por %p25, %p26
    %p28 = scmp.ne.s32.totalorder %s20, %s23
    %p29 = scmp.eq.s32.totalorder %s10, 0
    %p30 = por %p28, %p29
    %p31 = scmp.ne.s32.totalorder %s20, %s23
    %p32 = scmp.eq.s32.totalorder %s15, 1
    %p33 = por %p31, %p32
    %p34 = scmp.ne.s32.totalorder %s23, %s24
    %p35 = scmp.eq.s32.totalorder %s15, 0
    %p36 = por %p34, %p35
    %p37 = scmp.ne.s32.totalorder %s23, %s24
    %p38 = scmp.eq.s32.totalorder %s16, 1
    %p39 = por %p37, %p38
    %p41 = scmp.ne.s32.totalorder %s24, %s40
    %p42 = scmp.eq.s32.totalorder %s16, 0
    %p43 = por %p41, %p42
    %s44 = ssub.s32 %s10, %s17
    %p45 = scmp.eq.s32.totalorder %s44, 0
    %s47 = sadd.s32 %s46, 1
    %s48 = scalar_select %p45, %s46, %s47
    %p51 = pneg %p45
    %p52 = scmp.eq.s32.totalorder %s10, 1
    %p53 = por %p51, %p52
    %p54 = scmp.ne.s32.totalorder %s46, %s49
    %p55 = scmp.eq.s32.totalorder %s10, 0
    %p56 = por %p54, %p55
    %p57 = scmp.ne.s32.totalorder %s46, %s49
    %p58 = scmp.eq.s32.totalorder %s15, 1
    %p59 = por %p57, %p58
    %p60 = scmp.ne.s32.totalorder %s49, %s50
    %p61 = scmp.eq.s32.totalorder %s15, 0
    %p62 = por %p60, %p61
    %p63 = scmp.ne.s32.totalorder %s49, %s50
    %p64 = scmp.eq.s32.totalorder %s16, 1
    %p65 = por %p63, %p64
    %p67 = scmp.ne.s32.totalorder %s50, %s66
    %p68 = scmp.eq.s32.totalorder %s16, 0
    %p69 = por %p67, %p68
    %s71 = sadd.s32 %s70, 1
    %p74 = scmp.eq.s32.totalorder %s10, 1
    %p75 = scmp.ne.s32.totalorder %s70, %s72
    %p76 = scmp.eq.s32.totalorder %s10, 0
    %p77 = por %p75, %p76
    %p78 = scmp.ne.s32.totalorder %s70, %s72
    %p79 = scmp.eq.s32.totalorder %s15, 1
    %p80 = por %p78, %p79
    %p81 = scmp.ne.s32.totalorder %s72, %s73
    %p82 = scmp.eq.s32.totalorder %s15, 0
    %p83 = por %p81, %p82
    %p84 = scmp.ne.s32.totalorder %s72, %s73
    %p85 = scmp.eq.s32.totalorder %s16, 1
    %p86 = por %p84, %p85
    %p88 = scmp.ne.s32.totalorder %s73, %s87
    %p89 = scmp.eq.s32.totalorder %s16, 0
    %p90 = por %p88, %p89
    %s92 = sadd.s32 %s91, 1
    %p95 = scmp.eq.s32.totalorder %s10, 1
    %p96 = scmp.ne.s32.totalorder %s91, %s93
    %p97 = scmp.eq.s32.totalorder %s10, 0
    %p98 = por %p96, %p97
    %p99 = scmp.ne.s32.totalorder %s91, %s93
    %p100 = scmp.eq.s32.totalorder %s15, 1
    %p101 = por %p99, %p100
    %p102 = scmp.ne.s32.totalorder %s93, %s94
    %p103 = scmp.eq.s32.totalorder %s15, 0
    %p104 = por %p102, %p103
    %p105 = scmp.ne.s32.totalorder %s93, %s94
    %p106 = scmp.eq.s32.totalorder %s16, 1
    %p107 = por %p105, %p106
    %p109 = scmp.ne.s32.totalorder %s94, %s108
    %p110 = scmp.eq.s32.totalorder %s16, 0
    %p111 = por %p109, %p110
    %s112 = ssub.s32 %s10, %s17
    %p113 = scmp.eq.s32.totalorder %s112, 0
    %s115 = sadd.s32 %s114, 1
    %s116 = scalar_select %p113, %s114, %s115
    %p119 = pneg %p113
    %p120 = scmp.eq.s32.totalorder %s10, 1
    %p121 = por %p119, %p120
    %p122 = scmp.ne.s32.totalorder %s114, %s117
    %p123 = scmp.eq.s32.totalorder %s10, 0
    %p124 = por %p122, %p123
    %p125 = scmp.ne.s32.totalorder %s114, %s117
    %p126 = scmp.eq.s32.totalorder %s15, 1
    %p127 = por %p125, %p126
    %p128 = scmp.ne.s32.totalorder %s117, %s118
    %p129 = scmp.eq.s32.totalorder %s15, 0
    %p130 = por %p128, %p129
    %p131 = scmp.ne.s32.totalorder %s117, %s118
    %p132 = scmp.eq.s32.totalorder %s16, 1
    %p133 = por %p131, %p132
    %p135 = scmp.ne.s32.totalorder %s118, %s134
    %p136 = scmp.eq.s32.totalorder %s16, 0
    %p137 = por %p135, %p136
    %p138 = scmp.le.s32.totalorder 1, %s10
    %p139 = scmp.lt.s32.totalorder %s10, 3
    %p140 = pnand %p138, %p139
    %p141 = pneg %p140
    // Predicated region
    $region9: #{cnn_classifier_forward.5} parent=5 // pred_check
      _
    $region10: #{cnn_classifier_forward.5} parent=5 // pred_check_branch
      %143 = sbr.rel (%p140) target = $region12
    $region11: #{cnn_classifier_forward.5} parent=5 // pred_region
      %s144 = ssub.s32 %s10, 1
      // Predicated region
      $region13: #{cnn_classifier_forward.5} parent=11 // pred_check
        %p145 = pneg %p83
      $region14: #{cnn_classifier_forward.5} parent=11 // pred_check_branch
        %147 = sbr.rel (%p145) target = $region16
      $region15: #{cnn_classifier_forward.5} parent=11 // pred_region
        _
      $region16: #{cnn_classifier_forward.5} parent=11 // pred_fallthru
        _
      // Predicated region
      $region17: #{cnn_classifier_forward.5} parent=11 // pred_check
        %p148 = pneg %p104
      $region18: #{cnn_classifier_forward.5} parent=11 // pred_check_branch
        %150 = sbr.rel (%p148) target = $region20
      $region19: #{cnn_classifier_forward.5} parent=11 // pred_region
        _
      $region20: #{cnn_classifier_forward.5} parent=11 // pred_fallthru
        _
    $region12: #{cnn_classifier_forward.5} parent=5 // pred_fallthru
      _
    %p151 = scmp.lt.s32.totalorder %s10, 2
    // Predicated region
    $region21: #{cnn_classifier_forward.5} parent=5 // pred_check
      %p152 = pneg %p151
    $region22: #{cnn_classifier_forward.5} parent=5 // pred_check_branch
      %154 = sbr.rel (%p152) target = $region24
    $region23: #{cnn_classifier_forward.5} parent=5 // pred_region
      // Predicated region
      $region25: #{cnn_classifier_forward.5} parent=23 // pred_check
        %p155 = pneg %p30
      $region26: #{cnn_classifier_forward.5} parent=23 // pred_check_branch
        %157 = sbr.rel (%p155) target = $region28
      $region27: #{cnn_classifier_forward.5} parent=23 // pred_region
        %p158 = scmp.lt.s32.totalorder %s10, 1
        %s159 = scalar_select %p158, %s10, 1
        %s160 = scalar_lea.vmem %s0, %s159
      $region28: #{cnn_classifier_forward.5} parent=23 // pred_fallthru
        _
      // Predicated region
      $region29: #{cnn_classifier_forward.5} parent=23 // pred_check
        %p161 = pneg %p56
      $region30: #{cnn_classifier_forward.5} parent=23 // pred_check_branch
        %163 = sbr.rel (%p161) target = $region32
      $region31: #{cnn_classifier_forward.5} parent=23 // pred_region
        %p164 = scmp.lt.s32.totalorder %s10, 1
        %s165 = scalar_select %p164, %s10, 1
        %s166 = scalar_lea.vmem %s1, %s165
      $region32: #{cnn_classifier_forward.5} parent=23 // pred_fallthru
        _
    $region24: #{cnn_classifier_forward.5} parent=5 // pred_fallthru
      _
    %p167 = scmp.le.s32.totalorder 1, %s10
    %p168 = scmp.lt.s32.totalorder %s10, 3
    %p169 = pnand %p167, %p168
    %p170 = pneg %p169
    // Predicated region
    $region33: #{cnn_classifier_forward.5} parent=5 // pred_check
      _
    $region34: #{cnn_classifier_forward.5} parent=5 // pred_check_branch
      %172 = sbr.rel (%p169) target = $region36
    $region35: #{cnn_classifier_forward.5} parent=5 // pred_region
      %s173 = ssub.s32 %s10, 1
      %p174 = scmp.lt.s32.totalorder %s15, 1
      %s175 = scalar_select %p174, %s15, 1
      %s176 = scalar_lea.vmem %s0, %s175
      %p177 = pneg %p36
      %p178 = pneg %p33
      %p179 = scmp.lt.s32.totalorder %s15, 1
      %s180 = scalar_select %p179, %s15, 1
      %s181 = scalar_lea.vmem %s1, %s180
      %p182 = pneg %p62
      %p183 = pneg %p59
      %p184 = pneg %p83
      %p185 = pneg %p80
      %p186 = pneg %p104
      %p187 = pneg %p101
      %p188 = pneg %p130
      %p189 = pneg %p127
      %p190 = scmp.lt.s32.totalorder %s15, 1
      %s191 = scalar_select %p190, %s15, 1
      %s192 = smul.addr %s191, 2
      %s193 = smul.addr %s192, 4
      %s194 = scalar_lea.vmem %s4, %s193
      %p195 = scmp.lt.s32.totalorder %s15, 1
      %s196 = scalar_select %p195, %s15, 1
      %s197 = scalar_lea.vmem %s0, %s196
      %p198 = scmp.lt.s32.totalorder %s15, 1
      %s199 = scalar_select %p198, %s15, 1
      %s200 = scalar_lea.vmem %s1, %s199
      %p201 = scmp.lt.s32.totalorder %s15, 1
      %s202 = scalar_select %p201, %s15, 1
      %s203 = smul.addr %s202, 2
      %s204 = smul.addr %s203, 4
      %s205 = scalar_lea.vmem %s4, %s204
      %v206 = vld [vmem:[%s197] sm:$0x1]
      %v207 = vld [vmem:[%s200] sm:$0x1]
      %v208 = vld [vmem:[%s2] sm:$0xf]
      %v209 = vld [vmem:[%s2 + $0x4] sm:$0xf]
      %v210 = vunpack.c.l.bf16 %v208
      %v211 = vunpack.c.l.bf16 %v209
      %v212 = vunpack.c.l.bf16 %v206
      %214 = vset.pattern.permute.xlu0 0
      %215 = vperm.xlu0 %214, %v210
      %v216 = vpop.permute.xlu0 %215
      %219 = vset.pattern.permute.xlu0 0
      %220 = vperm.xlu0 %219, %v211
      %v221 = vpop.permute.xlu0 %220
      %v223 = vlaneseq
      %v224 = vshrl.u32 %v223, 7
      %v225 = vsub.s32 0, %v224
      %v226 = vrot.slane %v212, %v225
      %v227 = vmul.f32 %v216, %v226
      %v228 = vmul.f32 %v221, %v226
      %v229 = vadd.f32 %v227, 0.0
      %v230 = vadd.f32 %v228, 0.0
      %s231 = scalar_lea.vmem %s2, 8
      %v232 = vld [vmem:[%s231] sm:$0xf]
      %v233 = vld [vmem:[%s231 + $0x4] sm:$0xf]
      %v234 = vunpack.c.l.bf16 %v232
      %v235 = vunpack.c.l.bf16 %v233
      %v236 = vunpack.c.l.bf16 %v207
      %238 = vset.pattern.permute.xlu0 0
      %239 = vperm.xlu0 %238, %v234
      %v240 = vpop.permute.xlu0 %239
      %243 = vset.pattern.permute.xlu0 0
      %244 = vperm.xlu0 %243, %v235
      %v245 = vpop.permute.xlu0 %244
      %v247 = vlaneseq
      %v248 = vshrl.u32 %v247, 7
      %v249 = vsub.s32 0, %v248
      %v250 = vrot.slane %v236, %v249
      %v251 = vmul.f32 %v240, %v250
      %v252 = vmul.f32 %v245, %v250
      %v253 = vadd.f32 %v229, %v251
      %v254 = vadd.f32 %v230, %v252
      %s255 = scalar_lea.vmem %s2, 16
      %v256 = vld [vmem:[%s255] sm:$0xf]
      %v257 = vld [vmem:[%s255 + $0x4] sm:$0xf]
      %v258 = vunpack.c.l.bf16 %v256
      %v259 = vunpack.c.l.bf16 %v257
      %261 = vset.pattern.permute.xlu0 0
      %262 = vperm.xlu0 %261, %v258
      %v263 = vpop.permute.xlu0 %262
      %266 = vset.pattern.permute.xlu0 0
      %267 = vperm.xlu0 %266, %v259
      %v268 = vpop.permute.xlu0 %267
      %v270 = vmul.f32 %v263, %v226
      %v271 = vmul.f32 %v268, %v226
      %274 = vrot.lane.b32.xlu0 %v270, 127
      %v275 = vpop.permute.xlu0 %274
      %276 = vrot.lane.b32.xlu0 %v271, 127
      %v277 = vpop.permute.xlu0 %276
      %v280 = vadd.f32 %v253, %v275
      %v281 = vadd.f32 %v254, %v277
      %s282 = scalar_lea.vmem %s2, 24
      %v283 = vld [vmem:[%s282] sm:$0xf]
      %v284 = vld [vmem:[%s282 + $0x4] sm:$0xf]
      %v285 = vunpack.c.l.bf16 %v283
      %v286 = vunpack.c.l.bf16 %v284
      %288 = vset.pattern.permute.xlu0 0
      %289 = vperm.xlu0 %288, %v285
      %v290 = vpop.permute.xlu0 %289
      %293 = vset.pattern.permute.xlu0 0
      %294 = vperm.xlu0 %293, %v286
      %v295 = vpop.permute.xlu0 %294
      %v297 = vmul.f32 %v290, %v250
      %v298 = vmul.f32 %v295, %v250
      %301 = vrot.lane.b32.xlu0 %v297, 127
      %v302 = vpop.permute.xlu0 %301
      %303 = vrot.lane.b32.xlu0 %v298, 127
      %v304 = vpop.permute.xlu0 %303
      %v307 = vadd.f32 %v280, %v302
      %v308 = vadd.f32 %v281, %v304
      %s309 = scalar_lea.vmem %s2, 32
      %v310 = vld [vmem:[%s309] sm:$0xf]
      %v311 = vld [vmem:[%s309 + $0x4] sm:$0xf]
      %v312 = vunpack.c.l.bf16 %v310
      %v313 = vunpack.c.l.bf16 %v311
      %315 = vset.pattern.permute.xlu0 0
      %316 = vperm.xlu0 %315, %v312
      %v317 = vpop.permute.xlu0 %316
      %320 = vset.pattern.permute.xlu0 0
      %321 = vperm.xlu0 %320, %v313
      %v322 = vpop.permute.xlu0 %321
      %v324 = vmul.f32 %v317, %v226
      %v325 = vmul.f32 %v322, %v226
      %328 = vrot.lane.b32.xlu0 %v324, 126
      %v329 = vpop.permute.xlu0 %328
      %330 = vrot.lane.b32.xlu0 %v325, 126
      %v331 = vpop.permute.xlu0 %330
      %v334 = vadd.f32 %v307, %v329
      %v335 = vadd.f32 %v308, %v331
      %v336 = vld [vmem:[%s3] sm:$0xff]
      %v337 = vld [vmem:[%s3 + $0x8] sm:$0xff]
      %339 = vset.pattern.permute.xlu0 0
      %340 = vperm.xlu0 %339, %v336
      %v341 = vpop.permute.xlu0 %340
      %344 = vset.pattern.permute.xlu0 0
      %345 = vperm.xlu0 %344, %v337
      %v346 = vpop.permute.xlu0 %345
      %v348 = vadd.f32 %v334, %v341
      %v349 = vadd.f32 %v335, %v346
      %v350 = vmax.f32 %v348, 0.0
      %v351 = vmax.f32 %v349, 0.0
      %v352 = vpack.c.bf16 %v351, %v350
      %v354 = vunpack.c.l.b16 %v352
      %v355 = vunpack.c.h.b16 %v352
      %v356 = vpack.c.b16 %v354, %v354
      %v357 = vpack.c.b16 %v355, %v355
      %vm360 = vcmask 502784
      %361 = vst.msk [vmem:[%s205] sm:$0xf] %vm360, %v356
      %362 = vst.msk [vmem:[%s205 + $0x4] sm:$0xf] %vm360, %v357
      %p363 = scmp.lt.s32.totalorder %s15, 1
      %s364 = scalar_select %p363, %s15, 1
      %s365 = smul.addr %s364, 2
      %s366 = smul.addr %s365, 4
      %s367 = scalar_lea.vmem %s4, %s366
      // Predicated region
      $region37: #{cnn_classifier_forward.5} parent=35 // pred_check
        %p368 = pneg %p127
      $region38: #{cnn_classifier_forward.5} parent=35 // pred_check_branch
        %370 = sbr.rel (%p368) target = $region40
      $region39: #{cnn_classifier_forward.5} parent=35 // pred_region
        _
      $region40: #{cnn_classifier_forward.5} parent=35 // pred_fallthru
        _
    $region36: #{cnn_classifier_forward.5} parent=5 // pred_fallthru
      _
    %p371 = scmp.le.s32.totalorder 2, %s10
    // Predicated region
    $region41: #{cnn_classifier_forward.5} parent=5 // pred_check
      %p372 = pneg %p371
    $region42: #{cnn_classifier_forward.5} parent=5 // pred_check_branch
      %374 = sbr.rel (%p372) target = $region44
    $region43: #{cnn_classifier_forward.5} parent=5 // pred_region
      %s375 = ssub.s32 %s10, 2
      // Predicated region
      $region45: #{cnn_classifier_forward.5} parent=43 // pred_check
        %p376 = pneg %p133
      $region46: #{cnn_classifier_forward.5} parent=43 // pred_check_branch
        %378 = sbr.rel (%p376) target = $region48
      $region47: #{cnn_classifier_forward.5} parent=43 // pred_region
        %p379 = scmp.lt.s32.totalorder %s16, 1
        %s380 = scalar_select %p379, %s16, 1
        %s381 = smul.addr %s380, 2
        %s382 = smul.addr %s381, 4
        %s383 = scalar_lea.vmem %s4, %s382
      $region48: #{cnn_classifier_forward.5} parent=43 // pred_fallthru
        _
    $region44: #{cnn_classifier_forward.5} parent=5 // pred_fallthru
      _
  $region6: #{cnn_classifier_forward.5} parent=0 // loop_footer
    %s14 = sadd.s32 1, %s10
  $region7: #{cnn_classifier_forward.5} parent=0 // loop_footer_branch
    %9 = sbr.rel target = $region3
  $region8: #{cnn_classifier_forward.5} parent=0 // loop_exit
    _

// kernel: cnn_classifier_forward.6
$region0: #{cnn_classifier_forward.6}
  #allocation0 [shape = 'u32[]', space=smem, size = 0x4, offset = 0x4, fixed_abs, tag = 'smem constant byte address 0x4 - core index']
  #allocation1 [shape = 'u32[144,128]{1,0:T(1,128)}', space=vmem, size = 0x12000, scoped, tag = 'internal scratch']
  %s0 = inlined_call_operand.vmem [shape: bf16[2,16,31], index: 0, kind: input, shape index: {}]
  %s1 = inlined_call_operand.vmem [shape: bf16[2,16,30], index: 1, kind: input, shape index: {}]
  %s2 = inlined_call_operand.vmem [shape: bf16[5,32,16], index: 2, kind: input, shape index: {}]
  %s3 = inlined_call_operand.vmem [shape: f32[32,1], index: 3, kind: input, shape index: {}]
  %s4 = inlined_call_operand.vmem [shape: bf16[2,32,29], index: 4, kind: output, shape index: {}]
  %s5 = sld [smem:[#allocation0]]
  $region49: #{cnn_classifier_forward.6} parent=0
    _
  %s7 = ssub.s32 1, %s5
  %s8 = scalar_select 0, %s7, %s5
  loop: start=0, step=1, limit=4
  $region2: #{cnn_classifier_forward.6} parent=0 // loop_pre_header
    _
  $region3: #{cnn_classifier_forward.6} parent=0 // loop_header
    %s10 = sphi 0, %s14
    %p11 = scmp.ge.s32.totalorder %s10, 4
    %s20 = sphi 0, %s22
    %s23 = sphi 0, %s20
    %s24 = sphi 0, %s23
    %s40 = sphi 0, %s24
    %s46 = sphi 0, %s48
    %s49 = sphi 0, %s46
    %s50 = sphi 0, %s49
    %s66 = sphi 0, %s50
    %s70 = sphi 0, %s70
    %s72 = sphi 0, %s70
    %s73 = sphi 0, %s72
    %s87 = sphi 0, %s73
    %s91 = sphi 0, %s91
    %s93 = sphi 0, %s91
    %s94 = sphi 0, %s93
    %s108 = sphi 0, %s94
    %s114 = sphi 0, %s116
    %s117 = sphi 0, %s114
    %s118 = sphi 0, %s117
    %s134 = sphi 0, %s118
  $region4: #{cnn_classifier_forward.6} parent=0 // loop_header_branch
    %13 = sbr.rel (%p11) target = $region8
  $region5: #{cnn_classifier_forward.6} parent=0 // loop_body
    %s15 = ssub.s32 %s10, 1
    %s16 = ssub.s32 %s10, 2
    %s17 = sadd.s32 %s10, 1
    %s18 = ssub.s32 %s10, %s17
    %p19 = scmp.eq.s32.totalorder %s18, 0
    %s21 = sadd.s32 %s20, 1
    %s22 = scalar_select %p19, %s20, %s21
    %p25 = pneg %p19
    %p26 = scmp.eq.s32.totalorder %s10, 1
    %p27 = por %p25, %p26
    %p28 = scmp.ne.s32.totalorder %s20, %s23
    %p29 = scmp.eq.s32.totalorder %s10, 0
    %p30 = por %p28, %p29
    %p31 = scmp.ne.s32.totalorder %s20, %s23
    %p32 = scmp.eq.s32.totalorder %s15, 1
    %p33 = por %p31, %p32
    %p34 = scmp.ne.s32.totalorder %s23, %s24
    %p35 = scmp.eq.s32.totalorder %s15, 0
    %p36 = por %p34, %p35
    %p37 = scmp.ne.s32.totalorder %s23, %s24
    %p38 = scmp.eq.s32.totalorder %s16, 1
    %p39 = por %p37, %p38
    %p41 = scmp.ne.s32.totalorder %s24, %s40
    %p42 = scmp.eq.s32.totalorder %s16, 0
    %p43 = por %p41, %p42
    %s44 = ssub.s32 %s10, %s17
    %p45 = scmp.eq.s32.totalorder %s44, 0
    %s47 = sadd.s32 %s46, 1
    %s48 = scalar_select %p45, %s46, %s47
    %p51 = pneg %p45
    %p52 = scmp.eq.s32.totalorder %s10, 1
    %p53 = por %p51, %p52
    %p54 = scmp.ne.s32.totalorder %s46, %s49
    %p55 = scmp.eq.s32.totalorder %s10, 0
    %p56 = por %p54, %p55
    %p57 = scmp.ne.s32.totalorder %s46, %s49
    %p58 = scmp.eq.s32.totalorder %s15, 1
    %p59 = por %p57, %p58
    %p60 = scmp.ne.s32.totalorder %s49, %s50
    %p61 = scmp.eq.s32.totalorder %s15, 0
    %p62 = por %p60, %p61
    %p63 = scmp.ne.s32.totalorder %s49, %s50
    %p64 = scmp.eq.s32.totalorder %s16, 1
    %p65 = por %p63, %p64
    %p67 = scmp.ne.s32.totalorder %s50, %s66
    %p68 = scmp.eq.s32.totalorder %s16, 0
    %p69 = por %p67, %p68
    %s71 = sadd.s32 %s70, 1
    %p74 = scmp.eq.s32.totalorder %s10, 1
    %p75 = scmp.ne.s32.totalorder %s70, %s72
    %p76 = scmp.eq.s32.totalorder %s10, 0
    %p77 = por %p75, %p76
    %p78 = scmp.ne.s32.totalorder %s70, %s72
    %p79 = scmp.eq.s32.totalorder %s15, 1
    %p80 = por %p78, %p79
    %p81 = scmp.ne.s32.totalorder %s72, %s73
    %p82 = scmp.eq.s32.totalorder %s15, 0
    %p83 = por %p81, %p82
    %p84 = scmp.ne.s32.totalorder %s72, %s73
    %p85 = scmp.eq.s32.totalorder %s16, 1
    %p86 = por %p84, %p85
    %p88 = scmp.ne.s32.totalorder %s73, %s87
    %p89 = scmp.eq.s32.totalorder %s16, 0
    %p90 = por %p88, %p89
    %s92 = sadd.s32 %s91, 1
    %p95 = scmp.eq.s32.totalorder %s10, 1
    %p96 = scmp.ne.s32.totalorder %s91, %s93
    %p97 = scmp.eq.s32.totalorder %s10, 0
    %p98 = por %p96, %p97
    %p99 = scmp.ne.s32.totalorder %s91, %s93
    %p100 = scmp.eq.s32.totalorder %s15, 1
    %p101 = por %p99, %p100
    %p102 = scmp.ne.s32.totalorder %s93, %s94
    %p103 = scmp.eq.s32.totalorder %s15, 0
    %p104 = por %p102, %p103
    %p105 = scmp.ne.s32.totalorder %s93, %s94
    %p106 = scmp.eq.s32.totalorder %s16, 1
    %p107 = por %p105, %p106
    %p109 = scmp.ne.s32.totalorder %s94, %s108
    %p110 = scmp.eq.s32.totalorder %s16, 0
    %p111 = por %p109, %p110
    %s112 = ssub.s32 %s10, %s17
    %p113 = scmp.eq.s32.totalorder %s112, 0
    %s115 = sadd.s32 %s114, 1
    %s116 = scalar_select %p113, %s114, %s115
    %p119 = pneg %p113
    %p120 = scmp.eq.s32.totalorder %s10, 1
    %p121 = por %p119, %p120
    %p122 = scmp.ne.s32.totalorder %s114, %s117
    %p123 = scmp.eq.s32.totalorder %s10, 0
    %p124 = por %p122, %p123
    %p125 = scmp.ne.s32.totalorder %s114, %s117
    %p126 = scmp.eq.s32.totalorder %s15, 1
    %p127 = por %p125, %p126
    %p128 = scmp.ne.s32.totalorder %s117, %s118
    %p129 = scmp.eq.s32.totalorder %s15, 0
    %p130 = por %p128, %p129
    %p131 = scmp.ne.s32.totalorder %s117, %s118
    %p132 = scmp.eq.s32.totalorder %s16, 1
    %p133 = por %p131, %p132
    %p135 = scmp.ne.s32.totalorder %s118, %s134
    %p136 = scmp.eq.s32.totalorder %s16, 0
    %p137 = por %p135, %p136
    %p138 = scmp.le.s32.totalorder 1, %s10
    %p139 = scmp.lt.s32.totalorder %s10, 3
    %p140 = pnand %p138, %p139
    %p141 = pneg %p140
    // Predicated region
    $region9: #{cnn_classifier_forward.6} parent=5 // pred_check
      _
    $region10: #{cnn_classifier_forward.6} parent=5 // pred_check_branch
      %143 = sbr.rel (%p140) target = $region12
    $region11: #{cnn_classifier_forward.6} parent=5 // pred_region
      %s144 = ssub.s32 %s10, 1
      // Predicated region
      $region13: #{cnn_classifier_forward.6} parent=11 // pred_check
        %p145 = pneg %p83
      $region14: #{cnn_classifier_forward.6} parent=11 // pred_check_branch
        %147 = sbr.rel (%p145) target = $region16
      $region15: #{cnn_classifier_forward.6} parent=11 // pred_region
        _
      $region16: #{cnn_classifier_forward.6} parent=11 // pred_fallthru
        _
      // Predicated region
      $region17: #{cnn_classifier_forward.6} parent=11 // pred_check
        %p148 = pneg %p104
      $region18: #{cnn_classifier_forward.6} parent=11 // pred_check_branch
        %150 = sbr.rel (%p148) target = $region20
      $region19: #{cnn_classifier_forward.6} parent=11 // pred_region
        _
      $region20: #{cnn_classifier_forward.6} parent=11 // pred_fallthru
        _
    $region12: #{cnn_classifier_forward.6} parent=5 // pred_fallthru
      _
    %p151 = scmp.lt.s32.totalorder %s10, 2
    // Predicated region
    $region21: #{cnn_classifier_forward.6} parent=5 // pred_check
      %p152 = pneg %p151
    $region22: #{cnn_classifier_forward.6} parent=5 // pred_check_branch
      %154 = sbr.rel (%p152) target = $region24
    $region23: #{cnn_classifier_forward.6} parent=5 // pred_region
      // Predicated region
      $region25: #{cnn_classifier_forward.6} parent=23 // pred_check
        %p155 = pneg %p30
      $region26: #{cnn_classifier_forward.6} parent=23 // pred_check_branch
        %157 = sbr.rel (%p155) target = $region28
      $region27: #{cnn_classifier_forward.6} parent=23 // pred_region
        %p158 = scmp.lt.s32.totalorder %s10, 1
        %s159 = scalar_select %p158, %s10, 1
        %s160 = smul.addr %s159, 2
        %s161 = smul.addr %s160, 4
        %s162 = scalar_lea.vmem %s0, %s161
      $region28: #{cnn_classifier_forward.6} parent=23 // pred_fallthru
        _
      // Predicated region
      $region29: #{cnn_classifier_forward.6} parent=23 // pred_check
        %p163 = pneg %p56
      $region30: #{cnn_classifier_forward.6} parent=23 // pred_check_branch
        %165 = sbr.rel (%p163) target = $region32
      $region31: #{cnn_classifier_forward.6} parent=23 // pred_region
        %p166 = scmp.lt.s32.totalorder %s10, 1
        %s167 = scalar_select %p166, %s10, 1
        %s168 = smul.addr %s167, 2
        %s169 = smul.addr %s168, 4
        %s170 = scalar_lea.vmem %s1, %s169
      $region32: #{cnn_classifier_forward.6} parent=23 // pred_fallthru
        _
    $region24: #{cnn_classifier_forward.6} parent=5 // pred_fallthru
      _
    %p171 = scmp.le.s32.totalorder 1, %s10
    %p172 = scmp.lt.s32.totalorder %s10, 3
    %p173 = pnand %p171, %p172
    %p174 = pneg %p173
    // Predicated region
    $region33: #{cnn_classifier_forward.6} parent=5 // pred_check
      _
    $region34: #{cnn_classifier_forward.6} parent=5 // pred_check_branch
      %176 = sbr.rel (%p173) target = $region36
    $region35: #{cnn_classifier_forward.6} parent=5 // pred_region
      %s177 = ssub.s32 %s10, 1
      %p178 = scmp.lt.s32.totalorder %s15, 1
      %s179 = scalar_select %p178, %s15, 1
      %s180 = smul.addr %s179, 2
      %s181 = smul.addr %s180, 4
      %s182 = scalar_lea.vmem %s0, %s181
      %p183 = pneg %p36
      %p184 = pneg %p33
      %p185 = scmp.lt.s32.totalorder %s15, 1
      %s186 = scalar_select %p185, %s15, 1
      %s187 = smul.addr %s186, 2
      %s188 = smul.addr %s187, 4
      %s189 = scalar_lea.vmem %s1, %s188
      %p190 = pneg %p62
      %p191 = pneg %p59
      %p192 = pneg %p83
      %p193 = pneg %p80
      %p194 = pneg %p104
      %p195 = pneg %p101
      %p196 = pneg %p130
      %p197 = pneg %p127
      %p198 = scmp.lt.s32.totalorder %s15, 1
      %s199 = scalar_select %p198, %s15, 1
      %s200 = smul.addr %s199, 4
      %s201 = smul.addr %s200, 4
      %s202 = scalar_lea.vmem %s4, %s201
      %p203 = scmp.lt.s32.totalorder %s15, 1
      %s204 = scalar_select %p203, %s15, 1
      %s205 = smul.addr %s204, 2
      %s206 = smul.addr %s205, 4
      %s207 = scalar_lea.vmem %s0, %s206
      %p208 = scmp.lt.s32.totalorder %s15, 1
      %s209 = scalar_select %p208, %s15, 1
      %s210 = smul.addr %s209, 2
      %s211 = smul.addr %s210, 4
      %s212 = scalar_lea.vmem %s1, %s211
      %p213 = scmp.lt.s32.totalorder %s15, 1
      %s214 = scalar_select %p213, %s15, 1
      %s215 = smul.addr %s214, 4
      %s216 = smul.addr %s215, 4
      %s217 = scalar_lea.vmem %s4, %s216
      %v219 = vld [vmem:[%s207] sm:$0xf]
      %v220 = vld [vmem:[%s207 + $0x4] sm:$0xf]
      %v221 = vld [vmem:[%s212] sm:$0xf]
      %v222 = vld [vmem:[%s212 + $0x4] sm:$0xf]
      %v223 = vld [vmem:[%s2] sm:$0xf]
      %v224 = vld [vmem:[%s2 + $0x4] sm:$0xf]
      %v225 = vld [vmem:[%s2 + $0x8] sm:$0xf]
      %v226 = vld [vmem:[%s2 + $0xc] sm:$0xf]
      %s227 = scalar_lea.vmem %s2, 16
      %v228 = vld [vmem:[%s227] sm:$0xf]
      %v229 = vld [vmem:[%s227 + $0x4] sm:$0xf]
      %v230 = vld [vmem:[%s227 + $0x8] sm:$0xf]
      %v231 = vld [vmem:[%s227 + $0xc] sm:$0xf]
      %v236 = vunpack.c.l.b16 %v228
      %v237 = vunpack.c.l.b16 %v229
      %v238 = vunpack.c.l.b16 %v230
      %v239 = vunpack.c.l.b16 %v231
      %v240 = vpack.c.b16 %v237, %v236
      %v241 = vpack.c.b16 %v239, %v238
      %v244 = vunpack.c.l.b16 %v221
      %v245 = vunpack.c.l.b16 %v222
      %v246 = vpack.c.b16 %v245, %v244
      %vm248 = vcmask 130048
      %v250 = vsel %vm248, %v240, 0
      %v253 = vsel %vm248, %v241, 0
      %255 = vmatprep.subr.bf16.mxu0 0
      %256 = vmatpush1.bf16.msra.mxu0 %v246
      %257 = vmatprep.subr.bf16.mxu0 0
      %258 = vmatpush1.bf16.msra.mxu0 0
      %259 = vmatprep.subr.bf16.mxu0 0
      %260 = vmatpush1.bf16.msra.mxu0 0
      %261 = vmatprep.subr.bf16.mxu0 0
      %262 = vmatpush1.bf16.msra.mxu0 0
      %263 = vmatprep.subr.bf16.mxu0 0
      %264 = vmatpush1.bf16.msra.mxu0 0
      %265 = vmatprep.subr.bf16.mxu0 0
      %266 = vmatpush1.bf16.msra.mxu0 0
      %267 = vmatprep.subr.bf16.mxu0 0
      %268 = vmatpush1.bf16.msra.mxu0 0
      %269 = vmatprep.subr.bf16.mxu0 0
      %270 = vmatpush1.bf16.msra.mxu0 0
      %271 = vmatprep.subr.bf16.mxu0 0
      %272 = vmatpush1.bf16.msra.mxu0 0
      %273 = vmatprep.subr.bf16.mxu0 0
      %274 = vmatpush1.bf16.msra.mxu0 0
      %275 = vmatprep.subr.bf16.mxu0 0
      %276 = vmatpush1.bf16.msra.mxu0 0
      %277 = vmatprep.subr.bf16.mxu0 0
      %278 = vmatpush1.bf16.msra.mxu0 0
      %279 = vmatprep.subr.bf16.mxu0 0
      %280 = vmatpush1.bf16.msra.mxu0 0
      %281 = vmatprep.subr.bf16.mxu0 0
      %282 = vmatpush1.bf16.msra.mxu0 0
      %283 = vmatprep.subr.bf16.mxu0 0
      %284 = vmatpush1.bf16.msra.mxu0 0
      %285 = vmatprep.subr.bf16.mxu0 0
      %286 = vmatpush1.bf16.msra.mxu0 0
      %287 = vmatprep.mubr.bf16.mxu0 0
      %288 = vmatmul.mubr.bf16.gmra.mrb[0].mxu0 %v250
      %v289 = vpop.f32.mrb[0].mxu0
      %v290 = vadd.f32 0.0, %v289
      %v291 = vpop.f32.mrb[0].mxu0
      %v292 = vpop.f32.mrb[0].mxu0
      %v293 = vadd.f32 0.0, %v292
      %v294 = vpop.f32.mrb[0].mxu0
      %295 = vmatprep.mubr.bf16.mxu0 0
      %296 = vmatmul.mubr.bf16.gmra.mrb[0].mxu0 %v253
      %v297 = vpop.f32.mrb[0].mxu0
      %v298 = vadd.f32 0.0, %v297
      %v299 = vpop.f32.mrb[0].mxu0
      %v300 = vpop.f32.mrb[0].mxu0
      %v301 = vadd.f32 0.0, %v300
      %v302 = vpop.f32.mrb[0].mxu0
      %303 = vdwg.mxu0
      %v308 = vunpack.c.l.b16 %v223
      %v309 = vunpack.c.l.b16 %v224
      %v310 = vunpack.c.l.b16 %v225
      %v311 = vunpack.c.l.b16 %v226
      %v312 = vpack.c.b16 %v309, %v308
      %v313 = vpack.c.b16 %v311, %v310
      %v316 = vunpack.c.l.b16 %v219
      %v317 = vunpack.c.l.b16 %v220
      %v318 = vpack.c.b16 %v317, %v316
      %v321 = vsel %vm248, %v312, 0
      %v324 = vsel %vm248, %v313, 0
      %326 = vmatprep.subr.bf16.mxu0 0
      %327 = vmatpush1.bf16.msra.mxu0 %v318
      %328 = vmatprep.subr.bf16.mxu0 0
      %329 = vmatpush1.bf16.msra.mxu0 0
      %330 = vmatprep.subr.bf16.mxu0 0
      %331 = vmatpush1.bf16.msra.mxu0 0
      %332 = vmatprep.subr.bf16.mxu0 0
      %333 = vmatpush1.bf16.msra.mxu0 0
      %334 = vmatprep.subr.bf16.mxu0 0
      %335 = vmatpush1.bf16.msra.mxu0 0
      %336 = vmatprep.subr.bf16.mxu0 0
      %337 = vmatpush1.bf16.msra.mxu0 0
      %338 = vmatprep.subr.bf16.mxu0 0
      %339 = vmatpush1.bf16.msra.mxu0 0
      %340 = vmatprep.subr.bf16.mxu0 0
      %341 = vmatpush1.bf16.msra.mxu0 0
      %342 = vmatprep.subr.bf16.mxu0 0
      %343 = vmatpush1.bf16.msra.mxu0 0
      %344 = vmatprep.subr.bf16.mxu0 0
      %345 = vmatpush1.bf16.msra.mxu0 0
      %346 = vmatprep.subr.bf16.mxu0 0
      %347 = vmatpush1.bf16.msra.mxu0 0
      %348 = vmatprep.subr.bf16.mxu0 0
      %349 = vmatpush1.bf16.msra.mxu0 0
      %350 = vmatprep.subr.bf16.mxu0 0
      %351 = vmatpush1.bf16.msra.mxu0 0
      %352 = vmatprep.subr.bf16.mxu0 0
      %353 = vmatpush1.bf16.msra.mxu0 0
      %354 = vmatprep.subr.bf16.mxu0 0
      %355 = vmatpush1.bf16.msra.mxu0 0
      %356 = vmatprep.subr.bf16.mxu0 0
      %357 = vmatpush1.bf16.msra.mxu0 0
      %358 = vmatprep.mubr.bf16.mxu0 0
      %359 = vmatmul.mubr.bf16.gmra.mrb[0].mxu0 %v321
      %v360 = vpop.f32.mrb[0].mxu0
      %v361 = vadd.f32 %v290, %v360
      %v362 = vpop.f32.mrb[0].mxu0
      %v363 = vpop.f32.mrb[0].mxu0
      %v364 = vadd.f32 %v293, %v363
      %v365 = vpop.f32.mrb[0].mxu0
      %366 = vmatprep.mubr.bf16.mxu0 0
      %367 = vmatmul.mubr.bf16.gmra.mrb[0].mxu0 %v324
      %v368 = vpop.f32.mrb[0].mxu0
      %v369 = vadd.f32 %v298, %v368
      %v370 = vpop.f32.mrb[0].mxu0
      %v371 = vpop.f32.mrb[0].mxu0
      %v372 = vadd.f32 %v301, %v371
      %v373 = vpop.f32.mrb[0].mxu0
      %374 = vdwg.mxu0
      %s375 = scalar_lea.vmem %s2, 32
      %v376 = vld [vmem:[%s375] sm:$0xf]
      %v377 = vld [vmem:[%s375 + $0x4] sm:$0xf]
      %v378 = vld [vmem:[%s375 + $0x8] sm:$0xf]
      %v379 = vld [vmem:[%s375 + $0xc] sm:$0xf]
      %v384 = vunpack.c.l.b16 %v376
      %v385 = vunpack.c.l.b16 %v377
      %v386 = vunpack.c.l.b16 %v378
      %v387 = vunpack.c.l.b16 %v379
      %v388 = vpack.c.b16 %v385, %v384
      %v389 = vpack.c.b16 %v387, %v386
      %390 = vrot.lane.b32.xlu0 %v318, 127
      %v391 = vpop.permute.xlu0 %390
      %v394 = vsel %vm248, %v388, 0
      %v397 = vsel %vm248, %v389, 0
      %399 = vmatprep.subr.bf16.mxu0 0
      %400 = vmatpush1.bf16.msra.mxu0 %v391
      %401 = vmatprep.subr.bf16.mxu0 0
      %402 = vmatpush1.bf16.msra.mxu0 0
      %403 = vmatprep.subr.bf16.mxu0 0
      %404 = vmatpush1.bf16.msra.mxu0 0
      %405 = vmatprep.subr.bf16.mxu0 0
      %406 = vmatpush1.bf16.msra.mxu0 0
      %407 = vmatprep.subr.bf16.mxu0 0
      %408 = vmatpush1.bf16.msra.mxu0 0
      %409 = vmatprep.subr.bf16.mxu0 0
      %410 = vmatpush1.bf16.msra.mxu0 0
      %411 = vmatprep.subr.bf16.mxu0 0
      %412 = vmatpush1.bf16.msra.mxu0 0
      %413 = vmatprep.subr.bf16.mxu0 0
      %414 = vmatpush1.bf16.msra.mxu0 0
      %415 = vmatprep.subr.bf16.mxu0 0
      %416 = vmatpush1.bf16.msra.mxu0 0
      %417 = vmatprep.subr.bf16.mxu0 0
      %418 = vmatpush1.bf16.msra.mxu0 0
      %419 = vmatprep.subr.bf16.mxu0 0
      %420 = vmatpush1.bf16.msra.mxu0 0
      %421 = vmatprep.subr.bf16.mxu0 0
      %422 = vmatpush1.bf16.msra.mxu0 0
      %423 = vmatprep.subr.bf16.mxu0 0
      %424 = vmatpush1.bf16.msra.mxu0 0
      %425 = vmatprep.subr.bf16.mxu0 0
      %426 = vmatpush1.bf16.msra.mxu0 0
      %427 = vmatprep.subr.bf16.mxu0 0
      %428 = vmatpush1.bf16.msra.mxu0 0
      %429 = vmatprep.subr.bf16.mxu0 0
      %430 = vmatpush1.bf16.msra.mxu0 0
      %431 = vmatprep.mubr.bf16.mxu0 0
      %432 = vmatmul.mubr.bf16.gmra.mrb[0].mxu0 %v394
      %v433 = vpop.f32.mrb[0].mxu0
      %v434 = vadd.f32 0.0, %v433
      %v435 = vpop.f32.mrb[0].mxu0
      %v436 = vpop.f32.mrb[0].mxu0
      %v437 = vadd.f32 0.0, %v436
      %v438 = vpop.f32.mrb[0].mxu0
      %439 = vmatprep.mubr.bf16.mxu0 0
      %440 = vmatmul.mubr.bf16.gmra.mrb[0].mxu0 %v397
      %v441 = vpop.f32.mrb[0].mxu0
      %v442 = vadd.f32 0.0, %v441
      %v443 = vpop.f32.mrb[0].mxu0
      %v444 = vpop.f32.mrb[0].mxu0
      %v445 = vadd.f32 0.0, %v444
      %v446 = vpop.f32.mrb[0].mxu0
      %447 = vdwg.mxu0
      %v448 = vadd.f32 %v361, %v434
      %v449 = vadd.f32 %v364, %v437
      %v450 = vadd.f32 %v369, %v442
      %v451 = vadd.f32 %v372, %v445
      %s452 = scalar_lea.vmem %s2, 48
      %v453 = vld [vmem:[%s452] sm:$0xf]
      %v454 = vld [vmem:[%s452 + $0x4] sm:$0xf]
      %v455 = vld [vmem:[%s452 + $0x8] sm:$0xf]
      %v456 = vld [vmem:[%s452 + $0xc] sm:$0xf]
      %v461 = vunpack.c.l.b16 %v453
      %v462 = vunpack.c.l.b16 %v454
      %v463 = vunpack.c.l.b16 %v455
      %v464 = vunpack.c.l.b16 %v456
      %v465 = vpack.c.b16 %v462, %v461
      %v466 = vpack.c.b16 %v464, %v463
      %467 = vrot.lane.b32.xlu0 %v246, 127
      %v468 = vpop.permute.xlu0 %467
      %v471 = vsel %vm248, %v465, 0
      %v474 = vsel %vm248, %v466, 0
      %476 = vmatprep.subr.bf16.mxu0 0
      %477 = vmatpush1.bf16.msra.mxu0 %v468
      %478 = vmatprep.subr.bf16.mxu0 0
      %479 = vmatpush1.bf16.msra.mxu0 0
      %480 = vmatprep.subr.bf16.mxu0 0
      %481 = vmatpush1.bf16.msra.mxu0 0
      %482 = vmatprep.subr.bf16.mxu0 0
      %483 = vmatpush1.bf16.msra.mxu0 0
      %484 = vmatprep.subr.bf16.mxu0 0
      %485 = vmatpush1.bf16.msra.mxu0 0
      %486 = vmatprep.subr.bf16.mxu0 0
      %487 = vmatpush1.bf16.msra.mxu0 0
      %488 = vmatprep.subr.bf16.mxu0 0
      %489 = vmatpush1.bf16.msra.mxu0 0
      %490 = vmatprep.subr.bf16.mxu0 0
      %491 = vmatpush1.bf16.msra.mxu0 0
      %492 = vmatprep.subr.bf16.mxu0 0
      %493 = vmatpush1.bf16.msra.mxu0 0
      %494 = vmatprep.subr.bf16.mxu0 0
      %495 = vmatpush1.bf16.msra.mxu0 0
      %496 = vmatprep.subr.bf16.mxu0 0
      %497 = vmatpush1.bf16.msra.mxu0 0
      %498 = vmatprep.subr.bf16.mxu0 0
      %499 = vmatpush1.bf16.msra.mxu0 0
      %500 = vmatprep.subr.bf16.mxu0 0
      %501 = vmatpush1.bf16.msra.mxu0 0
      %502 = vmatprep.subr.bf16.mxu0 0
      %503 = vmatpush1.bf16.msra.mxu0 0
      %504 = vmatprep.subr.bf16.mxu0 0
      %505 = vmatpush1.bf16.msra.mxu0 0
      %506 = vmatprep.subr.bf16.mxu0 0
      %507 = vmatpush1.bf16.msra.mxu0 0
      %508 = vmatprep.mubr.bf16.mxu0 0
      %509 = vmatmul.mubr.bf16.gmra.mrb[0].mxu0 %v471
      %v510 = vpop.f32.mrb[0].mxu0
      %v511 = vadd.f32 0.0, %v510
      %v512 = vpop.f32.mrb[0].mxu0
      %v513 = vpop.f32.mrb[0].mxu0
      %v514 = vadd.f32 0.0, %v513
      %v515 = vpop.f32.mrb[0].mxu0
      %516 = vmatprep.mubr.bf16.mxu0 0
      %517 = vmatmul.mubr.bf16.gmra.mrb[0].mxu0 %v474
      %v518 = vpop.f32.mrb[0].mxu0
      %v519 = vadd.f32 0.0, %v518
      %v520 = vpop.f32.mrb[0].mxu0
      %v521 = vpop.f32.mrb[0].mxu0
      %v522 = vadd.f32 0.0, %v521
      %v523 = vpop.f32.mrb[0].mxu0
      %524 = vdwg.mxu0
      %v525 = vadd.f32 %v448, %v511
      %v526 = vadd.f32 %v449, %v514
      %v527 = vadd.f32 %v450, %v519
      %v528 = vadd.f32 %v451, %v522
      %s529 = scalar_lea.vmem %s2, 64
      %v530 = vld [vmem:[%s529] sm:$0xf]
      %v531 = vld [vmem:[%s529 + $0x4] sm:$0xf]
      %v532 = vld [vmem:[%s529 + $0x8] sm:$0xf]
      %v533 = vld [vmem:[%s529 + $0xc] sm:$0xf]
      %v538 = vunpack.c.l.b16 %v530
      %v539 = vunpack.c.l.b16 %v531
      %v540 = vunpack.c.l.b16 %v532
      %v541 = vunpack.c.l.b16 %v533
      %v542 = vpack.c.b16 %v539, %v538
      %v543 = vpack.c.b16 %v541, %v540
      %544 = vrot.lane.b32.xlu0 %v318, 126
      %v545 = vpop.permute.xlu0 %544
      %v548 = vsel %vm248, %v542, 0
      %v551 = vsel %vm248, %v543, 0
      %553 = vmatprep.subr.bf16.mxu0 0
      %554 = vmatpush1.bf16.msra.mxu0 %v545
      %555 = vmatprep.subr.bf16.mxu0 0
      %556 = vmatpush1.bf16.msra.mxu0 0
      %557 = vmatprep.subr.bf16.mxu0 0
      %558 = vmatpush1.bf16.msra.mxu0 0
      %559 = vmatprep.subr.bf16.mxu0 0
      %560 = vmatpush1.bf16.msra.mxu0 0
      %561 = vmatprep.subr.bf16.mxu0 0
      %562 = vmatpush1.bf16.msra.mxu0 0
      %563 = vmatprep.subr.bf16.mxu0 0
      %564 = vmatpush1.bf16.msra.mxu0 0
      %565 = vmatprep.subr.bf16.mxu0 0
      %566 = vmatpush1.bf16.msra.mxu0 0
      %567 = vmatprep.subr.bf16.mxu0 0
      %568 = vmatpush1.bf16.msra.mxu0 0
      %569 = vmatprep.subr.bf16.mxu0 0
      %570 = vmatpush1.bf16.msra.mxu0 0
      %571 = vmatprep.subr.bf16.mxu0 0
      %572 = vmatpush1.bf16.msra.mxu0 0
      %573 = vmatprep.subr.bf16.mxu0 0
      %574 = vmatpush1.bf16.msra.mxu0 0
      %575 = vmatprep.subr.bf16.mxu0 0
      %576 = vmatpush1.bf16.msra.mxu0 0
      %577 = vmatprep.subr.bf16.mxu0 0
      %578 = vmatpush1.bf16.msra.mxu0 0
      %579 = vmatprep.subr.bf16.mxu0 0
      %580 = vmatpush1.bf16.msra.mxu0 0
      %581 = vmatprep.subr.bf16.mxu0 0
      %582 = vmatpush1.bf16.msra.mxu0 0
      %583 = vmatprep.subr.bf16.mxu0 0
      %584 = vmatpush1.bf16.msra.mxu0 0
      %585 = vmatprep.mubr.bf16.mxu0 0
      %586 = vmatmul.mubr.bf16.gmra.mrb[0].mxu0 %v548
      %v587 = vpop.f32.mrb[0].mxu0
      %v588 = vadd.f32 0.0, %v587
      %v589 = vpop.f32.mrb[0].mxu0
      %v590 = vpop.f32.mrb[0].mxu0
      %v591 = vadd.f32 0.0, %v590
      %v592 = vpop.f32.mrb[0].mxu0
      %593 = vmatprep.mubr.bf16.mxu0 0
      %594 = vmatmul.mubr.bf16.gmra.mrb[0].mxu0 %v551
      %v595 = vpop.f32.mrb[0].mxu0
      %v596 = vadd.f32 0.0, %v595
      %v597 = vpop.f32.mrb[0].mxu0
      %v598 = vpop.f32.mrb[0].mxu0
      %v599 = vadd.f32 0.0, %v598
      %v600 = vpop.f32.mrb[0].mxu0
      %601 = vdwg.mxu0
      %v602 = vadd.f32 %v525, %v588
      %v603 = vadd.f32 %v526, %v591
      %v604 = vadd.f32 %v527, %v596
      %v605 = vadd.f32 %v528, %v599
      %v606 = vld [vmem:[%s3] sm:$0xff]
      %v607 = vld [vmem:[%s3 + $0x8] sm:$0xff]
      %v608 = vld [vmem:[%s3 + $0x10] sm:$0xff]
      %v609 = vld [vmem:[%s3 + $0x18] sm:$0xff]
      %611 = vset.pattern.permute.xlu0 0
      %612 = vperm.xlu0 %611, %v606
      %v613 = vpop.permute.xlu0 %612
      %616 = vset.pattern.permute.xlu0 0
      %617 = vperm.xlu0 %616, %v607
      %v618 = vpop.permute.xlu0 %617
      %621 = vset.pattern.permute.xlu0 0
      %622 = vperm.xlu0 %621, %v608
      %v623 = vpop.permute.xlu0 %622
      %626 = vset.pattern.permute.xlu0 0
      %627 = vperm.xlu0 %626, %v609
      %v628 = vpop.permute.xlu0 %627
      %v630 = vadd.f32 %v602, %v613
      %v631 = vadd.f32 %v603, %v618
      %v632 = vadd.f32 %v604, %v623
      %v633 = vadd.f32 %v605, %v628
      %v634 = vmax.f32 %v630, 0.0
      %v635 = vmax.f32 %v631, 0.0
      %v636 = vmax.f32 %v632, 0.0
      %v637 = vmax.f32 %v633, 0.0
      %v638 = vpack.c.bf16 %v635, %v634
      %v639 = vpack.c.bf16 %v637, %v636
      %v642 = vunpack.c.l.b16 %v638
      %v643 = vunpack.c.h.b16 %v638
      %v644 = vunpack.c.l.b16 %v639
      %v645 = vunpack.c.h.b16 %v639
      %v646 = vpack.c.b16 %v642, %v642
      %v647 = vpack.c.b16 %v643, %v643
      %v648 = vpack.c.b16 %v644, %v644
      %v649 = vpack.c.b16 %v645, %v645
      %vm654 = vcmask 232448
      %655 = vst.msk [vmem:[%s217] sm:$0xf] %vm654, %v646
      %656 = vst.msk [vmem:[%s217 + $0x4] sm:$0xf] %vm654, %v647
      %657 = vst.msk [vmem:[%s217 + $0x8] sm:$0xf] %vm654, %v648
      %658 = vst.msk [vmem:[%s217 + $0xc] sm:$0xf] %vm654, %v649
      %p659 = scmp.lt.s32.totalorder %s15, 1
      %s660 = scalar_select %p659, %s15, 1
      %s661 = smul.addr %s660, 4
      %s662 = smul.addr %s661, 4
      %s663 = scalar_lea.vmem %s4, %s662
      // Predicated region
      $region37: #{cnn_classifier_forward.6} parent=35 // pred_check
        %p664 = pneg %p127
      $region38: #{cnn_classifier_forward.6} parent=35 // pred_check_branch
        %666 = sbr.rel (%p664) target = $region40
      $region39: #{cnn_classifier_forward.6} parent=35 // pred_region
        _
      $region40: #{cnn_classifier_forward.6} parent=35 // pred_fallthru
        _
    $region36: #{cnn_classifier_forward.6} parent=5 // pred_fallthru
      _
    %p667 = scmp.le.s32.totalorder 2, %s10
    // Predicated region
    $region41: #{cnn_classifier_forward.6} parent=5 // pred_check
      %p668 = pneg %p667
    $region42: #{cnn_classifier_forward.6} parent=5 // pred_check_branch
      %670 = sbr.rel (%p668) target = $region44
    $region43: #{cnn_classifier_forward.6} parent=5 // pred_region
      %s671 = ssub.s32 %s10, 2
      // Predicated region
      $region45: #{cnn_classifier_forward.6} parent=43 // pred_check
        %p672 = pneg %p133
      $region46: #{cnn_classifier_forward.6} parent=43 // pred_check_branch
        %674 = sbr.rel (%p672) target = $region48
      $region47: #{cnn_classifier_forward.6} parent=43 // pred_region
        %p675 = scmp.lt.s32.totalorder %s16, 1
        %s676 = scalar_select %p675, %s16, 1
        %s677 = smul.addr %s676, 4
        %s678 = smul.addr %s677, 4
        %s679 = scalar_lea.vmem %s4, %s678
      $region48: #{cnn_classifier_forward.6} parent=43 // pred_fallthru
        _
    $region44: #{cnn_classifier_forward.6} parent=5 // pred_fallthru
      _
  $region6: #{cnn_classifier_forward.6} parent=0 // loop_footer
    %s14 = sadd.s32 1, %s10
  $region7: #{cnn_classifier_forward.6} parent=0 // loop_footer_branch
    %9 = sbr.rel target = $region3
  $region8: #{cnn_classifier_forward.6} parent=0 // loop_exit
    _

// kernel: cnn_classifier_forward.7
$region0: #{cnn_classifier_forward.7}
  #allocation0 [shape = 'u32[]', space=smem, size = 0x4, offset = 0x4, fixed_abs, tag = 'smem constant byte address 0x4 - core index']
  #allocation1 [shape = 'u32[144,128]{1,0:T(1,128)}', space=vmem, size = 0x12000, scoped, tag = 'internal scratch']
  %s0 = inlined_call_operand.vmem [shape: bf16[2,32,15], index: 0, kind: input, shape index: {}]
  %s1 = inlined_call_operand.vmem [shape: bf16[2,32,14], index: 1, kind: input, shape index: {}]
  %s2 = inlined_call_operand.vmem [shape: bf16[5,64,32], index: 2, kind: input, shape index: {}]
  %s3 = inlined_call_operand.vmem [shape: f32[64,1], index: 3, kind: input, shape index: {}]
  %s4 = inlined_call_operand.vmem [shape: bf16[2,64,13], index: 4, kind: output, shape index: {}]
  %s5 = sld [smem:[#allocation0]]
  $region49: #{cnn_classifier_forward.7} parent=0
    _
  %s7 = ssub.s32 1, %s5
  %s8 = scalar_select 0, %s7, %s5
  loop: start=0, step=1, limit=4
  $region2: #{cnn_classifier_forward.7} parent=0 // loop_pre_header
    _
  $region3: #{cnn_classifier_forward.7} parent=0 // loop_header
    %s10 = sphi 0, %s14
    %p11 = scmp.ge.s32.totalorder %s10, 4
    %s20 = sphi 0, %s22
    %s23 = sphi 0, %s20
    %s24 = sphi 0, %s23
    %s40 = sphi 0, %s24
    %s46 = sphi 0, %s48
    %s49 = sphi 0, %s46
    %s50 = sphi 0, %s49
    %s66 = sphi 0, %s50
    %s70 = sphi 0, %s70
    %s72 = sphi 0, %s70
    %s73 = sphi 0, %s72
    %s87 = sphi 0, %s73
    %s91 = sphi 0, %s91
    %s93 = sphi 0, %s91
    %s94 = sphi 0, %s93
    %s108 = sphi 0, %s94
    %s114 = sphi 0, %s116
    %s117 = sphi 0, %s114
    %s118 = sphi 0, %s117
    %s134 = sphi 0, %s118
  $region4: #{cnn_classifier_forward.7} parent=0 // loop_header_branch
    %13 = sbr.rel (%p11) target = $region8
  $region5: #{cnn_classifier_forward.7} parent=0 // loop_body
    %s15 = ssub.s32 %s10, 1
    %s16 = ssub.s32 %s10, 2
    %s17 = sadd.s32 %s10, 1
    %s18 = ssub.s32 %s10, %s17
    %p19 = scmp.eq.s32.totalorder %s18, 0
    %s21 = sadd.s32 %s20, 1
    %s22 = scalar_select %p19, %s20, %s21
    %p25 = pneg %p19
    %p26 = scmp.eq.s32.totalorder %s10, 1
    %p27 = por %p25, %p26
    %p28 = scmp.ne.s32.totalorder %s20, %s23
    %p29 = scmp.eq.s32.totalorder %s10, 0
    %p30 = por %p28, %p29
    %p31 = scmp.ne.s32.totalorder %s20, %s23
    %p32 = scmp.eq.s32.totalorder %s15, 1
    %p33 = por %p31, %p32
    %p34 = scmp.ne.s32.totalorder %s23, %s24
    %p35 = scmp.eq.s32.totalorder %s15, 0
    %p36 = por %p34, %p35
    %p37 = scmp.ne.s32.totalorder %s23, %s24
    %p38 = scmp.eq.s32.totalorder %s16, 1
    %p39 = por %p37, %p38
    %p41 = scmp.ne.s32.totalorder %s24, %s40
    %p42 = scmp.eq.s32.totalorder %s16, 0
    %p43 = por %p41, %p42
    %s44 = ssub.s32 %s10, %s17
    %p45 = scmp.eq.s32.totalorder %s44, 0
    %s47 = sadd.s32 %s46, 1
    %s48 = scalar_select %p45, %s46, %s47
    %p51 = pneg %p45
    %p52 = scmp.eq.s32.totalorder %s10, 1
    %p53 = por %p51, %p52
    %p54 = scmp.ne.s32.totalorder %s46, %s49
    %p55 = scmp.eq.s32.totalorder %s10, 0
    %p56 = por %p54, %p55
    %p57 = scmp.ne.s32.totalorder %s46, %s49
    %p58 = scmp.eq.s32.totalorder %s15, 1
    %p59 = por %p57, %p58
    %p60 = scmp.ne.s32.totalorder %s49, %s50
    %p61 = scmp.eq.s32.totalorder %s15, 0
    %p62 = por %p60, %p61
    %p63 = scmp.ne.s32.totalorder %s49, %s50
    %p64 = scmp.eq.s32.totalorder %s16, 1
    %p65 = por %p63, %p64
    %p67 = scmp.ne.s32.totalorder %s50, %s66
    %p68 = scmp.eq.s32.totalorder %s16, 0
    %p69 = por %p67, %p68
    %s71 = sadd.s32 %s70, 1
    %p74 = scmp.eq.s32.totalorder %s10, 1
    %p75 = scmp.ne.s32.totalorder %s70, %s72
    %p76 = scmp.eq.s32.totalorder %s10, 0
    %p77 = por %p75, %p76
    %p78 = scmp.ne.s32.totalorder %s70, %s72
    %p79 = scmp.eq.s32.totalorder %s15, 1
    %p80 = por %p78, %p79
    %p81 = scmp.ne.s32.totalorder %s72, %s73
    %p82 = scmp.eq.s32.totalorder %s15, 0
    %p83 = por %p81, %p82
    %p84 = scmp.ne.s32.totalorder %s72, %s73
    %p85 = scmp.eq.s32.totalorder %s16, 1
    %p86 = por %p84, %p85
    %p88 = scmp.ne.s32.totalorder %s73, %s87
    %p89 = scmp.eq.s32.totalorder %s16, 0
    %p90 = por %p88, %p89
    %s92 = sadd.s32 %s91, 1
    %p95 = scmp.eq.s32.totalorder %s10, 1
    %p96 = scmp.ne.s32.totalorder %s91, %s93
    %p97 = scmp.eq.s32.totalorder %s10, 0
    %p98 = por %p96, %p97
    %p99 = scmp.ne.s32.totalorder %s91, %s93
    %p100 = scmp.eq.s32.totalorder %s15, 1
    %p101 = por %p99, %p100
    %p102 = scmp.ne.s32.totalorder %s93, %s94
    %p103 = scmp.eq.s32.totalorder %s15, 0
    %p104 = por %p102, %p103
    %p105 = scmp.ne.s32.totalorder %s93, %s94
    %p106 = scmp.eq.s32.totalorder %s16, 1
    %p107 = por %p105, %p106
    %p109 = scmp.ne.s32.totalorder %s94, %s108
    %p110 = scmp.eq.s32.totalorder %s16, 0
    %p111 = por %p109, %p110
    %s112 = ssub.s32 %s10, %s17
    %p113 = scmp.eq.s32.totalorder %s112, 0
    %s115 = sadd.s32 %s114, 1
    %s116 = scalar_select %p113, %s114, %s115
    %p119 = pneg %p113
    %p120 = scmp.eq.s32.totalorder %s10, 1
    %p121 = por %p119, %p120
    %p122 = scmp.ne.s32.totalorder %s114, %s117
    %p123 = scmp.eq.s32.totalorder %s10, 0
    %p124 = por %p122, %p123
    %p125 = scmp.ne.s32.totalorder %s114, %s117
    %p126 = scmp.eq.s32.totalorder %s15, 1
    %p127 = por %p125, %p126
    %p128 = scmp.ne.s32.totalorder %s117, %s118
    %p129 = scmp.eq.s32.totalorder %s15, 0
    %p130 = por %p128, %p129
    %p131 = scmp.ne.s32.totalorder %s117, %s118
    %p132 = scmp.eq.s32.totalorder %s16, 1
    %p133 = por %p131, %p132
    %p135 = scmp.ne.s32.totalorder %s118, %s134
    %p136 = scmp.eq.s32.totalorder %s16, 0
    %p137 = por %p135, %p136
    %p138 = scmp.le.s32.totalorder 1, %s10
    %p139 = scmp.lt.s32.totalorder %s10, 3
    %p140 = pnand %p138, %p139
    %p141 = pneg %p140
    // Predicated region
    $region9: #{cnn_classifier_forward.7} parent=5 // pred_check
      _
    $region10: #{cnn_classifier_forward.7} parent=5 // pred_check_branch
      %143 = sbr.rel (%p140) target = $region12
    $region11: #{cnn_classifier_forward.7} parent=5 // pred_region
      %s144 = ssub.s32 %s10, 1
      // Predicated region
      $region13: #{cnn_classifier_forward.7} parent=11 // pred_check
        %p145 = pneg %p83
      $region14: #{cnn_classifier_forward.7} parent=11 // pred_check_branch
        %147 = sbr.rel (%p145) target = $region16
      $region15: #{cnn_classifier_forward.7} parent=11 // pred_region
        _
      $region16: #{cnn_classifier_forward.7} parent=11 // pred_fallthru
        _
      // Predicated region
      $region17: #{cnn_classifier_forward.7} parent=11 // pred_check
        %p148 = pneg %p104
      $region18: #{cnn_classifier_forward.7} parent=11 // pred_check_branch
        %150 = sbr.rel (%p148) target = $region20
      $region19: #{cnn_classifier_forward.7} parent=11 // pred_region
        _
      $region20: #{cnn_classifier_forward.7} parent=11 // pred_fallthru
        _
    $region12: #{cnn_classifier_forward.7} parent=5 // pred_fallthru
      _
    %p151 = scmp.lt.s32.totalorder %s10, 2
    // Predicated region
    $region21: #{cnn_classifier_forward.7} parent=5 // pred_check
      %p152 = pneg %p151
    $region22: #{cnn_classifier_forward.7} parent=5 // pred_check_branch
      %154 = sbr.rel (%p152) target = $region24
    $region23: #{cnn_classifier_forward.7} parent=5 // pred_region
      // Predicated region
      $region25: #{cnn_classifier_forward.7} parent=23 // pred_check
        %p155 = pneg %p30
      $region26: #{cnn_classifier_forward.7} parent=23 // pred_check_branch
        %157 = sbr.rel (%p155) target = $region28
      $region27: #{cnn_classifier_forward.7} parent=23 // pred_region
        %p158 = scmp.lt.s32.totalorder %s10, 1
        %s159 = scalar_select %p158, %s10, 1
        %s160 = smul.addr %s159, 4
        %s161 = smul.addr %s160, 4
        %s162 = scalar_lea.vmem %s0, %s161
      $region28: #{cnn_classifier_forward.7} parent=23 // pred_fallthru
        _
      // Predicated region
      $region29: #{cnn_classifier_forward.7} parent=23 // pred_check
        %p163 = pneg %p56
      $region30: #{cnn_classifier_forward.7} parent=23 // pred_check_branch
        %165 = sbr.rel (%p163) target = $region32
      $region31: #{cnn_classifier_forward.7} parent=23 // pred_region
        %p166 = scmp.lt.s32.totalorder %s10, 1
        %s167 = scalar_select %p166, %s10, 1
        %s168 = smul.addr %s167, 4
        %s169 = smul.addr %s168, 4
        %s170 = scalar_lea.vmem %s1, %s169
      $region32: #{cnn_classifier_forward.7} parent=23 // pred_fallthru
        _
    $region24: #{cnn_classifier_forward.7} parent=5 // pred_fallthru
      _
    %p171 = scmp.le.s32.totalorder 1, %s10
    %p172 = scmp.lt.s32.totalorder %s10, 3
    %p173 = pnand %p171, %p172
    %p174 = pneg %p173
    // Predicated region
    $region33: #{cnn_classifier_forward.7} parent=5 // pred_check
      _
    $region34: #{cnn_classifier_forward.7} parent=5 // pred_check_branch
      %176 = sbr.rel (%p173) target = $region36
    $region35: #{cnn_classifier_forward.7} parent=5 // pred_region
      %s177 = ssub.s32 %s10, 1
      %p178 = scmp.lt.s32.totalorder %s15, 1
      %s179 = scalar_select %p178, %s15, 1
      %s180 = smul.addr %s179, 4
      %s181 = smul.addr %s180, 4
      %s182 = scalar_lea.vmem %s0, %s181
      %p183 = pneg %p36
      %p184 = pneg %p33
      %p185 = scmp.lt.s32.totalorder %s15, 1
      %s186 = scalar_select %p185, %s15, 1
      %s187 = smul.addr %s186, 4
      %s188 = smul.addr %s187, 4
      %s189 = scalar_lea.vmem %s1, %s188
      %p190 = pneg %p62
      %p191 = pneg %p59
      %p192 = pneg %p83
      %p193 = pneg %p80
      %p194 = pneg %p104
      %p195 = pneg %p101
      %p196 = pneg %p130
      %p197 = pneg %p127
      %p198 = scmp.lt.s32.totalorder %s15, 1
      %s199 = scalar_select %p198, %s15, 1
      %s200 = smul.addr %s199, 8
      %s201 = smul.addr %s200, 4
      %s202 = scalar_lea.vmem %s4, %s201
      %p203 = scmp.lt.s32.totalorder %s15, 1
      %s204 = scalar_select %p203, %s15, 1
      %s205 = smul.addr %s204, 4
      %s206 = smul.addr %s205, 4
      %s207 = scalar_lea.vmem %s0, %s206
      %p208 = scmp.lt.s32.totalorder %s15, 1
      %s209 = scalar_select %p208, %s15, 1
      %s210 = smul.addr %s209, 4
      %s211 = smul.addr %s210, 4
      %s212 = scalar_lea.vmem %s1, %s211
      %p213 = scmp.lt.s32.totalorder %s15, 1
      %s214 = scalar_select %p213, %s15, 1
      %s215 = smul.addr %s214, 8
      %s216 = smul.addr %s215, 4
      %s217 = scalar_lea.vmem %s4, %s216
      %v219 = vld [vmem:[%s207] sm:$0xf]
      %v220 = vld [vmem:[%s207 + $0x4] sm:$0xf]
      %v221 = vld [vmem:[%s207 + $0x8] sm:$0xf]
      %v222 = vld [vmem:[%s207 + $0xc] sm:$0xf]
      %v223 = vld [vmem:[%s212] sm:$0xf]
      %v224 = vld [vmem:[%s212 + $0x4] sm:$0xf]
      %v225 = vld [vmem:[%s212 + $0x8] sm:$0xf]
      %v226 = vld [vmem:[%s212 + $0xc] sm:$0xf]
      %v227 = vld [vmem:[%s2] sm:$0xf]
      %v228 = vld [vmem:[%s2 + $0x4] sm:$0xf]
      %v229 = vld [vmem:[%s2 + $0x8] sm:$0xf]
      %v230 = vld [vmem:[%s2 + $0xc] sm:$0xf]
      %v231 = vld [vmem:[%s2 + $0x10] sm:$0xf]
      %v232 = vld [vmem:[%s2 + $0x14] sm:$0xf]
      %v233 = vld [vmem:[%s2 + $0x18] sm:$0xf]
      %v234 = vld [vmem:[%s2 + $0x1c] sm:$0xf]
      %s235 = scalar_lea.vmem %s2, 32
      %v236 = vld [vmem:[%s235] sm:$0xf]
      %v237 = vld [vmem:[%s235 + $0x4] sm:$0xf]
      %v238 = vld [vmem:[%s235 + $0x8] sm:$0xf]
      %v239 = vld [vmem:[%s235 + $0xc] sm:$0xf]
      %v240 = vld [vmem:[%s235 + $0x10] sm:$0xf]
      %v241 = vld [vmem:[%s235 + $0x14] sm:$0xf]
      %v242 = vld [vmem:[%s235 + $0x18] sm:$0xf]
      %v243 = vld [vmem:[%s235 + $0x1c] sm:$0xf]
      %v252 = vunpack.c.l.b16 %v236
      %v253 = vunpack.c.l.b16 %v237
      %v254 = vunpack.c.l.b16 %v238
      %v255 = vunpack.c.l.b16 %v239
      %v256 = vunpack.c.l.b16 %v240
      %v257 = vunpack.c.l.b16 %v241
      %v258 = vunpack.c.l.b16 %v242
      %v259 = vunpack.c.l.b16 %v243
      %v260 = vpack.c.b16 %v253, %v252
      %v261 = vpack.c.b16 %v255, %v254
      %v262 = vpack.c.b16 %v257, %v256
      %v263 = vpack.c.b16 %v259, %v258
      %v268 = vunpack.c.l.b16 %v223
      %v269 = vunpack.c.l.b16 %v224
      %v270 = vunpack.c.l.b16 %v225
      %v271 = vunpack.c.l.b16 %v226
      %v272 = vpack.c.b16 %v269, %v268
      %v273 = vpack.c.b16 %v271, %v270
      %vm276 = vcmask 261120
      %v278 = vsel %vm276, %v260, 0
      %v281 = vsel %vm276, %v261, 0
      %v284 = vsel %vm276, %v262, 0
      %v287 = vsel %vm276, %v263, 0
      %289 = vmatprep.subr.bf16.mxu0 0
      %290 = vmatpush1.bf16.msra.mxu0 %v272
      %291 = vmatprep.subr.bf16.mxu0 0
      %292 = vmatpush1.bf16.msra.mxu0 %v273
      %293 = vmatprep.subr.bf16.mxu0 0
      %294 = vmatpush1.bf16.msra.mxu0 0
      %295 = vmatprep.subr.bf16.mxu0 0
      %296 = vmatpush1.bf16.msra.mxu0 0
      %297 = vmatprep.subr.bf16.mxu0 0
      %298 = vmatpush1.bf16.msra.mxu0 0
      %299 = vmatprep.subr.bf16.mxu0 0
      %300 = vmatpush1.bf16.msra.mxu0 0
      %301 = vmatprep.subr.bf16.mxu0 0
      %302 = vmatpush1.bf16.msra.mxu0 0
      %303 = vmatprep.subr.bf16.mxu0 0
      %304 = vmatpush1.bf16.msra.mxu0 0
      %305 = vmatprep.subr.bf16.mxu0 0
      %306 = vmatpush1.bf16.msra.mxu0 0
      %307 = vmatprep.subr.bf16.mxu0 0
      %308 = vmatpush1.bf16.msra.mxu0 0
      %309 = vmatprep.subr.bf16.mxu0 0
      %310 = vmatpush1.bf16.msra.mxu0 0
      %311 = vmatprep.subr.bf16.mxu0 0
      %312 = vmatpush1.bf16.msra.mxu0 0
      %313 = vmatprep.subr.bf16.mxu0 0
      %314 = vmatpush1.bf16.msra.mxu0 0
      %315 = vmatprep.subr.bf16.mxu0 0
      %316 = vmatpush1.bf16.msra.mxu0 0
      %317 = vmatprep.subr.bf16.mxu0 0
      %318 = vmatpush1.bf16.msra.mxu0 0
      %319 = vmatprep.subr.bf16.mxu0 0
      %320 = vmatpush1.bf16.msra.mxu0 0
      %321 = vmatprep.mubr.bf16.mxu0 0
      %322 = vmatmul.mubr.bf16.gmra.mrb[0].mxu0 %v278
      %v323 = vpop.f32.mrb[0].mxu0
      %v324 = vadd.f32 0.0, %v323
      %v325 = vpop.f32.mrb[0].mxu0
      %v326 = vpop.f32.mrb[0].mxu0
      %v327 = vadd.f32 0.0, %v326
      %v328 = vpop.f32.mrb[0].mxu0
      %329 = vmatprep.mubr.bf16.mxu0 0
      %330 = vmatmul.mubr.bf16.gmra.mrb[0].mxu0 %v281
      %v331 = vpop.f32.mrb[0].mxu0
      %v332 = vadd.f32 0.0, %v331
      %v333 = vpop.f32.mrb[0].mxu0
      %v334 = vpop.f32.mrb[0].mxu0
      %v335 = vadd.f32 0.0, %v334
      %v336 = vpop.f32.mrb[0].mxu0
      %337 = vmatprep.mubr.bf16.mxu0 0
      %338 = vmatmul.mubr.bf16.gmra.mrb[0].mxu0 %v284
      %v339 = vpop.f32.mrb[0].mxu0
      %v340 = vadd.f32 0.0, %v339
      %v341 = vpop.f32.mrb[0].mxu0
      %v342 = vpop.f32.mrb[0].mxu0
      %v343 = vadd.f32 0.0, %v342
      %v344 = vpop.f32.mrb[0].mxu0
      %345 = vmatprep.mubr.bf16.mxu0 0
      %346 = vmatmul.mubr.bf16.gmra.mrb[0].mxu0 %v287
      %v347 = vpop.f32.mrb[0].mxu0
      %v348 = vadd.f32 0.0, %v347
      %v349 = vpop.f32.mrb[0].mxu0
      %v350 = vpop.f32.mrb[0].mxu0
      %v351 = vadd.f32 0.0, %v350
      %v352 = vpop.f32.mrb[0].mxu0
      %353 = vdwg.mxu0
      %v362 = vunpack.c.l.b16 %v227
      %v363 = vunpack.c.l.b16 %v228
      %v364 = vunpack.c.l.b16 %v229
      %v365 = vunpack.c.l.b16 %v230
      %v366 = vunpack.c.l.b16 %v231
      %v367 = vunpack.c.l.b16 %v232
      %v368 = vunpack.c.l.b16 %v233
      %v369 = vunpack.c.l.b16 %v234
      %v370 = vpack.c.b16 %v363, %v362
      %v371 = vpack.c.b16 %v365, %v364
      %v372 = vpack.c.b16 %v367, %v366
      %v373 = vpack.c.b16 %v369, %v368
      %v378 = vunpack.c.l.b16 %v219
      %v379 = vunpack.c.l.b16 %v220
      %v380 = vunpack.c.l.b16 %v221
      %v381 = vunpack.c.l.b16 %v222
      %v382 = vpack.c.b16 %v379, %v378
      %v383 = vpack.c.b16 %v381, %v380
      %v387 = vsel %vm276, %v370, 0
      %v390 = vsel %vm276, %v371, 0
      %v393 = vsel %vm276, %v372, 0
      %v396 = vsel %vm276, %v373, 0
      %398 = vmatprep.subr.bf16.mxu0 0
      %399 = vmatpush1.bf16.msra.mxu0 %v382
      %400 = vmatprep.subr.bf16.mxu0 0
      %401 = vmatpush1.bf16.msra.mxu0 %v383
      %402 = vmatprep.subr.bf16.mxu0 0
      %403 = vmatpush1.bf16.msra.mxu0 0
      %404 = vmatprep.subr.bf16.mxu0 0
      %405 = vmatpush1.bf16.msra.mxu0 0
      %406 = vmatprep.subr.bf16.mxu0 0
      %407 = vmatpush1.bf16.msra.mxu0 0
      %408 = vmatprep.subr.bf16.mxu0 0
      %409 = vmatpush1.bf16.msra.mxu0 0
      %410 = vmatprep.subr.bf16.mxu0 0
      %411 = vmatpush1.bf16.msra.mxu0 0
      %412 = vmatprep.subr.bf16.mxu0 0
      %413 = vmatpush1.bf16.msra.mxu0 0
      %414 = vmatprep.subr.bf16.mxu0 0
      %415 = vmatpush1.bf16.msra.mxu0 0
      %416 = vmatprep.subr.bf16.mxu0 0
      %417 = vmatpush1.bf16.msra.mxu0 0
      %418 = vmatprep.subr.bf16.mxu0 0
      %419 = vmatpush1.bf16.msra.mxu0 0
      %420 = vmatprep.subr.bf16.mxu0 0
      %421 = vmatpush1.bf16.msra.mxu0 0
      %422 = vmatprep.subr.bf16.mxu0 0
      %423 = vmatpush1.bf16.msra.mxu0 0
      %424 = vmatprep.subr.bf16.mxu0 0
      %425 = vmatpush1.bf16.msra.mxu0 0
      %426 = vmatprep.subr.bf16.mxu0 0
      %427 = vmatpush1.bf16.msra.mxu0 0
      %428 = vmatprep.subr.bf16.mxu0 0
      %429 = vmatpush1.bf16.msra.mxu0 0
      %430 = vmatprep.mubr.bf16.mxu0 0
      %431 = vmatmul.mubr.bf16.gmra.mrb[0].mxu0 %v387
      %v432 = vpop.f32.mrb[0].mxu0
      %v433 = vadd.f32 %v324, %v432
      %v434 = vpop.f32.mrb[0].mxu0
      %v435 = vpop.f32.mrb[0].mxu0
      %v436 = vadd.f32 %v327, %v435
      %v437 = vpop.f32.mrb[0].mxu0
      %438 = vmatprep.mubr.bf16.mxu0 0
      %439 = vmatmul.mubr.bf16.gmra.mrb[0].mxu0 %v390
      %v440 = vpop.f32.mrb[0].mxu0
      %v441 = vadd.f32 %v332, %v440
      %v442 = vpop.f32.mrb[0].mxu0
      %v443 = vpop.f32.mrb[0].mxu0
      %v444 = vadd.f32 %v335, %v443
      %v445 = vpop.f32.mrb[0].mxu0
      %446 = vmatprep.mubr.bf16.mxu0 0
      %447 = vmatmul.mubr.bf16.gmra.mrb[0].mxu0 %v393
      %v448 = vpop.f32.mrb[0].mxu0
      %v449 = vadd.f32 %v340, %v448
      %v450 = vpop.f32.mrb[0].mxu0
      %v451 = vpop.f32.mrb[0].mxu0
      %v452 = vadd.f32 %v343, %v451
      %v453 = vpop.f32.mrb[0].mxu0
      %454 = vmatprep.mubr.bf16.mxu0 0
      %455 = vmatmul.mubr.bf16.gmra.mrb[0].mxu0 %v396
      %v456 = vpop.f32.mrb[0].mxu0
      %v457 = vadd.f32 %v348, %v456
      %v458 = vpop.f32.mrb[0].mxu0
      %v459 = vpop.f32.mrb[0].mxu0
      %v460 = vadd.f32 %v351, %v459
      %v461 = vpop.f32.mrb[0].mxu0
      %462 = vdwg.mxu0
      %s463 = scalar_lea.vmem %s2, 64
      %v464 = vld [vmem:[%s463] sm:$0xf]
      %v465 = vld [vmem:[%s463 + $0x4] sm:$0xf]
      %v466 = vld [vmem:[%s463 + $0x8] sm:$0xf]
      %v467 = vld [vmem:[%s463 + $0xc] sm:$0xf]
      %v468 = vld [vmem:[%s463 + $0x10] sm:$0xf]
      %v469 = vld [vmem:[%s463 + $0x14] sm:$0xf]
      %v470 = vld [vmem:[%s463 + $0x18] sm:$0xf]
      %v471 = vld [vmem:[%s463 + $0x1c] sm:$0xf]
      %v480 = vunpack.c.l.b16 %v464
      %v481 = vunpack.c.l.b16 %v465
      %v482 = vunpack.c.l.b16 %v466
      %v483 = vunpack.c.l.b16 %v467
      %v484 = vunpack.c.l.b16 %v468
      %v485 = vunpack.c.l.b16 %v469
      %v486 = vunpack.c.l.b16 %v470
      %v487 = vunpack.c.l.b16 %v471
      %v488 = vpack.c.b16 %v481, %v480
      %v489 = vpack.c.b16 %v483, %v482
      %v490 = vpack.c.b16 %v485, %v484
      %v491 = vpack.c.b16 %v487, %v486
      %492 = vrot.lane.b32.xlu0 %v382, 127
      %v493 = vpop.permute.xlu0 %492
      %494 = vrot.lane.b32.xlu0 %v383, 127
      %v495 = vpop.permute.xlu0 %494
      %v499 = vsel %vm276, %v488, 0
      %v502 = vsel %vm276, %v489, 0
      %v505 = vsel %vm276, %v490, 0
      %v508 = vsel %vm276, %v491, 0
      %510 = vmatprep.subr.bf16.mxu0 0
      %511 = vmatpush1.bf16.msra.mxu0 %v493
      %512 = vmatprep.subr.bf16.mxu0 0
      %513 = vmatpush1.bf16.msra.mxu0 %v495
      %514 = vmatprep.subr.bf16.mxu0 0
      %515 = vmatpush1.bf16.msra.mxu0 0
      %516 = vmatprep.subr.bf16.mxu0 0
      %517 = vmatpush1.bf16.msra.mxu0 0
      %518 = vmatprep.subr.bf16.mxu0 0
      %519 = vmatpush1.bf16.msra.mxu0 0
      %520 = vmatprep.subr.bf16.mxu0 0
      %521 = vmatpush1.bf16.msra.mxu0 0
      %522 = vmatprep.subr.bf16.mxu0 0
      %523 = vmatpush1.bf16.msra.mxu0 0
      %524 = vmatprep.subr.bf16.mxu0 0
      %525 = vmatpush1.bf16.msra.mxu0 0
      %526 = vmatprep.subr.bf16.mxu0 0
      %527 = vmatpush1.bf16.msra.mxu0 0
      %528 = vmatprep.subr.bf16.mxu0 0
      %529 = vmatpush1.bf16.msra.mxu0 0
      %530 = vmatprep.subr.bf16.mxu0 0
      %531 = vmatpush1.bf16.msra.mxu0 0
      %532 = vmatprep.subr.bf16.mxu0 0
      %533 = vmatpush1.bf16.msra.mxu0 0
      %534 = vmatprep.subr.bf16.mxu0 0
      %535 = vmatpush1.bf16.msra.mxu0 0
      %536 = vmatprep.subr.bf16.mxu0 0
      %537 = vmatpush1.bf16.msra.mxu0 0
      %538 = vmatprep.subr.bf16.mxu0 0
      %539 = vmatpush1.bf16.msra.mxu0 0
      %540 = vmatprep.subr.bf16.mxu0 0
      %541 = vmatpush1.bf16.msra.mxu0 0
      %542 = vmatprep.mubr.bf16.mxu0 0
      %543 = vmatmul.mubr.bf16.gmra.mrb[0].mxu0 %v499
      %v544 = vpop.f32.mrb[0].mxu0
      %v545 = vadd.f32 0.0, %v544
      %v546 = vpop.f32.mrb[0].mxu0
      %v547 = vpop.f32.mrb[0].mxu0
      %v548 = vadd.f32 0.0, %v547
      %v549 = vpop.f32.mrb[0].mxu0
      %550 = vmatprep.mubr.bf16.mxu0 0
      %551 = vmatmul.mubr.bf16.gmra.mrb[0].mxu0 %v502
      %v552 = vpop.f32.mrb[0].mxu0
      %v553 = vadd.f32 0.0, %v552
      %v554 = vpop.f32.mrb[0].mxu0
      %v555 = vpop.f32.mrb[0].mxu0
      %v556 = vadd.f32 0.0, %v555
      %v557 = vpop.f32.mrb[0].mxu0
      %558 = vmatprep.mubr.bf16.mxu0 0
      %559 = vmatmul.mubr.bf16.gmra.mrb[0].mxu0 %v505
      %v560 = vpop.f32.mrb[0].mxu0
      %v561 = vadd.f32 0.0, %v560
      %v562 = vpop.f32.mrb[0].mxu0
      %v563 = vpop.f32.mrb[0].mxu0
      %v564 = vadd.f32 0.0, %v563
      %v565 = vpop.f32.mrb[0].mxu0
      %566 = vmatprep.mubr.bf16.mxu0 0
      %567 = vmatmul.mubr.bf16.gmra.mrb[0].mxu0 %v508
      %v568 = vpop.f32.mrb[0].mxu0
      %v569 = vadd.f32 0.0, %v568
      %v570 = vpop.f32.mrb[0].mxu0
      %v571 = vpop.f32.mrb[0].mxu0
      %v572 = vadd.f32 0.0, %v571
      %v573 = vpop.f32.mrb[0].mxu0
      %574 = vdwg.mxu0
      %v575 = vadd.f32 %v433, %v545
      %v576 = vadd.f32 %v436, %v548
      %v577 = vadd.f32 %v441, %v553
      %v578 = vadd.f32 %v444, %v556
      %v579 = vadd.f32 %v449, %v561
      %v580 = vadd.f32 %v452, %v564
      %v581 = vadd.f32 %v457, %v569
      %v582 = vadd.f32 %v460, %v572
      %s583 = scalar_lea.vmem %s2, 96
      %v584 = vld [vmem:[%s583] sm:$0xf]
      %v585 = vld [vmem:[%s583 + $0x4] sm:$0xf]
      %v586 = vld [vmem:[%s583 + $0x8] sm:$0xf]
      %v587 = vld [vmem:[%s583 + $0xc] sm:$0xf]
      %v588 = vld [vmem:[%s583 + $0x10] sm:$0xf]
      %v589 = vld [vmem:[%s583 + $0x14] sm:$0xf]
      %v590 = vld [vmem:[%s583 + $0x18] sm:$0xf]
      %v591 = vld [vmem:[%s583 + $0x1c] sm:$0xf]
      %v600 = vunpack.c.l.b16 %v584
      %v601 = vunpack.c.l.b16 %v585
      %v602 = vunpack.c.l.b16 %v586
      %v603 = vunpack.c.l.b16 %v587
      %v604 = vunpack.c.l.b16 %v588
      %v605 = vunpack.c.l.b16 %v589
      %v606 = vunpack.c.l.b16 %v590
      %v607 = vunpack.c.l.b16 %v591
      %v608 = vpack.c.b16 %v601, %v600
      %v609 = vpack.c.b16 %v603, %v602
      %v610 = vpack.c.b16 %v605, %v604
      %v611 = vpack.c.b16 %v607, %v606
      %612 = vrot.lane.b32.xlu0 %v272, 127
      %v613 = vpop.permute.xlu0 %612
      %614 = vrot.lane.b32.xlu0 %v273, 127
      %v615 = vpop.permute.xlu0 %614
      %v619 = vsel %vm276, %v608, 0
      %v622 = vsel %vm276, %v609, 0
      %v625 = vsel %vm276, %v610, 0
      %v628 = vsel %vm276, %v611, 0
      %630 = vmatprep.subr.bf16.mxu0 0
      %631 = vmatpush1.bf16.msra.mxu0 %v613
      %632 = vmatprep.subr.bf16.mxu0 0
      %633 = vmatpush1.bf16.msra.mxu0 %v615
      %634 = vmatprep.subr.bf16.mxu0 0
      %635 = vmatpush1.bf16.msra.mxu0 0
      %636 = vmatprep.subr.bf16.mxu0 0
      %637 = vmatpush1.bf16.msra.mxu0 0
      %638 = vmatprep.subr.bf16.mxu0 0
      %639 = vmatpush1.bf16.msra.mxu0 0
      %640 = vmatprep.subr.bf16.mxu0 0
      %641 = vmatpush1.bf16.msra.mxu0 0
      %642 = vmatprep.subr.bf16.mxu0 0
      %643 = vmatpush1.bf16.msra.mxu0 0
      %644 = vmatprep.subr.bf16.mxu0 0
      %645 = vmatpush1.bf16.msra.mxu0 0
      %646 = vmatprep.subr.bf16.mxu0 0
      %647 = vmatpush1.bf16.msra.mxu0 0
      %648 = vmatprep.subr.bf16.mxu0 0
      %649 = vmatpush1.bf16.msra.mxu0 0
      %650 = vmatprep.subr.bf16.mxu0 0
      %651 = vmatpush1.bf16.msra.mxu0 0
      %652 = vmatprep.subr.bf16.mxu0 0
      %653 = vmatpush1.bf16.msra.mxu0 0
      %654 = vmatprep.subr.bf16.mxu0 0
      %655 = vmatpush1.bf16.msra.mxu0 0
      %656 = vmatprep.subr.bf16.mxu0 0
      %657 = vmatpush1.bf16.msra.mxu0 0
      %658 = vmatprep.subr.bf16.mxu0 0
      %659 = vmatpush1.bf16.msra.mxu0 0
      %660 = vmatprep.subr.bf16.mxu0 0
      %661 = vmatpush1.bf16.msra.mxu0 0
      %662 = vmatprep.mubr.bf16.mxu0 0
      %663 = vmatmul.mubr.bf16.gmra.mrb[0].mxu0 %v619
      %v664 = vpop.f32.mrb[0].mxu0
      %v665 = vadd.f32 0.0, %v664
      %v666 = vpop.f32.mrb[0].mxu0
      %v667 = vpop.f32.mrb[0].mxu0
      %v668 = vadd.f32 0.0, %v667
      %v669 = vpop.f32.mrb[0].mxu0
      %670 = vmatprep.mubr.bf16.mxu0 0
      %671 = vmatmul.mubr.bf16.gmra.mrb[0].mxu0 %v622
      %v672 = vpop.f32.mrb[0].mxu0
      %v673 = vadd.f32 0.0, %v672
      %v674 = vpop.f32.mrb[0].mxu0
      %v675 = vpop.f32.mrb[0].mxu0
      %v676 = vadd.f32 0.0, %v675
      %v677 = vpop.f32.mrb[0].mxu0
      %678 = vmatprep.mubr.bf16.mxu0 0
      %679 = vmatmul.mubr.bf16.gmra.mrb[0].mxu0 %v625
      %v680 = vpop.f32.mrb[0].mxu0
      %v681 = vadd.f32 0.0, %v680
      %v682 = vpop.f32.mrb[0].mxu0
      %v683 = vpop.f32.mrb[0].mxu0
      %v684 = vadd.f32 0.0, %v683
      %v685 = vpop.f32.mrb[0].mxu0
      %686 = vmatprep.mubr.bf16.mxu0 0
      %687 = vmatmul.mubr.bf16.gmra.mrb[0].mxu0 %v628
      %v688 = vpop.f32.mrb[0].mxu0
      %v689 = vadd.f32 0.0, %v688
      %v690 = vpop.f32.mrb[0].mxu0
      %v691 = vpop.f32.mrb[0].mxu0
      %v692 = vadd.f32 0.0, %v691
      %v693 = vpop.f32.mrb[0].mxu0
      %694 = vdwg.mxu0
      %v695 = vadd.f32 %v575, %v665
      %v696 = vadd.f32 %v576, %v668
      %v697 = vadd.f32 %v577, %v673
      %v698 = vadd.f32 %v578, %v676
      %v699 = vadd.f32 %v579, %v681
      %v700 = vadd.f32 %v580, %v684
      %v701 = vadd.f32 %v581, %v689
      %v702 = vadd.f32 %v582, %v692
      %s703 = scalar_lea.vmem %s2, 128
      %v704 = vld [vmem:[%s703] sm:$0xf]
      %v705 = vld [vmem:[%s703 + $0x4] sm:$0xf]
      %v706 = vld [vmem:[%s703 + $0x8] sm:$0xf]
      %v707 = vld [vmem:[%s703 + $0xc] sm:$0xf]
      %v708 = vld [vmem:[%s703 + $0x10] sm:$0xf]
      %v709 = vld [vmem:[%s703 + $0x14] sm:$0xf]
      %v710 = vld [vmem:[%s703 + $0x18] sm:$0xf]
      %v711 = vld [vmem:[%s703 + $0x1c] sm:$0xf]
      %v720 = vunpack.c.l.b16 %v704
      %v721 = vunpack.c.l.b16 %v705
      %v722 = vunpack.c.l.b16 %v706
      %v723 = vunpack.c.l.b16 %v707
      %v724 = vunpack.c.l.b16 %v708
      %v725 = vunpack.c.l.b16 %v709
      %v726 = vunpack.c.l.b16 %v710
      %v727 = vunpack.c.l.b16 %v711
      %v728 = vpack.c.b16 %v721, %v720
      %v729 = vpack.c.b16 %v723, %v722
      %v730 = vpack.c.b16 %v725, %v724
      %v731 = vpack.c.b16 %v727, %v726
      %732 = vrot.lane.b32.xlu0 %v382, 126
      %v733 = vpop.permute.xlu0 %732
      %734 = vrot.lane.b32.xlu0 %v383, 126
      %v735 = vpop.permute.xlu0 %734
      %v739 = vsel %vm276, %v728, 0
      %v742 = vsel %vm276, %v729, 0
      %v745 = vsel %vm276, %v730, 0
      %v748 = vsel %vm276, %v731, 0
      %750 = vmatprep.subr.bf16.mxu0 0
      %751 = vmatpush1.bf16.msra.mxu0 %v733
      %752 = vmatprep.subr.bf16.mxu0 0
      %753 = vmatpush1.bf16.msra.mxu0 %v735
      %754 = vmatprep.subr.bf16.mxu0 0
      %755 = vmatpush1.bf16.msra.mxu0 0
      %756 = vmatprep.subr.bf16.mxu0 0
      %757 = vmatpush1.bf16.msra.mxu0 0
      %758 = vmatprep.subr.bf16.mxu0 0
      %759 = vmatpush1.bf16.msra.mxu0 0
      %760 = vmatprep.subr.bf16.mxu0 0
      %761 = vmatpush1.bf16.msra.mxu0 0
      %762 = vmatprep.subr.bf16.mxu0 0
      %763 = vmatpush1.bf16.msra.mxu0 0
      %764 = vmatprep.subr.bf16.mxu0 0
      %765 = vmatpush1.bf16.msra.mxu0 0
      %766 = vmatprep.subr.bf16.mxu0 0
      %767 = vmatpush1.bf16.msra.mxu0 0
      %768 = vmatprep.subr.bf16.mxu0 0
      %769 = vmatpush1.bf16.msra.mxu0 0
      %770 = vmatprep.subr.bf16.mxu0 0
      %771 = vmatpush1.bf16.msra.mxu0 0
      %772 = vmatprep.subr.bf16.mxu0 0
      %773 = vmatpush1.bf16.msra.mxu0 0
      %774 = vmatprep.subr.bf16.mxu0 0
      %775 = vmatpush1.bf16.msra.mxu0 0
      %776 = vmatprep.subr.bf16.mxu0 0
      %777 = vmatpush1.bf16.msra.mxu0 0
      %778 = vmatprep.subr.bf16.mxu0 0
      %779 = vmatpush1.bf16.msra.mxu0 0
      %780 = vmatprep.subr.bf16.mxu0 0
      %781 = vmatpush1.bf16.msra.mxu0 0
      %782 = vmatprep.mubr.bf16.mxu0 0
      %783 = vmatmul.mubr.bf16.gmra.mrb[0].mxu0 %v739
      %v784 = vpop.f32.mrb[0].mxu0
      %v785 = vadd.f32 0.0, %v784
      %v786 = vpop.f32.mrb[0].mxu0
      %v787 = vpop.f32.mrb[0].mxu0
      %v788 = vadd.f32 0.0, %v787
      %v789 = vpop.f32.mrb[0].mxu0
      %790 = vmatprep.mubr.bf16.mxu0 0
      %791 = vmatmul.mubr.bf16.gmra.mrb[0].mxu0 %v742
      %v792 = vpop.f32.mrb[0].mxu0
      %v793 = vadd.f32 0.0, %v792
      %v794 = vpop.f32.mrb[0].mxu0
      %v795 = vpop.f32.mrb[0].mxu0
      %v796 = vadd.f32 0.0, %v795
      %v797 = vpop.f32.mrb[0].mxu0
      %798 = vmatprep.mubr.bf16.mxu0 0
      %799 = vmatmul.mubr.bf16.gmra.mrb[0].mxu0 %v745
      %v800 = vpop.f32.mrb[0].mxu0
      %v801 = vadd.f32 0.0, %v800
      %v802 = vpop.f32.mrb[0].mxu0
      %v803 = vpop.f32.mrb[0].mxu0
      %v804 = vadd.f32 0.0, %v803
      %v805 = vpop.f32.mrb[0].mxu0
      %806 = vmatprep.mubr.bf16.mxu0 0
      %807 = vmatmul.mubr.bf16.gmra.mrb[0].mxu0 %v748
      %v808 = vpop.f32.mrb[0].mxu0
      %v809 = vadd.f32 0.0, %v808
      %v810 = vpop.f32.mrb[0].mxu0
      %v811 = vpop.f32.mrb[0].mxu0
      %v812 = vadd.f32 0.0, %v811
      %v813 = vpop.f32.mrb[0].mxu0
      %814 = vdwg.mxu0
      %v815 = vadd.f32 %v695, %v785
      %v816 = vadd.f32 %v696, %v788
      %v817 = vadd.f32 %v697, %v793
      %v818 = vadd.f32 %v698, %v796
      %v819 = vadd.f32 %v699, %v801
      %v820 = vadd.f32 %v700, %v804
      %v821 = vadd.f32 %v701, %v809
      %v822 = vadd.f32 %v702, %v812
      %v823 = vld [vmem:[%s3] sm:$0xff]
      %v824 = vld [vmem:[%s3 + $0x8] sm:$0xff]
      %v825 = vld [vmem:[%s3 + $0x10] sm:$0xff]
      %v826 = vld [vmem:[%s3 + $0x18] sm:$0xff]
      %v827 = vld [vmem:[%s3 + $0x20] sm:$0xff]
      %v828 = vld [vmem:[%s3 + $0x28] sm:$0xff]
      %v829 = vld [vmem:[%s3 + $0x30] sm:$0xff]
      %v830 = vld [vmem:[%s3 + $0x38] sm:$0xff]
      %832 = vset.pattern.permute.xlu0 0
      %833 = vperm.xlu0 %832, %v823
      %v834 = vpop.permute.xlu0 %833
      %837 = vset.pattern.permute.xlu0 0
      %838 = vperm.xlu0 %837, %v824
      %v839 = vpop.permute.xlu0 %838
      %842 = vset.pattern.permute.xlu0 0
      %843 = vperm.xlu0 %842, %v825
      %v844 = vpop.permute.xlu0 %843
      %847 = vset.pattern.permute.xlu0 0
      %848 = vperm.xlu0 %847, %v826
      %v849 = vpop.permute.xlu0 %848
      %852 = vset.pattern.permute.xlu0 0
      %853 = vperm.xlu0 %852, %v827
      %v854 = vpop.permute.xlu0 %853
      %857 = vset.pattern.permute.xlu0 0
      %858 = vperm.xlu0 %857, %v828
      %v859 = vpop.permute.xlu0 %858
      %862 = vset.pattern.permute.xlu0 0
      %863 = vperm.xlu0 %862, %v829
      %v864 = vpop.permute.xlu0 %863
      %867 = vset.pattern.permute.xlu0 0
      %868 = vperm.xlu0 %867, %v830
      %v869 = vpop.permute.xlu0 %868
      %v871 = vadd.f32 %v815, %v834
      %v872 = vadd.f32 %v816, %v839
      %v873 = vadd.f32 %v817, %v844
      %v874 = vadd.f32 %v818, %v849
      %v875 = vadd.f32 %v819, %v854
      %v876 = vadd.f32 %v820, %v859
      %v877 = vadd.f32 %v821, %v864
      %v878 = vadd.f32 %v822, %v869
      %v879 = vmax.f32 %v871, 0.0
      %v880 = vmax.f32 %v872, 0.0
      %v881 = vmax.f32 %v873, 0.0
      %v882 = vmax.f32 %v874, 0.0
      %v883 = vmax.f32 %v875, 0.0
      %v884 = vmax.f32 %v876, 0.0
      %v885 = vmax.f32 %v877, 0.0
      %v886 = vmax.f32 %v878, 0.0
      %v887 = vpack.c.bf16 %v880, %v879
      %v888 = vpack.c.bf16 %v882, %v881
      %v889 = vpack.c.bf16 %v884, %v883
      %v890 = vpack.c.bf16 %v886, %v885
      %v895 = vunpack.c.l.b16 %v887
      %v896 = vunpack.c.h.b16 %v887
      %v897 = vunpack.c.l.b16 %v888
      %v898 = vunpack.c.h.b16 %v888
      %v899 = vunpack.c.l.b16 %v889
      %v900 = vunpack.c.h.b16 %v889
      %v901 = vunpack.c.l.b16 %v890
      %v902 = vunpack.c.h.b16 %v890
      %v903 = vpack.c.b16 %v895, %v895
      %v904 = vpack.c.b16 %v896, %v896
      %v905 = vpack.c.b16 %v897, %v897
      %v906 = vpack.c.b16 %v898, %v898
      %v907 = vpack.c.b16 %v899, %v899
      %v908 = vpack.c.b16 %v900, %v900
      %v909 = vpack.c.b16 %v901, %v901
      %v910 = vpack.c.b16 %v902, %v902
      %vm919 = vcmask 101376
      %920 = vst.msk [vmem:[%s217] sm:$0xf] %vm919, %v903
      %921 = vst.msk [vmem:[%s217 + $0x4] sm:$0xf] %vm919, %v904
      %922 = vst.msk [vmem:[%s217 + $0x8] sm:$0xf] %vm919, %v905
      %923 = vst.msk [vmem:[%s217 + $0xc] sm:$0xf] %vm919, %v906
      %924 = vst.msk [vmem:[%s217 + $0x10] sm:$0xf] %vm919, %v907
      %925 = vst.msk [vmem:[%s217 + $0x14] sm:$0xf] %vm919, %v908
      %926 = vst.msk [vmem:[%s217 + $0x18] sm:$0xf] %vm919, %v909
      %927 = vst.msk [vmem:[%s217 + $0x1c] sm:$0xf] %vm919, %v910
      %p928 = scmp.lt.s32.totalorder %s15, 1
      %s929 = scalar_select %p928, %s15, 1
      %s930 = smul.addr %s929, 8
      %s931 = smul.addr %s930, 4
      %s932 = scalar_lea.vmem %s4, %s931
      // Predicated region
      $region37: #{cnn_classifier_forward.7} parent=35 // pred_check
        %p933 = pneg %p127
      $region38: #{cnn_classifier_forward.7} parent=35 // pred_check_branch
        %935 = sbr.rel (%p933) target = $region40
      $region39: #{cnn_classifier_forward.7} parent=35 // pred_region
        _
      $region40: #{cnn_classifier_forward.7} parent=35 // pred_fallthru
        _
    $region36: #{cnn_classifier_forward.7} parent=5 // pred_fallthru
      _
    %p936 = scmp.le.s32.totalorder 2, %s10
    // Predicated region
    $region41: #{cnn_classifier_forward.7} parent=5 // pred_check
      %p937 = pneg %p936
    $region42: #{cnn_classifier_forward.7} parent=5 // pred_check_branch
      %939 = sbr.rel (%p937) target = $region44
    $region43: #{cnn_classifier_forward.7} parent=5 // pred_region
      %s940 = ssub.s32 %s10, 2
      // Predicated region
      $region45: #{cnn_classifier_forward.7} parent=43 // pred_check
        %p941 = pneg %p133
      $region46: #{cnn_classifier_forward.7} parent=43 // pred_check_branch
        %943 = sbr.rel (%p941) target = $region48
      $region47: #{cnn_classifier_forward.7} parent=43 // pred_region
        %p944 = scmp.lt.s32.totalorder %s16, 1
        %s945 = scalar_select %p944, %s16, 1
        %s946 = smul.addr %s945, 8
        %s947 = smul.addr %s946, 4
        %s948 = scalar_lea.vmem %s4, %s947
      $region48: #{cnn_classifier_forward.7} parent=43 // pred_fallthru
        _
    $region44: #{cnn_classifier_forward.7} parent=5 // pred_fallthru
      _
  $region6: #{cnn_classifier_forward.7} parent=0 // loop_footer
    %s14 = sadd.s32 1, %s10
  $region7: #{cnn_classifier_forward.7} parent=0 // loop_footer_branch
    %9 = sbr.rel target = $region3
  $region8: #{cnn_classifier_forward.7} parent=0 // loop_exit
    _

// kernel: cnn_classifier_forward.8
$region0: #{cnn_classifier_forward.8}
  #allocation0 [shape = 'u32[]', space=smem, size = 0x4, offset = 0x4, fixed_abs, tag = 'smem constant byte address 0x4 - core index']
  #allocation1 [shape = 'u32[144,128]{1,0:T(1,128)}', space=vmem, size = 0x12000, scoped, tag = 'internal scratch']
  #allocation2 [shape = 'f32[2,128]{1,0:T(2,128)}', space=vmem, size = 0x400, scoped, tag = 'scratch operand']
  %s0 = inlined_call_operand.vmem [shape: bf16[2,1024], index: 0, kind: input, shape index: {}]
  %s1 = inlined_call_operand.vmem [shape: bf16[1024,128], index: 1, kind: input, shape index: {}]
  %s2 = inlined_call_operand.vmem [shape: f32[1,128], index: 2, kind: input, shape index: {}]
  %s3 = inlined_call_operand.vmem [shape: bf16[2,128], index: 3, kind: output, shape index: {}]
  %s4 = sld [smem:[#allocation0]]
  $region53: #{cnn_classifier_forward.8} parent=0
    _
  %s6 = ssub.s32 1, %s4
  %s7 = scalar_select 0, %s6, %s4
  loop: start=0, step=1, limit=4
  $region2: #{cnn_classifier_forward.8} parent=0 // loop_pre_header
    _
  $region3: #{cnn_classifier_forward.8} parent=0 // loop_header
    %s9 = sphi 0, %s13
    %p10 = scmp.ge.s32.totalorder %s9, 4
    %s16 = sphi 0, %s35
    %s17 = sphi 0, %s31
    %s18 = sphi 0, %s27
    %s19 = sphi 0, %s16
    %s20 = sphi 0, %s17
    %s21 = sphi 0, %s18
    %s22 = sphi 0, %s19
    %s23 = sphi 0, %s20
    %s24 = sphi 0, %s21
    %s40 = sphi 0, %s42
    %s43 = sphi 0, %s40
    %s44 = sphi 0, %s43
    %s60 = sphi 0, %s44
    %s68 = sphi 0, %s70
    %s71 = sphi 0, %s68
    %s72 = sphi 0, %s71
    %s88 = sphi 0, %s72
    %s94 = sphi 0, %s96
    %s97 = sphi 0, %s94
    %s98 = sphi 0, %s97
    %s114 = sphi 0, %s98
    %s122 = sphi 0, %s124
    %s125 = sphi 0, %s122
    %s126 = sphi 0, %s125
    %s142 = sphi 0, %s126
  $region4: #{cnn_classifier_forward.8} parent=0 // loop_header_branch
    %12 = sbr.rel (%p10) target = $region8
  $region5: #{cnn_classifier_forward.8} parent=0 // loop_body
    %s14 = ssub.s32 %s9, 1
    %s15 = ssub.s32 %s9, 2
    %s25 = sadd.s32 1, %s18
    %p26 = scmp.ge.s32.totalorder %s25, 2
    %s27 = scalar_select %p26, 0, %s25
    %s28 = sadd.s32 1, %s17
    %s29 = scalar_select %p26, %s28, %s17
    %p30 = scmp.ge.s32.totalorder %s29, 1
    %s31 = scalar_select %p30, 0, %s29
    %s32 = sadd.s32 1, %s16
    %s33 = scalar_select %p30, %s32, %s16
    %p34 = scmp.ge.s32.totalorder %s33, 1
    %s35 = scalar_select %p34, 0, %s33
    %s36 = ssub.s32 %s16, %s35
    %s37 = ssub.s32 %s18, %s27
    %s38 = sor.u32 %s36, %s37
    %p39 = scmp.eq.s32.totalorder %s38, 0
    %s41 = sadd.s32 %s40, 1
    %s42 = scalar_select %p39, %s40, %s41
    %p45 = pneg %p39
    %p46 = scmp.eq.s32.totalorder %s9, 1
    %p47 = por %p45, %p46
    %p48 = scmp.ne.s32.totalorder %s40, %s43
    %p49 = scmp.eq.s32.totalorder %s9, 0
    %p50 = por %p48, %p49
    %p51 = scmp.ne.s32.totalorder %s40, %s43
    %p52 = scmp.eq.s32.totalorder %s14, 1
    %p53 = por %p51, %p52
    %p54 = scmp.ne.s32.totalorder %s43, %s44
    %p55 = scmp.eq.s32.totalorder %s14, 0
    %p56 = por %p54, %p55
    %p57 = scmp.ne.s32.totalorder %s43, %s44
    %p58 = scmp.eq.s32.totalorder %s15, 1
    %p59 = por %p57, %p58
    %p61 = scmp.ne.s32.totalorder %s44, %s60
    %p62 = scmp.eq.s32.totalorder %s15, 0
    %p63 = por %p61, %p62
    %s64 = ssub.s32 %s18, %s27
    %s65 = ssub.s32 %s17, %s31
    %s66 = sor.u32 %s64, %s65
    %p67 = scmp.eq.s32.totalorder %s66, 0
    %s69 = sadd.s32 %s68, 1
    %s70 = scalar_select %p67, %s68, %s69
    %p73 = pneg %p67
    %p74 = scmp.eq.s32.totalorder %s9, 1
    %p75 = por %p73, %p74
    %p76 = scmp.ne.s32.totalorder %s68, %s71
    %p77 = scmp.eq.s32.totalorder %s9, 0
    %p78 = por %p76, %p77
    %p79 = scmp.ne.s32.totalorder %s68, %s71
    %p80 = scmp.eq.s32.totalorder %s14, 1
    %p81 = por %p79, %p80
    %p82 = scmp.ne.s32.totalorder %s71, %s72
    %p83 = scmp.eq.s32.totalorder %s14, 0
    %p84 = por %p82, %p83
    %p85 = scmp.ne.s32.totalorder %s71, %s72
    %p86 = scmp.eq.s32.totalorder %s15, 1
    %p87 = por %p85, %p86
    %p89 = scmp.ne.s32.totalorder %s72, %s88
    %p90 = scmp.eq.s32.totalorder %s15, 0
    %p91 = por %p89, %p90
    %s92 = ssub.s32 %s17, %s31
    %p93 = scmp.eq.s32.totalorder %s92, 0
    %s95 = sadd.s32 %s94, 1
    %s96 = scalar_select %p93, %s94, %s95
    %p99 = pneg %p93
    %p100 = scmp.eq.s32.totalorder %s9, 1
    %p101 = por %p99, %p100
    %p102 = scmp.ne.s32.totalorder %s94, %s97
    %p103 = scmp.eq.s32.totalorder %s9, 0
    %p104 = por %p102, %p103
    %p105 = scmp.ne.s32.totalorder %s94, %s97
    %p106 = scmp.eq.s32.totalorder %s14, 1
    %p107 = por %p105, %p106
    %p108 = scmp.ne.s32.totalorder %s97, %s98
    %p109 = scmp.eq.s32.totalorder %s14, 0
    %p110 = por %p108, %p109
    %p111 = scmp.ne.s32.totalorder %s97, %s98
    %p112 = scmp.eq.s32.totalorder %s15, 1
    %p113 = por %p111, %p112
    %p115 = scmp.ne.s32.totalorder %s98, %s114
    %p116 = scmp.eq.s32.totalorder %s15, 0
    %p117 = por %p115, %p116
    %s118 = ssub.s32 %s16, %s35
    %s119 = ssub.s32 %s17, %s31
    %s120 = sor.u32 %s118, %s119
    %p121 = scmp.eq.s32.totalorder %s120, 0
    %s123 = sadd.s32 %s122, 1
    %s124 = scalar_select %p121, %s122, %s123
    %p127 = pneg %p121
    %p128 = scmp.eq.s32.totalorder %s9, 1
    %p129 = por %p127, %p128
    %p130 = scmp.ne.s32.totalorder %s122, %s125
    %p131 = scmp.eq.s32.totalorder %s9, 0
    %p132 = por %p130, %p131
    %p133 = scmp.ne.s32.totalorder %s122, %s125
    %p134 = scmp.eq.s32.totalorder %s14, 1
    %p135 = por %p133, %p134
    %p136 = scmp.ne.s32.totalorder %s125, %s126
    %p137 = scmp.eq.s32.totalorder %s14, 0
    %p138 = por %p136, %p137
    %p139 = scmp.ne.s32.totalorder %s125, %s126
    %p140 = scmp.eq.s32.totalorder %s15, 1
    %p141 = por %p139, %p140
    %p143 = scmp.ne.s32.totalorder %s126, %s142
    %p144 = scmp.eq.s32.totalorder %s15, 0
    %p145 = por %p143, %p144
    %p146 = scmp.le.s32.totalorder 1, %s9
    %p147 = scmp.lt.s32.totalorder %s9, 3
    %p148 = pnand %p146, %p147
    %p149 = pneg %p148
    // Predicated region
    $region9: #{cnn_classifier_forward.8} parent=5 // pred_check
      _
    $region10: #{cnn_classifier_forward.8} parent=5 // pred_check_branch
      %151 = sbr.rel (%p148) target = $region12
    $region11: #{cnn_classifier_forward.8} parent=5 // pred_region
      %s152 = ssub.s32 %s9, 1
      // Predicated region
      $region13: #{cnn_classifier_forward.8} parent=11 // pred_check
        %p153 = pneg %p110
      $region14: #{cnn_classifier_forward.8} parent=11 // pred_check_branch
        %155 = sbr.rel (%p153) target = $region16
      $region15: #{cnn_classifier_forward.8} parent=11 // pred_region
        %p156 = scmp.lt.s32.totalorder %s20, 0
        %s157 = scalar_select %p156, %s20, 0
        %s158 = scalar_lea.vmem %s2, %s157
      $region16: #{cnn_classifier_forward.8} parent=11 // pred_fallthru
        _
    $region12: #{cnn_classifier_forward.8} parent=5 // pred_fallthru
      _
    %p159 = scmp.lt.s32.totalorder %s9, 2
    // Predicated region
    $region17: #{cnn_classifier_forward.8} parent=5 // pred_check
      %p160 = pneg %p159
    $region18: #{cnn_classifier_forward.8} parent=5 // pred_check_branch
      %162 = sbr.rel (%p160) target = $region20
    $region19: #{cnn_classifier_forward.8} parent=5 // pred_region
      // Predicated region
      $region21: #{cnn_classifier_forward.8} parent=19 // pred_check
        %p163 = pneg %p50
      $region22: #{cnn_classifier_forward.8} parent=19 // pred_check_branch
        %165 = sbr.rel (%p163) target = $region24
      $region23: #{cnn_classifier_forward.8} parent=19 // pred_region
        %s166 = smul.u32 4, %s18
        %p167 = scmp.lt.s32.totalorder %s16, 0
        %s168 = scalar_select %p167, %s16, 0
        %p169 = scmp.lt.s32.totalorder %s166, 7
        %s170 = scalar_select %p169, %s166, 7
        %s171 = smul.addr %s168, 8
        %s172 = sadd.s32 %s170, %s171
        %s173 = scalar_lea.vmem %s0, %s172
        %s174 = smul.u32 4, %s18
      $region24: #{cnn_classifier_forward.8} parent=19 // pred_fallthru
        _
      // Predicated region
      $region25: #{cnn_classifier_forward.8} parent=19 // pred_check
        %p175 = pneg %p78
      $region26: #{cnn_classifier_forward.8} parent=19 // pred_check_branch
        %177 = sbr.rel (%p175) target = $region28
      $region27: #{cnn_classifier_forward.8} parent=19 // pred_region
        %s178 = smul.u32 64, %s18
        %p179 = scmp.lt.s32.totalorder %s178, 127
        %s180 = scalar_select %p179, %s178, 127
        %p181 = scmp.lt.s32.totalorder %s17, 0
        %s182 = scalar_select %p181, %s17, 0
        %s183 = sadd.s32 %s182, %s180
        %s184 = smul.addr %s183, 4
        %s185 = scalar_lea.vmem %s1, %s184
        %s186 = smul.u32 64, %s18
      $region28: #{cnn_classifier_forward.8} parent=19 // pred_fallthru
        _
    $region20: #{cnn_classifier_forward.8} parent=5 // pred_fallthru
      _
    %p187 = scmp.le.s32.totalorder 1, %s9
    %p188 = scmp.lt.s32.totalorder %s9, 3
    %p189 = pnand %p187, %p188
    %p190 = pneg %p189
    // Predicated region
    $region29: #{cnn_classifier_forward.8} parent=5 // pred_check
      _
    $region30: #{cnn_classifier_forward.8} parent=5 // pred_check_branch
      %192 = sbr.rel (%p189) target = $region32
    $region31: #{cnn_classifier_forward.8} parent=5 // pred_region
      %s193 = ssub.s32 %s9, 1
      %s194 = smul.u32 4, %s21
      %p195 = scmp.lt.s32.totalorder %s19, 0
      %s196 = scalar_select %p195, %s19, 0
      %p197 = scmp.lt.s32.totalorder %s194, 7
      %s198 = scalar_select %p197, %s194, 7
      %s199 = smul.addr %s196, 8
      %s200 = sadd.s32 %s198, %s199
      %s201 = scalar_lea.vmem %s0, %s200
      %p202 = pneg %p56
      %p203 = pneg %p53
      %s204 = smul.u32 64, %s21
      %p205 = scmp.lt.s32.totalorder %s204, 127
      %s206 = scalar_select %p205, %s204, 127
      %p207 = scmp.lt.s32.totalorder %s20, 0
      %s208 = scalar_select %p207, %s20, 0
      %s209 = sadd.s32 %s208, %s206
      %s210 = smul.addr %s209, 4
      %s211 = scalar_lea.vmem %s1, %s210
      %p212 = pneg %p84
      %p213 = pneg %p81
      %p214 = scmp.lt.s32.totalorder %s20, 0
      %s215 = scalar_select %p214, %s20, 0
      %s216 = scalar_lea.vmem %s2, %s215
      %p217 = pneg %p110
      %p218 = pneg %p107
      %p219 = pneg %p138
      %p220 = pneg %p135
      %p221 = scmp.lt.s32.totalorder %s19, 0
      %s222 = scalar_select %p221, %s19, 0
      %p223 = scmp.lt.s32.totalorder %s20, 0
      %s224 = scalar_select %p223, %s20, 0
      %s225 = sadd.s32 %s224, %s222
      %s226 = scalar_lea.vmem %s3, %s225
      %s227 = smul.u32 4, %s21
      %p228 = scmp.lt.s32.totalorder %s19, 0
      %s229 = scalar_select %p228, %s19, 0
      %p230 = scmp.lt.s32.totalorder %s227, 7
      %s231 = scalar_select %p230, %s227, 7
      %s232 = smul.addr %s229, 8
      %s233 = sadd.s32 %s231, %s232
      %s234 = scalar_lea.vmem %s0, %s233
      %s235 = smul.u32 4, %s21
      %s236 = smul.u32 64, %s21
      %p237 = scmp.lt.s32.totalorder %s236, 127
      %s238 = scalar_select %p237, %s236, 127
      %p239 = scmp.lt.s32.totalorder %s20, 0
      %s240 = scalar_select %p239, %s20, 0
      %s241 = sadd.s32 %s240, %s238
      %s242 = smul.addr %s241, 4
      %s243 = scalar_lea.vmem %s1, %s242
      %s244 = smul.u32 64, %s21
      %p245 = scmp.lt.s32.totalorder %s20, 0
      %s246 = scalar_select %p245, %s20, 0
      %s247 = scalar_lea.vmem %s2, %s246
      %p248 = scmp.lt.s32.totalorder %s19, 0
      %s249 = scalar_select %p248, %s19, 0
      %p250 = scmp.lt.s32.totalorder %s20, 0
      %s251 = scalar_select %p250, %s20, 0
      %s252 = sadd.s32 %s251, %s249
      %s253 = scalar_lea.vmem %s3, %s252
      %p255 = scmp.eq.s32.totalorder %s21, 0
      // Predicated region
      $region33: #{cnn_classifier_forward.8} parent=31 // pred_check
        %p256 = pneg %p255
      $region34: #{cnn_classifier_forward.8} parent=31 // pred_check_branch
        %258 = sbr.rel (%p256) target = $region36
      $region35: #{cnn_classifier_forward.8} parent=31 // pred_region
        %259 = vst [vmem:[#allocation2] sm:$0x3] 0.0
      $region36: #{cnn_classifier_forward.8} parent=31 // pred_fallthru
        _
      %v260 = vld [vmem:[#allocation2] sm:$0x3]
      %v261 = vld [vmem:[%s234] sm:$0xf]
      %v262 = vld [vmem:[%s243] sm:$0xf]
      %v263 = vld [vmem:[%s243 + $0x4] sm:$0xf]
      %v264 = vld [vmem:[%s243 + $0x8] sm:$0xf]
      %v265 = vld [vmem:[%s243 + $0xc] sm:$0xf]
      %v266 = vld [vmem:[%s243 + $0x10] sm:$0xf]
      %v267 = vld [vmem:[%s243 + $0x14] sm:$0xf]
      %v268 = vld [vmem:[%s243 + $0x18] sm:$0xf]
      %v269 = vld [vmem:[%s243 + $0x1c] sm:$0xf]
      %v270 = vld [vmem:[%s243 + $0x20] sm:$0xf]
      %v271 = vld [vmem:[%s243 + $0x24] sm:$0xf]
      %v272 = vld [vmem:[%s243 + $0x28] sm:$0xf]
      %v273 = vld [vmem:[%s243 + $0x2c] sm:$0xf]
      %v274 = vld [vmem:[%s243 + $0x30] sm:$0xf]
      %v275 = vld [vmem:[%s243 + $0x34] sm:$0xf]
      %v276 = vld [vmem:[%s243 + $0x38] sm:$0xf]
      %v277 = vld [vmem:[%s243 + $0x3c] sm:$0xf]
      %v278 = vld [vmem:[%s243 + $0x40] sm:$0xf]
      %v279 = vld [vmem:[%s243 + $0x44] sm:$0xf]
      %v280 = vld [vmem:[%s243 + $0x48] sm:$0xf]
      %v281 = vld [vmem:[%s243 + $0x4c] sm:$0xf]
      %v282 = vld [vmem:[%s243 + $0x50] sm:$0xf]
      %v283 = vld [vmem:[%s243 + $0x54] sm:$0xf]
      %v284 = vld [vmem:[%s243 + $0x58] sm:$0xf]
      %v285 = vld [vmem:[%s243 + $0x5c] sm:$0xf]
      %v286 = vld [vmem:[%s243 + $0x60] sm:$0xf]
      %v287 = vld [vmem:[%s243 + $0x64] sm:$0xf]
      %v288 = vld [vmem:[%s243 + $0x68] sm:$0xf]
      %v289 = vld [vmem:[%s243 + $0x6c] sm:$0xf]
      %v290 = vld [vmem:[%s243 + $0x70] sm:$0xf]
      %v291 = vld [vmem:[%s243 + $0x74] sm:$0xf]
      %v292 = vld [vmem:[%s243 + $0x78] sm:$0xf]
      %v293 = vld [vmem:[%s243 + $0x7c] sm:$0xf]
      %v294 = vld [vmem:[%s243 + $0x80] sm:$0xf]
      %v295 = vld [vmem:[%s243 + $0x84] sm:$0xf]
      %v296 = vld [vmem:[%s243 + $0x88] sm:$0xf]
      %v297 = vld [vmem:[%s243 + $0x8c] sm:$0xf]
      %v298 = vld [vmem:[%s243 + $0x90] sm:$0xf]
      %v299 = vld [vmem:[%s243 + $0x94] sm:$0xf]
      %v300 = vld [vmem:[%s243 + $0x98] sm:$0xf]
      %v301 = vld [vmem:[%s243 + $0x9c] sm:$0xf]
      %v302 = vld [vmem:[%s243 + $0xa0] sm:$0xf]
      %v303 = vld [vmem:[%s243 + $0xa4] sm:$0xf]
      %v304 = vld [vmem:[%s243 + $0xa8] sm:$0xf]
      %v305 = vld [vmem:[%s243 + $0xac] sm:$0xf]
      %v306 = vld [vmem:[%s243 + $0xb0] sm:$0xf]
      %v307 = vld [vmem:[%s243 + $0xb4] sm:$0xf]
      %v308 = vld [vmem:[%s243 + $0xb8] sm:$0xf]
      %v309 = vld [vmem:[%s243 + $0xbc] sm:$0xf]
      %v310 = vld [vmem:[%s243 + $0xc0] sm:$0xf]
      %v311 = vld [vmem:[%s243 + $0xc4] sm:$0xf]
      %v312 = vld [vmem:[%s243 + $0xc8] sm:$0xf]
      %v313 = vld [vmem:[%s243 + $0xcc] sm:$0xf]
      %v314 = vld [vmem:[%s243 + $0xd0] sm:$0xf]
      %v315 = vld [vmem:[%s243 + $0xd4] sm:$0xf]
      %v316 = vld [vmem:[%s243 + $0xd8] sm:$0xf]
      %v317 = vld [vmem:[%s243 + $0xdc] sm:$0xf]
      %v318 = vld [vmem:[%s243 + $0xe0] sm:$0xf]
      %v319 = vld [vmem:[%s243 + $0xe4] sm:$0xf]
      %v320 = vld [vmem:[%s243 + $0xe8] sm:$0xf]
      %v321 = vld [vmem:[%s243 + $0xec] sm:$0xf]
      %v322 = vld [vmem:[%s243 + $0xf0] sm:$0xf]
      %v323 = vld [vmem:[%s243 + $0xf4] sm:$0xf]
      %v324 = vld [vmem:[%s243 + $0xf8] sm:$0xf]
      %v325 = vld [vmem:[%s243 + $0xfc] sm:$0xf]
      %v328 = vunpack.c.l.s4 1966171168
      %v329 = vunpack.c.0.s8 %v328
      %v330 = vlaneseq
      %v331 = vshrl.u32 %v330, 7
      %v332 = vsub.s32 %v329, %v331
      %v333 = vrot.slane %v261, %v332
      %v334 = vcombine.high %v333, %v333
      %v336 = vunpack.c.l.s4 1966171168
      %v337 = vunpack.c.0.s8 %v336
      %v338 = vlaneseq
      %v339 = vshrl.u32 %v338, 7
      %v340 = vsub.s32 %v337, %v339
      %v341 = vrot.slane %v333, %v340
      %v343 = vunpack.c.l.s4 1966171168
      %v344 = vunpack.c.0.s8 %v343
      %v345 = vlaneseq
      %v346 = vshrl.u32 %v345, 7
      %v347 = vsub.s32 %v344, %v346
      %v348 = vrot.slane %v334, %v347
      %v349 = vcombine.high %v341, %v341
      %v350 = vcombine.high %v348, %v348
      %v419 = vunpack.c.l.b16 %v262
      %v420 = vunpack.c.l.b16 %v263
      %v421 = vunpack.c.l.b16 %v264
      %v422 = vunpack.c.l.b16 %v265
      %v423 = vunpack.c.l.b16 %v266
      %v424 = vunpack.c.l.b16 %v267
      %v425 = vunpack.c.l.b16 %v268
      %v426 = vunpack.c.l.b16 %v269
      %v427 = vunpack.c.l.b16 %v270
      %v428 = vunpack.c.l.b16 %v271
      %v429 = vunpack.c.l.b16 %v272
      %v430 = vunpack.c.l.b16 %v273
      %v431 = vunpack.c.l.b16 %v274
      %v432 = vunpack.c.l.b16 %v275
      %v433 = vunpack.c.l.b16 %v276
      %v434 = vunpack.c.l.b16 %v277
      %v435 = vunpack.c.l.b16 %v278
      %v436 = vunpack.c.l.b16 %v279
      %v437 = vunpack.c.l.b16 %v280
      %v438 = vunpack.c.l.b16 %v281
      %v439 = vunpack.c.l.b16 %v282
      %v440 = vunpack.c.l.b16 %v283
      %v441 = vunpack.c.l.b16 %v284
      %v442 = vunpack.c.l.b16 %v285
      %v443 = vunpack.c.l.b16 %v286
      %v444 = vunpack.c.l.b16 %v287
      %v445 = vunpack.c.l.b16 %v288
      %v446 = vunpack.c.l.b16 %v289
      %v447 = vunpack.c.l.b16 %v290
      %v448 = vunpack.c.l.b16 %v291
      %v449 = vunpack.c.l.b16 %v292
      %v450 = vunpack.c.l.b16 %v293
      %v451 = vunpack.c.l.b16 %v294
      %v452 = vunpack.c.l.b16 %v295
      %v453 = vunpack.c.l.b16 %v296
      %v454 = vunpack.c.l.b16 %v297
      %v455 = vunpack.c.l.b16 %v298
      %v456 = vunpack.c.l.b16 %v299
      %v457 = vunpack.c.l.b16 %v300
      %v458 = vunpack.c.l.b16 %v301
      %v459 = vunpack.c.l.b16 %v302
      %v460 = vunpack.c.l.b16 %v303
      %v461 = vunpack.c.l.b16 %v304
      %v462 = vunpack.c.l.b16 %v305
      %v463 = vunpack.c.l.b16 %v306
      %v464 = vunpack.c.l.b16 %v307
      %v465 = vunpack.c.l.b16 %v308
      %v466 = vunpack.c.l.b16 %v309
      %v467 = vunpack.c.l.b16 %v310
      %v468 = vunpack.c.l.b16 %v311
      %v469 = vunpack.c.l.b16 %v312
      %v470 = vunpack.c.l.b16 %v313
      %v471 = vunpack.c.l.b16 %v314
      %v472 = vunpack.c.l.b16 %v315
      %v473 = vunpack.c.l.b16 %v316
      %v474 = vunpack.c.l.b16 %v317
      %v475 = vunpack.c.l.b16 %v318
      %v476 = vunpack.c.l.b16 %v319
      %v477 = vunpack.c.l.b16 %v320
      %v478 = vunpack.c.l.b16 %v321
      %v479 = vunpack.c.l.b16 %v322
      %v480 = vunpack.c.l.b16 %v323
      %v481 = vunpack.c.l.b16 %v324
      %v482 = vunpack.c.l.b16 %v325
      %v483 = vpack.c.b16 %v420, %v419
      %v484 = vpack.c.b16 %v422, %v421
      %v485 = vpack.c.b16 %v424, %v423
      %v486 = vpack.c.b16 %v426, %v425
      %v487 = vpack.c.b16 %v428, %v427
      %v488 = vpack.c.b16 %v430, %v429
      %v489 = vpack.c.b16 %v432, %v431
      %v490 = vpack.c.b16 %v434, %v433
      %v491 = vpack.c.b16 %v436, %v435
      %v492 = vpack.c.b16 %v438, %v437
      %v493 = vpack.c.b16 %v440, %v439
      %v494 = vpack.c.b16 %v442, %v441
      %v495 = vpack.c.b16 %v444, %v443
      %v496 = vpack.c.b16 %v446, %v445
      %v497 = vpack.c.b16 %v448, %v447
      %v498 = vpack.c.b16 %v450, %v449
      %v499 = vpack.c.b16 %v452, %v451
      %v500 = vpack.c.b16 %v454, %v453
      %v501 = vpack.c.b16 %v456, %v455
      %v502 = vpack.c.b16 %v458, %v457
      %v503 = vpack.c.b16 %v460, %v459
      %v504 = vpack.c.b16 %v462, %v461
      %v505 = vpack.c.b16 %v464, %v463
      %v506 = vpack.c.b16 %v466, %v465
      %v507 = vpack.c.b16 %v468, %v467
      %v508 = vpack.c.b16 %v470, %v469
      %v509 = vpack.c.b16 %v472, %v471
      %v510 = vpack.c.b16 %v474, %v473
      %v511 = vpack.c.b16 %v476, %v475
      %v512 = vpack.c.b16 %v478, %v477
      %v513 = vpack.c.b16 %v480, %v479
      %v514 = vpack.c.b16 %v482, %v481
      %547 = vmatprep.subr.bf16.mxu0 0
      %548 = vmatpush1.bf16.msra.mxu0 %v483
      %549 = vmatprep.subr.bf16.mxu0 0
      %550 = vmatpush1.bf16.msra.mxu0 %v484
      %551 = vmatprep.subr.bf16.mxu0 0
      %552 = vmatpush1.bf16.msra.mxu0 %v485
      %553 = vmatprep.subr.bf16.mxu0 0
      %554 = vmatpush1.bf16.msra.mxu0 %v486
      %555 = vmatprep.subr.bf16.mxu0 0
      %556 = vmatpush1.bf16.msra.mxu0 %v487
      %557 = vmatprep.subr.bf16.mxu0 0
      %558 = vmatpush1.bf16.msra.mxu0 %v488
      %559 = vmatprep.subr.bf16.mxu0 0
      %560 = vmatpush1.bf16.msra.mxu0 %v489
      %561 = vmatprep.subr.bf16.mxu0 0
      %562 = vmatpush1.bf16.msra.mxu0 %v490
      %563 = vmatprep.subr.bf16.mxu0 0
      %564 = vmatpush1.bf16.msra.mxu0 %v491
      %565 = vmatprep.subr.bf16.mxu0 0
      %566 = vmatpush1.bf16.msra.mxu0 %v492
      %567 = vmatprep.subr.bf16.mxu0 0
      %568 = vmatpush1.bf16.msra.mxu0 %v493
      %569 = vmatprep.subr.bf16.mxu0 0
      %570 = vmatpush1.bf16.msra.mxu0 %v494
      %571 = vmatprep.subr.bf16.mxu0 0
      %572 = vmatpush1.bf16.msra.mxu0 %v495
      %573 = vmatprep.subr.bf16.mxu0 0
      %574 = vmatpush1.bf16.msra.mxu0 %v496
      %575 = vmatprep.subr.bf16.mxu0 0
      %576 = vmatpush1.bf16.msra.mxu0 %v497
      %577 = vmatprep.subr.bf16.mxu0 0
      %578 = vmatpush1.bf16.msra.mxu0 %v498
      %579 = vmatprep.mubr.bf16.mxu0 %v348
      %580 = vmatmul.mubr.bf16.gmra.mrb[0].mxu0 %v341
      %v581 = vpop.f32.mrb[0].mxu0
      %v582 = vadd.f32 0.0, %v581
      %v583 = vpop.f32.mrb[0].mxu0
      %v584 = vpop.f32.mrb[0].mxu0
      %v585 = vpop.f32.mrb[0].mxu0
      %586 = vdwg.mxu0
      %587 = vmatprep.subr.bf16.mxu0 0
      %588 = vmatpush1.bf16.msra.mxu0 %v499
      %589 = vmatprep.subr.bf16.mxu0 0
      %590 = vmatpush1.bf16.msra.mxu0 %v500
      %591 = vmatprep.subr.bf16.mxu0 0
      %592 = vmatpush1.bf16.msra.mxu0 %v501
      %593 = vmatprep.subr.bf16.mxu0 0
      %594 = vmatpush1.bf16.msra.mxu0 %v502
      %595 = vmatprep.subr.bf16.mxu0 0
      %596 = vmatpush1.bf16.msra.mxu0 %v503
      %597 = vmatprep.subr.bf16.mxu0 0
      %598 = vmatpush1.bf16.msra.mxu0 %v504
      %599 = vmatprep.subr.bf16.mxu0 0
      %600 = vmatpush1.bf16.msra.mxu0 %v505
      %601 = vmatprep.subr.bf16.mxu0 0
      %602 = vmatpush1.bf16.msra.mxu0 %v506
      %603 = vmatprep.subr.bf16.mxu0 0
      %604 = vmatpush1.bf16.msra.mxu0 %v507
      %605 = vmatprep.subr.bf16.mxu0 0
      %606 = vmatpush1.bf16.msra.mxu0 %v508
      %607 = vmatprep.subr.bf16.mxu0 0
      %608 = vmatpush1.bf16.msra.mxu0 %v509
      %609 = vmatprep.subr.bf16.mxu0 0
      %610 = vmatpush1.bf16.msra.mxu0 %v510
      %611 = vmatprep.subr.bf16.mxu0 0
      %612 = vmatpush1.bf16.msra.mxu0 %v511
      %613 = vmatprep.subr.bf16.mxu0 0
      %614 = vmatpush1.bf16.msra.mxu0 %v512
      %615 = vmatprep.subr.bf16.mxu0 0
      %616 = vmatpush1.bf16.msra.mxu0 %v513
      %617 = vmatprep.subr.bf16.mxu0 0
      %618 = vmatpush1.bf16.msra.mxu0 %v514
      %619 = vmatprep.mubr.bf16.mxu0 %v350
      %620 = vmatmul.mubr.bf16.gmra.mrb[0].mxu0 %v349
      %v621 = vpop.f32.mrb[0].mxu0
      %v622 = vadd.f32 %v582, %v621
      %v623 = vpop.f32.mrb[0].mxu0
      %v624 = vpop.f32.mrb[0].mxu0
      %v625 = vpop.f32.mrb[0].mxu0
      %626 = vdwg.mxu0
      %v627 = vadd.f32 %v260, %v622
      %628 = vst [vmem:[#allocation2] sm:$0x3] %v627
      %p629 = scmp.eq.s32.totalorder %s21, 1
      // Predicated region
      $region37: #{cnn_classifier_forward.8} parent=31 // pred_check
        %p630 = pneg %p629
      $region38: #{cnn_classifier_forward.8} parent=31 // pred_check_branch
        %632 = sbr.rel (%p630) target = $region40
      $region39: #{cnn_classifier_forward.8} parent=31 // pred_region
        %v633 = vld [vmem:[#allocation2] sm:$0x3]
        %v634 = vld [vmem:[%s247] sm:$0x1]
        %v636 = vlaneseq
        %v637 = vshrl.u32 %v636, 7
        %v638 = vsub.s32 0, %v637
        %v639 = vrot.slane %v634, %v638
        %v641 = vadd.f32 %v633, %v639
        %v642 = vmax.f32 %v641, 0.0
        %v643 = vpack.c.bf16 %v642, %v642
        %644 = vst [vmem:[%s253] sm:$0x1] %v643
      $region40: #{cnn_classifier_forward.8} parent=31 // pred_fallthru
        _
      %p645 = scmp.lt.s32.totalorder %s19, 0
      %s646 = scalar_select %p645, %s19, 0
      %p647 = scmp.lt.s32.totalorder %s20, 0
      %s648 = scalar_select %p647, %s20, 0
      %s649 = sadd.s32 %s648, %s646
      %s650 = scalar_lea.vmem %s3, %s649
      // Predicated region
      $region41: #{cnn_classifier_forward.8} parent=31 // pred_check
        %p651 = pneg %p135
      $region42: #{cnn_classifier_forward.8} parent=31 // pred_check_branch
        %653 = sbr.rel (%p651) target = $region44
      $region43: #{cnn_classifier_forward.8} parent=31 // pred_region
        _
      $region44: #{cnn_classifier_forward.8} parent=31 // pred_fallthru
        _
      // Predicated region
      $region45: #{cnn_classifier_forward.8} parent=31 // pred_check
        %p654 = pneg %p135
      $region46: #{cnn_classifier_forward.8} parent=31 // pred_check_branch
        %656 = sbr.rel (%p654) target = $region48
      $region47: #{cnn_classifier_forward.8} parent=31 // pred_region
        %p657 = scmp.lt.s32.totalorder %s19, 0
        %s658 = scalar_select %p657, %s19, 0
        %p659 = scmp.lt.s32.totalorder %s20, 0
        %s660 = scalar_select %p659, %s20, 0
        %s661 = sadd.s32 %s660, %s658
        %s662 = scalar_lea.vmem %s3, %s661
      $region48: #{cnn_classifier_forward.8} parent=31 // pred_fallthru
        _
    $region32: #{cnn_classifier_forward.8} parent=5 // pred_fallthru
      _
    %p663 = scmp.le.s32.totalorder 2, %s9
    // Predicated region
    $region49: #{cnn_classifier_forward.8} parent=5 // pred_check
      %p664 = pneg %p663
    $region50: #{cnn_classifier_forward.8} parent=5 // pred_check_branch
      %666 = sbr.rel (%p664) target = $region52
    $region51: #{cnn_classifier_forward.8} parent=5 // pred_region
      %s667 = ssub.s32 %s9, 2
    $region52: #{cnn_classifier_forward.8} parent=5 // pred_fallthru
      _
  $region6: #{cnn_classifier_forward.8} parent=0 // loop_footer
    %s13 = sadd.s32 1, %s9
  $region7: #{cnn_classifier_forward.8} parent=0 // loop_footer_branch
    %8 = sbr.rel target = $region3
  $region8: #{cnn_classifier_forward.8} parent=0 // loop_exit
    _

// kernel: cnn_classifier_forward.9
$region0: #{cnn_classifier_forward.9}
  #allocation0 [shape = 'u32[]', space=smem, size = 0x4, offset = 0x4, fixed_abs, tag = 'smem constant byte address 0x4 - core index']
  #allocation1 [shape = 'u32[144,128]{1,0:T(1,128)}', space=vmem, size = 0x12000, scoped, tag = 'internal scratch']
  #allocation2 [shape = 'f32[2,3]{1,0:T(2,128)}', space=vmem, size = 0x400, scoped, tag = 'scratch operand']
  %s0 = inlined_call_operand.vmem [shape: bf16[2,128], index: 0, kind: input, shape index: {}]
  %s1 = inlined_call_operand.vmem [shape: bf16[128,3], index: 1, kind: input, shape index: {}]
  %s2 = inlined_call_operand.vmem [shape: f32[1,3], index: 2, kind: input, shape index: {}]
  %s3 = inlined_call_operand.hbm [shape: f32[2,3], index: 3, kind: output, shape index: {}]
  %s4 = sld [smem:[#allocation0]]
  $region30: #{cnn_classifier_forward.9} parent=0
    _
  %s6 = ssub.s32 1, %s4
  %s7 = scalar_select 0, %s6, %s4
  $region1: #{cnn_classifier_forward.9} parent=0
    #allocation3 [shape = 'u8[1024]{0}', space=vmem, size = 0x400, scoped, tag = 'output window, operand 0, single buffered']
    #allocation4 [shape = 's32[1]{0}', space=sflag, size = 0x4, scoped, tag = 'scoped memory for cnn_classifier_forward.9']
    %8 = vsyncpa [#allocation4], 0
    // Predicated region
    $region2: #{cnn_classifier_forward.9} parent=1 // pred_check
      _
    $region3: #{cnn_classifier_forward.9} parent=1 // pred_check_branch
      %10 = sbr.rel (0) target = $region5
    $region4: #{cnn_classifier_forward.9} parent=1 // pred_region
      _
    $region5: #{cnn_classifier_forward.9} parent=1 // pred_fallthru
      _
    // Predicated region
    $region6: #{cnn_classifier_forward.9} parent=1 // pred_check
      _
    $region7: #{cnn_classifier_forward.9} parent=1 // pred_check_branch
      %12 = sbr.rel (0) target = $region9
    $region8: #{cnn_classifier_forward.9} parent=1 // pred_region
      _
    $region9: #{cnn_classifier_forward.9} parent=1 // pred_fallthru
      _
    // Predicated region
    $region10: #{cnn_classifier_forward.9} parent=1 // pred_check
      _
    $region11: #{cnn_classifier_forward.9} parent=1 // pred_check_branch
      %14 = sbr.rel (0) target = $region13
    $region12: #{cnn_classifier_forward.9} parent=1 // pred_region
      _
    $region13: #{cnn_classifier_forward.9} parent=1 // pred_fallthru
      _
    %p16 = scmp.eq.s32.totalorder 0, 0
    // Predicated region
    $region14: #{cnn_classifier_forward.9} parent=1 // pred_check
      %p17 = pneg %p16
    $region15: #{cnn_classifier_forward.9} parent=1 // pred_check_branch
      %19 = sbr.rel (%p17) target = $region17
    $region16: #{cnn_classifier_forward.9} parent=1 // pred_region
      %vm20 = vcmask 17408
      %21 = vst.msk [vmem:[#allocation2] sm:$0x3] %vm20, 0.0
    $region17: #{cnn_classifier_forward.9} parent=1 // pred_fallthru
      _
    %v22 = vld [vmem:[#allocation2] sm:$0x3]
    %v23 = vld [vmem:[%s0] sm:$0x1]
    %v24 = vld [vmem:[%s1] sm:$0xf]
    %v25 = vld [vmem:[%s1 + $0x4] sm:$0xf]
    %v26 = vld [vmem:[%s1 + $0x8] sm:$0xf]
    %v27 = vld [vmem:[%s1 + $0xc] sm:$0xf]
    %v28 = vld [vmem:[%s1 + $0x10] sm:$0xf]
    %v29 = vld [vmem:[%s1 + $0x14] sm:$0xf]
    %v30 = vld [vmem:[%s1 + $0x18] sm:$0xf]
    %v31 = vld [vmem:[%s1 + $0x1c] sm:$0xf]
    %v32 = vld [vmem:[%s1 + $0x20] sm:$0xf]
    %v33 = vld [vmem:[%s1 + $0x24] sm:$0xf]
    %v34 = vld [vmem:[%s1 + $0x28] sm:$0xf]
    %v35 = vld [vmem:[%s1 + $0x2c] sm:$0xf]
    %v36 = vld [vmem:[%s1 + $0x30] sm:$0xf]
    %v37 = vld [vmem:[%s1 + $0x34] sm:$0xf]
    %v38 = vld [vmem:[%s1 + $0x38] sm:$0xf]
    %v39 = vld [vmem:[%s1 + $0x3c] sm:$0xf]
    %v56 = vunpack.c.l.b16 %v24
    %v57 = vunpack.c.l.b16 %v25
    %v58 = vunpack.c.l.b16 %v26
    %v59 = vunpack.c.l.b16 %v27
    %v60 = vunpack.c.l.b16 %v28
    %v61 = vunpack.c.l.b16 %v29
    %v62 = vunpack.c.l.b16 %v30
    %v63 = vunpack.c.l.b16 %v31
    %v64 = vunpack.c.l.b16 %v32
    %v65 = vunpack.c.l.b16 %v33
    %v66 = vunpack.c.l.b16 %v34
    %v67 = vunpack.c.l.b16 %v35
    %v68 = vunpack.c.l.b16 %v36
    %v69 = vunpack.c.l.b16 %v37
    %v70 = vunpack.c.l.b16 %v38
    %v71 = vunpack.c.l.b16 %v39
    %v72 = vpack.c.b16 %v57, %v56
    %v73 = vpack.c.b16 %v59, %v58
    %v74 = vpack.c.b16 %v61, %v60
    %v75 = vpack.c.b16 %v63, %v62
    %v76 = vpack.c.b16 %v65, %v64
    %v77 = vpack.c.b16 %v67, %v66
    %v78 = vpack.c.b16 %v69, %v68
    %v79 = vpack.c.b16 %v71, %v70
    %88 = vmatprep.subr.bf16.mxu0 0
    %89 = vmatpush1.bf16.msra.mxu0 %v72
    %90 = vmatprep.subr.bf16.mxu0 0
    %91 = vmatpush1.bf16.msra.mxu0 %v73
    %92 = vmatprep.subr.bf16.mxu0 0
    %93 = vmatpush1.bf16.msra.mxu0 %v74
    %94 = vmatprep.subr.bf16.mxu0 0
    %95 = vmatpush1.bf16.msra.mxu0 %v75
    %96 = vmatprep.subr.bf16.mxu0 0
    %97 = vmatpush1.bf16.msra.mxu0 %v76
    %98 = vmatprep.subr.bf16.mxu0 0
    %99 = vmatpush1.bf16.msra.mxu0 %v77
    %100 = vmatprep.subr.bf16.mxu0 0
    %101 = vmatpush1.bf16.msra.mxu0 %v78
    %102 = vmatprep.subr.bf16.mxu0 0
    %103 = vmatpush1.bf16.msra.mxu0 %v79
    %104 = vmatprep.subr.bf16.mxu0 0
    %105 = vmatpush1.bf16.msra.mxu0 0
    %106 = vmatprep.subr.bf16.mxu0 0
    %107 = vmatpush1.bf16.msra.mxu0 0
    %108 = vmatprep.subr.bf16.mxu0 0
    %109 = vmatpush1.bf16.msra.mxu0 0
    %110 = vmatprep.subr.bf16.mxu0 0
    %111 = vmatpush1.bf16.msra.mxu0 0
    %112 = vmatprep.subr.bf16.mxu0 0
    %113 = vmatpush1.bf16.msra.mxu0 0
    %114 = vmatprep.subr.bf16.mxu0 0
    %115 = vmatpush1.bf16.msra.mxu0 0
    %116 = vmatprep.subr.bf16.mxu0 0
    %117 = vmatpush1.bf16.msra.mxu0 0
    %118 = vmatprep.subr.bf16.mxu0 0
    %119 = vmatpush1.bf16.msra.mxu0 0
    %120 = vmatprep.mubr.bf16.mxu0 0
    %121 = vmatmul.mubr.bf16.gmra.mrb[0].mxu0 %v23
    %v122 = vpop.f32.mrb[0].mxu0
    %v123 = vadd.f32 0.0, %v122
    %v124 = vpop.f32.mrb[0].mxu0
    %v125 = vpop.f32.mrb[0].mxu0
    %v126 = vpop.f32.mrb[0].mxu0
    %127 = vdwg.mxu0
    %v128 = vadd.f32 %v22, %v123
    %vm129 = vcmask 17408
    %130 = vst.msk [vmem:[#allocation2] sm:$0x3] %vm129, %v128
    // Predicated region
    $region18: #{cnn_classifier_forward.9} parent=1 // pred_check
      %p131 = pneg %p16
    $region19: #{cnn_classifier_forward.9} parent=1 // pred_check_branch
      %133 = sbr.rel (%p131) target = $region21
    $region20: #{cnn_classifier_forward.9} parent=1 // pred_region
      %v134 = vld [vmem:[#allocation2] sm:$0x3]
      %v135 = vld [vmem:[%s2] sm:$0x1]
      %v137 = vlaneseq
      %v138 = vshrl.u32 %v137, 7
      %v139 = vsub.s32 0, %v138
      %v140 = vrot.slane %v135, %v139
      %v142 = vadd.f32 %v134, %v140
      %143 = vst.msk [vmem:[#allocation3] sm:$0x3] %vm129, %v142
    $region21: #{cnn_classifier_forward.9} parent=1 // pred_fallthru
      _
    // Predicated region
    $region22: #{cnn_classifier_forward.9} parent=1 // pred_check
      _
    $region23: #{cnn_classifier_forward.9} parent=1 // pred_check_branch
      %145 = sbr.rel (0) target = $region25
    $region24: #{cnn_classifier_forward.9} parent=1 // pred_region
      %s147 = ssub.s32 32, 32
      %148 = vsyncadd [#allocation4], %s147
      %s150 = sshll.u32 [#allocation3], 4
      %s151 = int_to_ptr.vmem [resolvable:$true] %s150
      %153 = dma.vmem_to_hbm [thread:$0]  %s151, 32, %s3, [#allocation4]
    $region25: #{cnn_classifier_forward.9} parent=1 // pred_fallthru
      _
    // Predicated region
    $region26: #{cnn_classifier_forward.9} parent=1 // pred_check
      _
    $region27: #{cnn_classifier_forward.9} parent=1 // pred_check_branch
      %155 = sbr.rel (0) target = $region29
    $region28: #{cnn_classifier_forward.9} parent=1 // pred_region
      %156 = dma.done [#allocation4], 32
    $region29: #{cnn_classifier_forward.9} parent=1 // pred_fallthru
      _
    %157 = vsyncpa [#allocation4], 1

</llo_original>
